<compile_context>
chip_gen: v7x
topology: tpu7x:2x2x1
jax: 0.10.0
libtpu: 0.0.40
codegen_flags: <defaults>
</compile_context>

<pallas_src>
import functools
import math

import jax
import jax.numpy as jnp
from jax.experimental import pallas as pl
from jax.experimental.pallas import tpu as pltpu

LANE = 128                        # lane-dense padding for every matmul N dim
COMPUTE_DTYPE = jnp.bfloat16      # MXU operand dtype (accumulation stays f32)
ITEM = jnp.dtype(COMPUTE_DTYPE).itemsize
CONV_ROW_TILE_CAP = 2048          # conv block rows (~2.6 MiB bf16 patches at Kp=160)
FC_ROW_TILE_CAP = 512             # fc block rows (K=3200 -> 3.2 MiB bf16 per buffer)


def _round_up(x, m):
    return (x + m - 1) // m * m


def _row_tile(m, cap):
    """Row-tile size: multiple of 8, <= ~cap, and >= 2 grid blocks whenever m >= 16 so
    dimension_semantics=('parallel',) can shard across both v7x TensorCores."""
    if m < 16:
        tm = _round_up(m, 8)
    else:
        nblk = max(2, pl.cdiv(m, cap))
        tm = _round_up(pl.cdiv(m, nblk), 8)
    mp = _round_up(m, tm)
    return tm, mp


# ----------------------------- Pallas kernels ------------------------------

def _conv_pool_kernel(p_ref, w_ref, b_ref, o_ref):
    """Fused conv-as-matmul + bias + ReLU + MaxPool2x2.

    p_ref: (4, tm, Kp)  phase-ordered im2col patches (one slab per 2x2 pool tap), bf16
    w_ref: (Kp, 128)    flattened conv weights, zero-padded to 128 out channels, bf16
    b_ref: (1, 128)     bias, f32
    o_ref: (tm, 128)    pooled + activated output rows, bf16
    """
    d0 = jnp.dot(p_ref[0], w_ref[...], preferred_element_type=jnp.float32)
    d1 = jnp.dot(p_ref[1], w_ref[...], preferred_element_type=jnp.float32)
    d2 = jnp.dot(p_ref[2], w_ref[...], preferred_element_type=jnp.float32)
    d3 = jnp.dot(p_ref[3], w_ref[...], preferred_element_type=jnp.float32)
    acc = jnp.maximum(jnp.maximum(d0, d1), jnp.maximum(d2, d3))
    # relu(max_p(conv_p) + b) == max_p(relu(conv_p + b)); bias/ReLU commute with max.
    o_ref[...] = jnp.maximum(acc + b_ref[...], 0.0).astype(o_ref.dtype)


def _fc_fused_kernel(x_ref, w1_ref, b1_ref, w2_ref, b2_ref, w3_ref, b3_ref,
                     o_ref, *, compute_dtype):
    """fc1+ReLU -> fc2+ReLU -> fc3 chained inside one kernel (intermediates stay in VMEM)."""
    h = jnp.dot(x_ref[...], w1_ref[...], preferred_element_type=jnp.float32)
    h = jnp.maximum(h + b1_ref[...], 0.0).astype(compute_dtype)
    h = jnp.dot(h, w2_ref[...], preferred_element_type=jnp.float32)
    h = jnp.maximum(h + b2_ref[...], 0.0).astype(compute_dtype)
    h = jnp.dot(h, w3_ref[...], preferred_element_type=jnp.float32) + b3_ref[...]
    o_ref[...] = h.astype(o_ref.dtype)


# ------------------------------ layer wrappers -------------------------------

def _pool_phase_patches(x, kh, kw):
    """im2col on NHWC input, row-ordered (b, ph, pw) and phase-ordered so the four
    2x2 max-pool taps are the four leading-dim slabs.  Returns (4, B*PH*PW, kh*kw*C)."""
    B, H, W, C = x.shape
    PH, PW = (H - kh + 1) // 2, (W - kw + 1) // 2
    phases = []
    for dy in range(2):
        for dx in range(2):
            taps = []
            for ki in range(kh):
                for kj in range(kw):
                    r0, c0 = dy + ki, dx + kj
                    taps.append(x[:, r0:r0 + 2 * PH:2, c0:c0 + 2 * PW:2, :])
            ph = jnp.concatenate(taps, axis=-1)                # (B, PH, PW, kh*kw*C)
            phases.append(ph.reshape(B * PH * PW, kh * kw * C))
    return jnp.stack(phases, axis=0)


def conv_relu_pool(x, wf, bf, *, kh, kw):
    """x: (B, H, W, C) NHWC.  wf: (Kp, 128) packed weights, bf: (1, 128) bias.
    Returns the lane-padded pooled activation (B*PH*PW, 128) bf16 (rows ordered b, ph, pw;
    lanes beyond the real out-channel count are exactly zero)."""
    patches = _pool_phase_patches(x.astype(COMPUTE_DTYPE), kh, kw)   # (4, M, K)
    M, K = patches.shape[1], patches.shape[2]
    Kp = wf.shape[0]
    tm, Mp = _row_tile(M, CONV_ROW_TILE_CAP)
    patches = jnp.pad(patches, ((0, 0), (0, Mp - M), (0, Kp - K)))

    out = pl.pallas_call(
        _conv_pool_kernel,
        out_shape=jax.ShapeDtypeStruct((Mp, LANE), COMPUTE_DTYPE),
        grid=(Mp // tm,),
        in_specs=[
            pl.BlockSpec((4, tm, Kp), lambda i: (0, i, 0)),
            pl.BlockSpec((Kp, LANE), lambda i: (0, 0)),
            pl.BlockSpec((1, LANE), lambda i: (0, 0)),
        ],
        out_specs=pl.BlockSpec((tm, LANE), lambda i: (i, 0)),
        compiler_params=pltpu.CompilerParams(dimension_semantics=("parallel",)),
        cost_estimate=pl.CostEstimate(
            flops=2 * 4 * Mp * Kp * LANE,
            transcendentals=0,
            bytes_accessed=(4 * Mp * Kp + Kp * LANE + Mp * LANE) * ITEM + LANE * 4),
    )(patches, wf, bf)
    return out[:M]


def fc_fused(x, p):
    """x: (B, 3200) bf16 = lane-padded NHWC flatten of the conv2 output.  Returns (B, 10) f32."""
    B, K = x.shape
    tb, Bp = _row_tile(B, FC_ROW_TILE_CAP)
    xp = jnp.pad(x.astype(COMPUTE_DTYPE), ((0, Bp - B), (0, 0)))
    kernel = functools.partial(_fc_fused_kernel, compute_dtype=COMPUTE_DTYPE)

    out = pl.pallas_call(
        kernel,
        out_shape=jax.ShapeDtypeStruct((Bp, LANE), jnp.float32),
        grid=(Bp // tb,),
        in_specs=[
            pl.BlockSpec((tb, K), lambda i: (i, 0)),
            pl.BlockSpec((K, LANE), lambda i: (0, 0)),
            pl.BlockSpec((1, LANE), lambda i: (0, 0)),
            pl.BlockSpec((LANE, LANE), lambda i: (0, 0)),
            pl.BlockSpec((1, LANE), lambda i: (0, 0)),
            pl.BlockSpec((LANE, LANE), lambda i: (0, 0)),
            pl.BlockSpec((1, LANE), lambda i: (0, 0)),
        ],
        out_specs=pl.BlockSpec((tb, LANE), lambda i: (i, 0)),
        compiler_params=pltpu.CompilerParams(dimension_semantics=("parallel",)),
        cost_estimate=pl.CostEstimate(
            flops=2 * Bp * (K * LANE + LANE * LANE + LANE * LANE),
            transcendentals=0,
            bytes_accessed=(Bp * K + K * LANE + 2 * LANE * LANE) * ITEM
                           + 3 * LANE * 4 + Bp * LANE * 4),
    )(xp, p["fc1_w"], p["fc1_b"], p["fc2_w"], p["fc2_b"], p["fc3_w"], p["fc3_b"])
    return out[:B, :10]


# --------------------------- parameter init / packing -------------------------

def _uniform(key, shape, bound):
    return jax.random.uniform(key, shape, jnp.float32, minval=-bound, maxval=bound)


def init_params(key):
    """PyTorch-layout parameters with PyTorch's default uniform(1/sqrt(fan_in)) init."""
    keys = jax.random.split(key, 10)
    p = {}
    fi = 3 * 5 * 5
    p["conv1_w"] = _uniform(keys[0], (6, 3, 5, 5), 1.0 / math.sqrt(fi))
    p["conv1_b"] = _uniform(keys[1], (6,), 1.0 / math.sqrt(fi))
    fi = 6 * 5 * 5
    p["conv2_w"] = _uniform(keys[2], (16, 6, 5, 5), 1.0 / math.sqrt(fi))
    p["conv2_b"] = _uniform(keys[3], (16,), 1.0 / math.sqrt(fi))
    fi = 16 * 5 * 5
    p["fc1_w"] = _uniform(keys[4], (120, fi), 1.0 / math.sqrt(fi))
    p["fc1_b"] = _uniform(keys[5], (120,), 1.0 / math.sqrt(fi))
    p["fc2_w"] = _uniform(keys[6], (84, 120), 1.0 / math.sqrt(120))
    p["fc2_b"] = _uniform(keys[7], (84,), 1.0 / math.sqrt(120))
    p["fc3_w"] = _uniform(keys[8], (10, 84), 1.0 / math.sqrt(84))
    p["fc3_b"] = _uniform(keys[9], (10,), 1.0 / math.sqrt(84))
    return p


def _pad2(a, rows, cols):
    return jnp.pad(a, ((0, rows - a.shape[0]), (0, cols - a.shape[1])))


def pack_params(p):
    """One-time transform of PyTorch-layout params into kernel-ready layout:
    conv weights -> (Kp, 128) bf16, rows ordered (ki, kj, c), K padded to a multiple of 16;
    fc1 weights  -> (25*128, 128) bf16: columns remapped from PyTorch's (c, h, w) flatten to
                    the kernel's lane-padded NHWC flatten ((h*5+w)*128 + c), zero rows on the
                    padded channel lanes (those lanes of the conv2 output are exactly zero);
    fc2/fc3      -> (128, 128) bf16; biases -> (1, 128) f32."""
    packed = {}
    for name in ("conv1", "conv2"):
        w = p[name + "_w"]                                     # (OC, C, kh, kw)
        oc, c, kh, kw = w.shape
        k = kh * kw * c
        kp = _round_up(k, 16)                                  # bf16 sublane-aligned K
        wf = jnp.transpose(w, (2, 3, 1, 0)).reshape(k, oc)     # rows ordered (ki, kj, c)
        packed[name + "_w"] = _pad2(wf, kp, LANE).astype(COMPUTE_DTYPE)
        packed[name + "_b"] = (jnp.pad(p[name + "_b"], (0, LANE - oc))
                               .reshape(1, LANE).astype(jnp.float32))
    # fc1: (120, 400) with (c, h, w) columns -> (3200, 128) matching (h, w, lane) flatten.
    w1 = p["fc1_w"].reshape(120, 16, 5, 5).transpose(0, 2, 3, 1)      # (120, h, w, c)
    w1 = jnp.pad(w1, ((0, 0), (0, 0), (0, 0), (0, LANE - 16)))        # zero padded-lane rows
    w1 = w1.reshape(120, 25 * LANE).T                                  # (3200, 120)
    packed["fc1_w"] = _pad2(w1, 25 * LANE, LANE).astype(COMPUTE_DTYPE)
    packed["fc1_b"] = jnp.pad(p["fc1_b"], (0, LANE - 120)).reshape(1, LANE).astype(jnp.float32)
    packed["fc2_w"] = _pad2(p["fc2_w"].T, LANE, LANE).astype(COMPUTE_DTYPE)
    packed["fc2_b"] = jnp.pad(p["fc2_b"], (0, LANE - 84)).reshape(1, LANE).astype(jnp.float32)
    packed["fc3_w"] = _pad2(p["fc3_w"].T, LANE, LANE).astype(COMPUTE_DTYPE)
    packed["fc3_b"] = jnp.pad(p["fc3_b"], (0, LANE - 10)).reshape(1, LANE).astype(jnp.float32)
    return packed


# ------------------------------ forward pass ---------------------------------

def basic_conv_net(packed, x):
    """x: (B, 3, 32, 32) NCHW f32 (PyTorch convention).  Returns (B, 10) f32."""
    B = x.shape[0]
    x = jnp.transpose(x, (0, 2, 3, 1))                                       # NHWC once
    y1 = conv_relu_pool(x, packed["conv1_w"], packed["conv1_b"], kh=5, kw=5)  # (B*14*14, 128) bf16
    x2 = y1[:, :6].reshape(B, 14, 14, 6)                                      # real channels only
    y2 = conv_relu_pool(x2, packed["conv2_w"], packed["conv2_b"], kh=5, kw=5)  # (B*25, 128) bf16
    x3 = y2.reshape(B, 25 * LANE)       # lane-padded (h, w, c) flatten; padded lanes are zero
    return fc_fused(x3, packed)                                                # (B, 10)


# ------------------------------ pure-JAX reference ----------------------------

def reference_forward(p, x):
    def conv(h, w, b):
        y = jax.lax.conv_general_dilated(
            h, w, window_strides=(1, 1), padding="VALID",
            dimension_numbers=("NCHW", "OIHW", "NCHW"))
        return y + b[None, :, None, None]

    def pool(h):
        return jax.lax.reduce_window(h, -jnp.inf, jax.lax.max,
                                     (1, 1, 2, 2), (1, 1, 2, 2), "VALID")

    h = pool(jax.nn.relu(conv(x, p["conv1_w"], p["conv1_b"])))
    h = pool(jax.nn.relu(conv(h, p["conv2_w"], p["conv2_b"])))
    h = h.reshape(h.shape[0], -1)                                   # PyTorch (c, h, w) flatten
    h = jax.nn.relu(h @ p["fc1_w"].T + p["fc1_b"])
    h = jax.nn.relu(h @ p["fc2_w"].T + p["fc2_b"])
    return h @ p["fc3_w"].T + p["fc3_b"]


if __name__ == "__main__":
    key = jax.random.PRNGKey(0)
    pkey, xkey = jax.random.split(key)
    params = init_params(pkey)
    packed = pack_params(params)
    # 32x32 input is required so flatten gives 16*5*5 = 400 features.
    x = jax.random.normal(xkey, (2, 3, 32, 32), dtype=jnp.float32)

    out = jax.block_until_ready(jax.jit(basic_conv_net)(packed, x))
    assert out.shape == (2, 10) and out.dtype == jnp.float32

    ref = jax.block_until_ready(jax.jit(reference_forward)(params, x))
    max_diff = float(jnp.max(jnp.abs(out - ref)))
    # bf16 MXU operands -> loose tolerance vs the f32 reference.
    assert max_diff < 0.1, f"max |diff| vs reference too large: {max_diff}"

    print("KERNEL_OK")
</pallas_src>

<mosaic_0001>
module attributes {stable_mosaic.version = 11 : i64} {
  func.func @_conv_pool_kernel(%arg0: i32, %arg1: memref<4x200x80xbf16, #tpu.memory_space<vmem>>, %arg2: memref<80x128xbf16, #tpu.memory_space<vmem>>, %arg3: memref<1x128xf32, #tpu.memory_space<vmem>>, %arg4: memref<200x128xbf16, #tpu.memory_space<vmem>>) attributes {dimension_semantics = [#tpu.dimension_semantics<parallel>], iteration_bounds = array<i64: 2>, scalar_prefetch = 0 : i64, scratch_operands = 0 : i64, tpu.core_type = #tpu.core_type<tc>, window_params = [{transform_indices = @transform_0, window_bounds = array<i64: 4, 200, 80>}, {pipeline_mode = #tpu.pipeline_mode<synchronous>, transform_indices = @transform_1, window_bounds = array<i64: 80, 128>}, {pipeline_mode = #tpu.pipeline_mode<synchronous>, transform_indices = @transform_2, window_bounds = array<i64: 1, 128>}, {transform_indices = @transform_3, window_bounds = array<i64: 200, 128>}]} {
    %c0 = arith.constant 0 : index
    %c0_0 = arith.constant 0 : index
    %c0_1 = arith.constant 0 : index
    %0 = vector.load %arg1[%c0, %c0_0, %c0_1] : memref<4x200x80xbf16, #tpu.memory_space<vmem>>, vector<1x200x80xbf16>
    %1 = vector.shape_cast %0 : vector<1x200x80xbf16> to vector<200x80xbf16>
    %c0_2 = arith.constant 0 : index
    %c0_3 = arith.constant 0 : index
    %2 = vector.load %arg2[%c0_2, %c0_3] : memref<80x128xbf16, #tpu.memory_space<vmem>>, vector<80x128xbf16>
    %cst = arith.constant dense<0.000000e+00> : vector<200x128xf32>
    %3 = tpu.matmul %1, %2, %cst {dimension_numbers = #tpu.dot_dimension_numbers<[1], [0], [0], [1], [0, 0, 1, 1], [], []>} : vector<200x80xbf16>, vector<80x128xbf16>, vector<200x128xf32> -> vector<200x128xf32>
    %c1 = arith.constant 1 : index
    %c0_4 = arith.constant 0 : index
    %c0_5 = arith.constant 0 : index
    %4 = vector.load %arg1[%c1, %c0_4, %c0_5] : memref<4x200x80xbf16, #tpu.memory_space<vmem>>, vector<1x200x80xbf16>
    %5 = vector.shape_cast %4 : vector<1x200x80xbf16> to vector<200x80xbf16>
    %c0_6 = arith.constant 0 : index
    %c0_7 = arith.constant 0 : index
    %6 = vector.load %arg2[%c0_6, %c0_7] : memref<80x128xbf16, #tpu.memory_space<vmem>>, vector<80x128xbf16>
    %cst_8 = arith.constant dense<0.000000e+00> : vector<200x128xf32>
    %7 = tpu.matmul %5, %6, %cst_8 {dimension_numbers = #tpu.dot_dimension_numbers<[1], [0], [0], [1], [0, 0, 1, 1], [], []>} : vector<200x80xbf16>, vector<80x128xbf16>, vector<200x128xf32> -> vector<200x128xf32>
    %c2 = arith.constant 2 : index
    %c0_9 = arith.constant 0 : index
    %c0_10 = arith.constant 0 : index
    %8 = vector.load %arg1[%c2, %c0_9, %c0_10] : memref<4x200x80xbf16, #tpu.memory_space<vmem>>, vector<1x200x80xbf16>
    %9 = vector.shape_cast %8 : vector<1x200x80xbf16> to vector<200x80xbf16>
    %c0_11 = arith.constant 0 : index
    %c0_12 = arith.constant 0 : index
    %10 = vector.load %arg2[%c0_11, %c0_12] : memref<80x128xbf16, #tpu.memory_space<vmem>>, vector<80x128xbf16>
    %cst_13 = arith.constant dense<0.000000e+00> : vector<200x128xf32>
    %11 = tpu.matmul %9, %10, %cst_13 {dimension_numbers = #tpu.dot_dimension_numbers<[1], [0], [0], [1], [0, 0, 1, 1], [], []>} : vector<200x80xbf16>, vector<80x128xbf16>, vector<200x128xf32> -> vector<200x128xf32>
    %c3 = arith.constant 3 : index
    %c0_14 = arith.constant 0 : index
    %c0_15 = arith.constant 0 : index
    %12 = vector.load %arg1[%c3, %c0_14, %c0_15] : memref<4x200x80xbf16, #tpu.memory_space<vmem>>, vector<1x200x80xbf16>
    %13 = vector.shape_cast %12 : vector<1x200x80xbf16> to vector<200x80xbf16>
    %c0_16 = arith.constant 0 : index
    %c0_17 = arith.constant 0 : index
    %14 = vector.load %arg2[%c0_16, %c0_17] : memref<80x128xbf16, #tpu.memory_space<vmem>>, vector<80x128xbf16>
    %cst_18 = arith.constant dense<0.000000e+00> : vector<200x128xf32>
    %15 = tpu.matmul %13, %14, %cst_18 {dimension_numbers = #tpu.dot_dimension_numbers<[1], [0], [0], [1], [0, 0, 1, 1], [], []>} : vector<200x80xbf16>, vector<80x128xbf16>, vector<200x128xf32> -> vector<200x128xf32>
    %16 = arith.maximumf %3, %7 : vector<200x128xf32>
    %17 = arith.maximumf %11, %15 : vector<200x128xf32>
    %18 = arith.maximumf %16, %17 : vector<200x128xf32>
    %c0_19 = arith.constant 0 : index
    %c0_20 = arith.constant 0 : index
    %19 = vector.load %arg3[%c0_19, %c0_20] : memref<1x128xf32, #tpu.memory_space<vmem>>, vector<1x128xf32>
    %20 = vector.broadcast %19 : vector<1x128xf32> to vector<200x128xf32>
    %21 = arith.addf %18, %20 : vector<200x128xf32>
    %cst_21 = arith.constant 0.000000e+00 : f32
    %22 = vector.broadcast %cst_21 : f32 to vector<200x128xf32>
    %23 = arith.maximumf %21, %22 : vector<200x128xf32>
    %24 = arith.truncf %23 : vector<200x128xf32> to vector<200x128xbf16>
    %c0_22 = arith.constant 0 : index
    %c0_23 = arith.constant 0 : index
    %25 = vector.load %arg4[%c0_22, %c0_23] : memref<200x128xbf16, #tpu.memory_space<vmem>>, vector<200x128xbf16>
    tpu.vector_store %arg4[%c0_22, %c0_23], %24 {strides = array<i32>} : memref<200x128xbf16, #tpu.memory_space<vmem>>, vector<200x128xbf16>,
    return
  }
  func.func @transform_0(%arg0: i32) -> (i32, i32, i32) {
    %c0_i32 = arith.constant 0 : i32
    %c0_i32_0 = arith.constant 0 : i32
    %c0_i32_1 = arith.constant 0 : i32
    return %c0_i32, %arg0, %c0_i32_0 : i32, i32, i32
  }
  func.func @transform_1(%arg0: i32) -> (i32, i32) {
    %c0_i32 = arith.constant 0 : i32
    %c0_i32_0 = arith.constant 0 : i32
    %c0_i32_1 = arith.constant 0 : i32
    return %c0_i32, %c0_i32_0 : i32, i32
  }
  func.func @transform_2(%arg0: i32) -> (i32, i32) {
    %c0_i32 = arith.constant 0 : i32
    %c0_i32_0 = arith.constant 0 : i32
    %c0_i32_1 = arith.constant 0 : i32
    return %c0_i32, %c0_i32_0 : i32, i32
  }
  func.func @transform_3(%arg0: i32) -> (i32, i32) {
    %c0_i32 = arith.constant 0 : i32
    %c0_i32_0 = arith.constant 0 : i32
    return %arg0, %c0_i32 : i32, i32
  }
}

module attributes {stable_mosaic.version = 11 : i64} {
  func.func @_conv_pool_kernel(%arg0: i32, %arg1: memref<4x32x160xbf16, #tpu.memory_space<vmem>>, %arg2: memref<160x128xbf16, #tpu.memory_space<vmem>>, %arg3: memref<1x128xf32, #tpu.memory_space<vmem>>, %arg4: memref<32x128xbf16, #tpu.memory_space<vmem>>) attributes {dimension_semantics = [#tpu.dimension_semantics<parallel>], iteration_bounds = array<i64: 2>, scalar_prefetch = 0 : i64, scratch_operands = 0 : i64, tpu.core_type = #tpu.core_type<tc>, window_params = [{transform_indices = @transform_0, window_bounds = array<i64: 4, 32, 160>}, {pipeline_mode = #tpu.pipeline_mode<synchronous>, transform_indices = @transform_1, window_bounds = array<i64: 160, 128>}, {pipeline_mode = #tpu.pipeline_mode<synchronous>, transform_indices = @transform_2, window_bounds = array<i64: 1, 128>}, {transform_indices = @transform_3, window_bounds = array<i64: 32, 128>}]} {
    %c0 = arith.constant 0 : index
    %c0_0 = arith.constant 0 : index
    %c0_1 = arith.constant 0 : index
    %0 = vector.load %arg1[%c0, %c0_0, %c0_1] : memref<4x32x160xbf16, #tpu.memory_space<vmem>>, vector<1x32x160xbf16>
    %1 = vector.shape_cast %0 : vector<1x32x160xbf16> to vector<32x160xbf16>
    %c0_2 = arith.constant 0 : index
    %c0_3 = arith.constant 0 : index
    %2 = vector.load %arg2[%c0_2, %c0_3] : memref<160x128xbf16, #tpu.memory_space<vmem>>, vector<160x128xbf16>
    %cst = arith.constant dense<0.000000e+00> : vector<32x128xf32>
    %3 = tpu.matmul %1, %2, %cst {dimension_numbers = #tpu.dot_dimension_numbers<[1], [0], [0], [1], [0, 0, 1, 1], [], []>} : vector<32x160xbf16>, vector<160x128xbf16>, vector<32x128xf32> -> vector<32x128xf32>
    %c1 = arith.constant 1 : index
    %c0_4 = arith.constant 0 : index
    %c0_5 = arith.constant 0 : index
    %4 = vector.load %arg1[%c1, %c0_4, %c0_5] : memref<4x32x160xbf16, #tpu.memory_space<vmem>>, vector<1x32x160xbf16>
    %5 = vector.shape_cast %4 : vector<1x32x160xbf16> to vector<32x160xbf16>
    %c0_6 = arith.constant 0 : index
    %c0_7 = arith.constant 0 : index
    %6 = vector.load %arg2[%c0_6, %c0_7] : memref<160x128xbf16, #tpu.memory_space<vmem>>, vector<160x128xbf16>
    %cst_8 = arith.constant dense<0.000000e+00> : vector<32x128xf32>
    %7 = tpu.matmul %5, %6, %cst_8 {dimension_numbers = #tpu.dot_dimension_numbers<[1], [0], [0], [1], [0, 0, 1, 1], [], []>} : vector<32x160xbf16>, vector<160x128xbf16>, vector<32x128xf32> -> vector<32x128xf32>
    %c2 = arith.constant 2 : index
    %c0_9 = arith.constant 0 : index
    %c0_10 = arith.constant 0 : index
    %8 = vector.load %arg1[%c2, %c0_9, %c0_10] : memref<4x32x160xbf16, #tpu.memory_space<vmem>>, vector<1x32x160xbf16>
    %9 = vector.shape_cast %8 : vector<1x32x160xbf16> to vector<32x160xbf16>
    %c0_11 = arith.constant 0 : index
    %c0_12 = arith.constant 0 : index
    %10 = vector.load %arg2[%c0_11, %c0_12] : memref<160x128xbf16, #tpu.memory_space<vmem>>, vector<160x128xbf16>
    %cst_13 = arith.constant dense<0.000000e+00> : vector<32x128xf32>
    %11 = tpu.matmul %9, %10, %cst_13 {dimension_numbers = #tpu.dot_dimension_numbers<[1], [0], [0], [1], [0, 0, 1, 1], [], []>} : vector<32x160xbf16>, vector<160x128xbf16>, vector<32x128xf32> -> vector<32x128xf32>
    %c3 = arith.constant 3 : index
    %c0_14 = arith.constant 0 : index
    %c0_15 = arith.constant 0 : index
    %12 = vector.load %arg1[%c3, %c0_14, %c0_15] : memref<4x32x160xbf16, #tpu.memory_space<vmem>>, vector<1x32x160xbf16>
    %13 = vector.shape_cast %12 : vector<1x32x160xbf16> to vector<32x160xbf16>
    %c0_16 = arith.constant 0 : index
    %c0_17 = arith.constant 0 : index
    %14 = vector.load %arg2[%c0_16, %c0_17] : memref<160x128xbf16, #tpu.memory_space<vmem>>, vector<160x128xbf16>
    %cst_18 = arith.constant dense<0.000000e+00> : vector<32x128xf32>
    %15 = tpu.matmul %13, %14, %cst_18 {dimension_numbers = #tpu.dot_dimension_numbers<[1], [0], [0], [1], [0, 0, 1, 1], [], []>} : vector<32x160xbf16>, vector<160x128xbf16>, vector<32x128xf32> -> vector<32x128xf32>
    %16 = arith.maximumf %3, %7 : vector<32x128xf32>
    %17 = arith.maximumf %11, %15 : vector<32x128xf32>
    %18 = arith.maximumf %16, %17 : vector<32x128xf32>
    %c0_19 = arith.constant 0 : index
    %c0_20 = arith.constant 0 : index
    %19 = vector.load %arg3[%c0_19, %c0_20] : memref<1x128xf32, #tpu.memory_space<vmem>>, vector<1x128xf32>
    %20 = vector.broadcast %19 : vector<1x128xf32> to vector<32x128xf32>
    %21 = arith.addf %18, %20 : vector<32x128xf32>
    %cst_21 = arith.constant 0.000000e+00 : f32
    %22 = vector.broadcast %cst_21 : f32 to vector<32x128xf32>
    %23 = arith.maximumf %21, %22 : vector<32x128xf32>
    %24 = arith.truncf %23 : vector<32x128xf32> to vector<32x128xbf16>
    %c0_22 = arith.constant 0 : index
    %c0_23 = arith.constant 0 : index
    %25 = vector.load %arg4[%c0_22, %c0_23] : memref<32x128xbf16, #tpu.memory_space<vmem>>, vector<32x128xbf16>
    tpu.vector_store %arg4[%c0_22, %c0_23], %24 {strides = array<i32>} : memref<32x128xbf16, #tpu.memory_space<vmem>>, vector<32x128xbf16>,
    return
  }
  func.func @transform_0(%arg0: i32) -> (i32, i32, i32) {
    %c0_i32 = arith.constant 0 : i32
    %c0_i32_0 = arith.constant 0 : i32
    %c0_i32_1 = arith.constant 0 : i32
    return %c0_i32, %arg0, %c0_i32_0 : i32, i32, i32
  }
  func.func @transform_1(%arg0: i32) -> (i32, i32) {
    %c0_i32 = arith.constant 0 : i32
    %c0_i32_0 = arith.constant 0 : i32
    %c0_i32_1 = arith.constant 0 : i32
    return %c0_i32, %c0_i32_0 : i32, i32
  }
  func.func @transform_2(%arg0: i32) -> (i32, i32) {
    %c0_i32 = arith.constant 0 : i32
    %c0_i32_0 = arith.constant 0 : i32
    %c0_i32_1 = arith.constant 0 : i32
    return %c0_i32, %c0_i32_0 : i32, i32
  }
  func.func @transform_3(%arg0: i32) -> (i32, i32) {
    %c0_i32 = arith.constant 0 : i32
    %c0_i32_0 = arith.constant 0 : i32
    return %arg0, %c0_i32 : i32, i32
  }
}

module attributes {stable_mosaic.version = 11 : i64} {
  func.func @_fc_fused_kernel(%arg0: i32, %arg1: memref<8x3200xbf16, #tpu.memory_space<vmem>>, %arg2: memref<3200x128xbf16, #tpu.memory_space<vmem>>, %arg3: memref<1x128xf32, #tpu.memory_space<vmem>>, %arg4: memref<128x128xbf16, #tpu.memory_space<vmem>>, %arg5: memref<1x128xf32, #tpu.memory_space<vmem>>, %arg6: memref<128x128xbf16, #tpu.memory_space<vmem>>, %arg7: memref<1x128xf32, #tpu.memory_space<vmem>>, %arg8: memref<8x128xf32, #tpu.memory_space<vmem>>) attributes {dimension_semantics = [#tpu.dimension_semantics<parallel>], iteration_bounds = array<i64: 1>, scalar_prefetch = 0 : i64, scratch_operands = 0 : i64, tpu.core_type = #tpu.core_type<tc>, window_params = [{transform_indices = @transform_0, window_bounds = array<i64: 8, 3200>}, {pipeline_mode = #tpu.pipeline_mode<synchronous>, transform_indices = @transform_1, window_bounds = array<i64: 3200, 128>}, {pipeline_mode = #tpu.pipeline_mode<synchronous>, transform_indices = @transform_2, window_bounds = array<i64: 1, 128>}, {pipeline_mode = #tpu.pipeline_mode<synchronous>, transform_indices = @transform_3, window_bounds = array<i64: 128, 128>}, {pipeline_mode = #tpu.pipeline_mode<synchronous>, transform_indices = @transform_4, window_bounds = array<i64: 1, 128>}, {pipeline_mode = #tpu.pipeline_mode<synchronous>, transform_indices = @transform_5, window_bounds = array<i64: 128, 128>}, {pipeline_mode = #tpu.pipeline_mode<synchronous>, transform_indices = @transform_6, window_bounds = array<i64: 1, 128>}, {transform_indices = @transform_7, window_bounds = array<i64: 8, 128>}]} {
    %c0 = arith.constant 0 : index
    %c0_0 = arith.constant 0 : index
    %0 = vector.load %arg1[%c0, %c0_0] : memref<8x3200xbf16, #tpu.memory_space<vmem>>, vector<8x3200xbf16>
    %c0_1 = arith.constant 0 : index
    %c0_2 = arith.constant 0 : index
    %1 = vector.load %arg2[%c0_1, %c0_2] : memref<3200x128xbf16, #tpu.memory_space<vmem>>, vector<3200x128xbf16>
    %cst = arith.constant dense<0.000000e+00> : vector<8x128xf32>
    %2 = tpu.matmul %0, %1, %cst {dimension_numbers = #tpu.dot_dimension_numbers<[1], [0], [0], [1], [0, 0, 1, 1], [], []>} : vector<8x3200xbf16>, vector<3200x128xbf16>, vector<8x128xf32> -> vector<8x128xf32>
    %c0_3 = arith.constant 0 : index
    %c0_4 = arith.constant 0 : index
    %3 = vector.load %arg3[%c0_3, %c0_4] : memref<1x128xf32, #tpu.memory_space<vmem>>, vector<1x128xf32>
    %4 = vector.broadcast %3 : vector<1x128xf32> to vector<8x128xf32>
    %5 = arith.addf %2, %4 : vector<8x128xf32>
    %cst_5 = arith.constant 0.000000e+00 : f32
    %6 = vector.broadcast %cst_5 : f32 to vector<8x128xf32>
    %7 = arith.maximumf %5, %6 : vector<8x128xf32>
    %8 = arith.truncf %7 : vector<8x128xf32> to vector<8x128xbf16>
    %c0_6 = arith.constant 0 : index
    %c0_7 = arith.constant 0 : index
    %9 = vector.load %arg4[%c0_6, %c0_7] : memref<128x128xbf16, #tpu.memory_space<vmem>>, vector<128x128xbf16>
    %cst_8 = arith.constant dense<0.000000e+00> : vector<8x128xf32>
    %10 = tpu.matmul %8, %9, %cst_8 {dimension_numbers = #tpu.dot_dimension_numbers<[1], [0], [0], [1], [0, 0, 1, 1], [], []>} : vector<8x128xbf16>, vector<128x128xbf16>, vector<8x128xf32> -> vector<8x128xf32>
    %c0_9 = arith.constant 0 : index
    %c0_10 = arith.constant 0 : index
    %11 = vector.load %arg5[%c0_9, %c0_10] : memref<1x128xf32, #tpu.memory_space<vmem>>, vector<1x128xf32>
    %12 = vector.broadcast %11 : vector<1x128xf32> to vector<8x128xf32>
    %13 = arith.addf %10, %12 : vector<8x128xf32>
    %cst_11 = arith.constant 0.000000e+00 : f32
    %14 = vector.broadcast %cst_11 : f32 to vector<8x128xf32>
    %15 = arith.maximumf %13, %14 : vector<8x128xf32>
    %16 = arith.truncf %15 : vector<8x128xf32> to vector<8x128xbf16>
    %c0_12 = arith.constant 0 : index
    %c0_13 = arith.constant 0 : index
    %17 = vector.load %arg6[%c0_12, %c0_13] : memref<128x128xbf16, #tpu.memory_space<vmem>>, vector<128x128xbf16>
    %cst_14 = arith.constant dense<0.000000e+00> : vector<8x128xf32>
    %18 = tpu.matmul %16, %17, %cst_14 {dimension_numbers = #tpu.dot_dimension_numbers<[1], [0], [0], [1], [0, 0, 1, 1], [], []>} : vector<8x128xbf16>, vector<128x128xbf16>, vector<8x128xf32> -> vector<8x128xf32>
    %c0_15 = arith.constant 0 : index
    %c0_16 = arith.constant 0 : index
    %19 = vector.load %arg7[%c0_15, %c0_16] : memref<1x128xf32, #tpu.memory_space<vmem>>, vector<1x128xf32>
    %20 = vector.broadcast %19 : vector<1x128xf32> to vector<8x128xf32>
    %21 = arith.addf %18, %20 : vector<8x128xf32>
    %c0_17 = arith.constant 0 : index
    %c0_18 = arith.constant 0 : index
    %22 = vector.load %arg8[%c0_17, %c0_18] : memref<8x128xf32, #tpu.memory_space<vmem>>, vector<8x128xf32>
    tpu.vector_store %arg8[%c0_17, %c0_18], %21 {strides = array<i32>} : memref<8x128xf32, #tpu.memory_space<vmem>>, vector<8x128xf32>,
    return
  }
  func.func @transform_0(%arg0: i32) -> (i32, i32) {
    %c0_i32 = arith.constant 0 : i32
    %c0_i32_0 = arith.constant 0 : i32
    return %arg0, %c0_i32 : i32, i32
  }
  func.func @transform_1(%arg0: i32) -> (i32, i32) {
    %c0_i32 = arith.constant 0 : i32
    %c0_i32_0 = arith.constant 0 : i32
    %c0_i32_1 = arith.constant 0 : i32
    return %c0_i32, %c0_i32_0 : i32, i32
  }
  func.func @transform_2(%arg0: i32) -> (i32, i32) {
    %c0_i32 = arith.constant 0 : i32
    %c0_i32_0 = arith.constant 0 : i32
    %c0_i32_1 = arith.constant 0 : i32
    return %c0_i32, %c0_i32_0 : i32, i32
  }
  func.func @transform_3(%arg0: i32) -> (i32, i32) {
    %c0_i32 = arith.constant 0 : i32
    %c0_i32_0 = arith.constant 0 : i32
    %c0_i32_1 = arith.constant 0 : i32
    return %c0_i32, %c0_i32_0 : i32, i32
  }
  func.func @transform_4(%arg0: i32) -> (i32, i32) {
    %c0_i32 = arith.constant 0 : i32
    %c0_i32_0 = arith.constant 0 : i32
    %c0_i32_1 = arith.constant 0 : i32
    return %c0_i32, %c0_i32_0 : i32, i32
  }
  func.func @transform_5(%arg0: i32) -> (i32, i32) {
    %c0_i32 = arith.constant 0 : i32
    %c0_i32_0 = arith.constant 0 : i32
    %c0_i32_1 = arith.constant 0 : i32
    return %c0_i32, %c0_i32_0 : i32, i32
  }
  func.func @transform_6(%arg0: i32) -> (i32, i32) {
    %c0_i32 = arith.constant 0 : i32
    %c0_i32_0 = arith.constant 0 : i32
    %c0_i32_1 = arith.constant 0 : i32
    return %c0_i32, %c0_i32_0 : i32, i32
  }
  func.func @transform_7(%arg0: i32) -> (i32, i32) {
    %c0_i32 = arith.constant 0 : i32
    %c0_i32_0 = arith.constant 0 : i32
    return %arg0, %c0_i32 : i32, i32
  }
}

</mosaic_0001>

<llo_original>
// kernel: basic_conv_net.3
$region0: #{basic_conv_net.3}
  #allocation0 [shape = 'u32[]', space=smem, size = 0x4, offset = 0x4, fixed_abs, tag = 'smem constant byte address 0x4 - core index']
  #allocation1 [shape = 'u32[144,128]{1,0:T(1,128)}', space=vmem, size = 0x12000, scoped, tag = 'internal scratch']
  %s0 = inlined_call_operand.vmem [shape: bf16[4,400,80], index: 0, kind: input, shape index: {}]
  %s1 = inlined_call_operand.vmem [shape: bf16[80,128], index: 1, kind: input, shape index: {}]
  %s2 = inlined_call_operand.vmem [shape: f32[1,128], index: 2, kind: input, shape index: {}]
  %s3 = inlined_call_operand.vmem [shape: bf16[400,128], index: 3, kind: output, shape index: {}]
  %s4 = sld [smem:[#allocation0]]
  $region86: #{basic_conv_net.3} parent=0
    _
  %s6 = ssub.s32 1, %s4
  %s7 = scalar_select 0, %s6, %s4
  $region1: #{basic_conv_net.3} parent=0
    #allocation2 [shape = 'u8[409600]{0}', space=vmem, size = 0x64000, scoped, tag = 'input window, operand 0']
    loop: start=0, step=1, limit=4
    $region2: #{basic_conv_net.3} parent=1 // loop_pre_header
      _
    $region3: #{basic_conv_net.3} parent=1 // loop_header
      %s9 = sphi 0, %s13
      %p10 = scmp.ge.s32.totalorder %s9, 4
      %s19 = sphi 0, %s21
      %s22 = sphi 0, %s19
      %s23 = sphi 0, %s22
      %s39 = sphi 0, %s23
      %s43 = sphi 0, %s43
      %s45 = sphi 0, %s43
      %s46 = sphi 0, %s45
      %s60 = sphi 0, %s46
      %s64 = sphi 0, %s64
      %s66 = sphi 0, %s64
      %s67 = sphi 0, %s66
      %s81 = sphi 0, %s67
      %s87 = sphi 0, %s89
      %s90 = sphi 0, %s87
      %s91 = sphi 0, %s90
      %s107 = sphi 0, %s91
    $region4: #{basic_conv_net.3} parent=1 // loop_header_branch
      %12 = sbr.rel (%p10) target = $region8
    $region5: #{basic_conv_net.3} parent=1 // loop_body
      %s14 = ssub.s32 %s9, 1
      %s15 = ssub.s32 %s9, 2
      %s16 = sadd.s32 %s9, 1
      %s17 = ssub.s32 %s9, %s16
      %p18 = scmp.eq.s32.totalorder %s17, 0
      %s20 = sadd.s32 %s19, 1
      %s21 = scalar_select %p18, %s19, %s20
      %p24 = pneg %p18
      %p25 = scmp.eq.s32.totalorder %s9, 1
      %p26 = por %p24, %p25
      %p27 = scmp.ne.s32.totalorder %s19, %s22
      %p28 = scmp.eq.s32.totalorder %s9, 0
      %p29 = por %p27, %p28
      %p30 = scmp.ne.s32.totalorder %s19, %s22
      %p31 = scmp.eq.s32.totalorder %s14, 1
      %p32 = por %p30, %p31
      %p33 = scmp.ne.s32.totalorder %s22, %s23
      %p34 = scmp.eq.s32.totalorder %s14, 0
      %p35 = por %p33, %p34
      %p36 = scmp.ne.s32.totalorder %s22, %s23
      %p37 = scmp.eq.s32.totalorder %s15, 1
      %p38 = por %p36, %p37
      %p40 = scmp.ne.s32.totalorder %s23, %s39
      %p41 = scmp.eq.s32.totalorder %s15, 0
      %p42 = por %p40, %p41
      %s44 = sadd.s32 %s43, 1
      %p47 = scmp.eq.s32.totalorder %s9, 1
      %p48 = scmp.ne.s32.totalorder %s43, %s45
      %p49 = scmp.eq.s32.totalorder %s9, 0
      %p50 = por %p48, %p49
      %p51 = scmp.ne.s32.totalorder %s43, %s45
      %p52 = scmp.eq.s32.totalorder %s14, 1
      %p53 = por %p51, %p52
      %p54 = scmp.ne.s32.totalorder %s45, %s46
      %p55 = scmp.eq.s32.totalorder %s14, 0
      %p56 = por %p54, %p55
      %p57 = scmp.ne.s32.totalorder %s45, %s46
      %p58 = scmp.eq.s32.totalorder %s15, 1
      %p59 = por %p57, %p58
      %p61 = scmp.ne.s32.totalorder %s46, %s60
      %p62 = scmp.eq.s32.totalorder %s15, 0
      %p63 = por %p61, %p62
      %s65 = sadd.s32 %s64, 1
      %p68 = scmp.eq.s32.totalorder %s9, 1
      %p69 = scmp.ne.s32.totalorder %s64, %s66
      %p70 = scmp.eq.s32.totalorder %s9, 0
      %p71 = por %p69, %p70
      %p72 = scmp.ne.s32.totalorder %s64, %s66
      %p73 = scmp.eq.s32.totalorder %s14, 1
      %p74 = por %p72, %p73
      %p75 = scmp.ne.s32.totalorder %s66, %s67
      %p76 = scmp.eq.s32.totalorder %s14, 0
      %p77 = por %p75, %p76
      %p78 = scmp.ne.s32.totalorder %s66, %s67
      %p79 = scmp.eq.s32.totalorder %s15, 1
      %p80 = por %p78, %p79
      %p82 = scmp.ne.s32.totalorder %s67, %s81
      %p83 = scmp.eq.s32.totalorder %s15, 0
      %p84 = por %p82, %p83
      %s85 = ssub.s32 %s9, %s16
      %p86 = scmp.eq.s32.totalorder %s85, 0
      %s88 = sadd.s32 %s87, 1
      %s89 = scalar_select %p86, %s87, %s88
      %p92 = pneg %p86
      %p93 = scmp.eq.s32.totalorder %s9, 1
      %p94 = por %p92, %p93
      %p95 = scmp.ne.s32.totalorder %s87, %s90
      %p96 = scmp.eq.s32.totalorder %s9, 0
      %p97 = por %p95, %p96
      %p98 = scmp.ne.s32.totalorder %s87, %s90
      %p99 = scmp.eq.s32.totalorder %s14, 1
      %p100 = por %p98, %p99
      %p101 = scmp.ne.s32.totalorder %s90, %s91
      %p102 = scmp.eq.s32.totalorder %s14, 0
      %p103 = por %p101, %p102
      %p104 = scmp.ne.s32.totalorder %s90, %s91
      %p105 = scmp.eq.s32.totalorder %s15, 1
      %p106 = por %p104, %p105
      %p108 = scmp.ne.s32.totalorder %s91, %s107
      %p109 = scmp.eq.s32.totalorder %s15, 0
      %p110 = por %p108, %p109
      %p111 = scmp.le.s32.totalorder 1, %s9
      %p112 = scmp.lt.s32.totalorder %s9, 3
      %p113 = pnand %p111, %p112
      %p114 = pneg %p113
      // Predicated region
      $region9: #{basic_conv_net.3} parent=5 // pred_check
        _
      $region10: #{basic_conv_net.3} parent=5 // pred_check_branch
        %116 = sbr.rel (%p113) target = $region12
      $region11: #{basic_conv_net.3} parent=5 // pred_region
        %s117 = ssub.s32 %s9, 1
        // Predicated region
        $region13: #{basic_conv_net.3} parent=11 // pred_check
          %p118 = pneg %p56
        $region14: #{basic_conv_net.3} parent=11 // pred_check_branch
          %120 = sbr.rel (%p118) target = $region16
        $region15: #{basic_conv_net.3} parent=11 // pred_region
          _
        $region16: #{basic_conv_net.3} parent=11 // pred_fallthru
          _
        // Predicated region
        $region17: #{basic_conv_net.3} parent=11 // pred_check
          %p121 = pneg %p77
        $region18: #{basic_conv_net.3} parent=11 // pred_check_branch
          %123 = sbr.rel (%p121) target = $region20
        $region19: #{basic_conv_net.3} parent=11 // pred_region
          _
        $region20: #{basic_conv_net.3} parent=11 // pred_fallthru
          _
      $region12: #{basic_conv_net.3} parent=5 // pred_fallthru
        _
      %p124 = scmp.lt.s32.totalorder %s9, 2
      // Predicated region
      $region21: #{basic_conv_net.3} parent=5 // pred_check
        %p125 = pneg %p124
      $region22: #{basic_conv_net.3} parent=5 // pred_check_branch
        %127 = sbr.rel (%p125) target = $region24
      $region23: #{basic_conv_net.3} parent=5 // pred_region
        // Predicated region
        $region25: #{basic_conv_net.3} parent=23 // pred_check
          %p128 = pneg %p29
        $region26: #{basic_conv_net.3} parent=23 // pred_check_branch
          %130 = sbr.rel (%p128) target = $region28
        $region27: #{basic_conv_net.3} parent=23 // pred_region
          %s131 = sand.u32 %s19, 1
          %s132 = sand.u32 %s19, 1
          %s133 = smul.addr %s132, 400
          %s134 = scalar_lea.vmem [#allocation2], %s133
          %s135 = smul.u32 25, %s9
          %s136 = smul.addr %s135, 4
          %s137 = scalar_lea.vmem %s0, %s136
          // Predicated region
          $region29: #{basic_conv_net.3} parent=27 // pred_check
            _
          $region30: #{basic_conv_net.3} parent=27 // pred_check_branch
            %139 = sbr.rel (0) target = $region32
          $region31: #{basic_conv_net.3} parent=27 // pred_region
            // Predicated region
            $region33: #{basic_conv_net.3} parent=31 // pred_check
              _
            $region34: #{basic_conv_net.3} parent=31 // pred_check_branch
              %141 = sbr.rel target = $region36
            $region35: #{basic_conv_net.3} parent=31 // pred_region
              // Predicated region
              $region48: #{basic_conv_net.3} parent=35 // pred_check
                _
              $region49: #{basic_conv_net.3} parent=35 // pred_check_branch
                %354 = sbr.rel (0) target = $region51
              $region50: #{basic_conv_net.3} parent=35 // pred_region
                loop: start=0, step=1, limit=1
                $region52: #{basic_conv_net.3} parent=50 // loop_pre_header
                  _
                $region53: #{basic_conv_net.3} parent=50 // loop_header
                  %s356 = sphi 0, %s360
                  %p357 = scmp.ge.s32.totalorder %s356, 1
                  %s361 = sphi %s137, %s137
                  %s362 = sphi %s134, %s134
                $region54: #{basic_conv_net.3} parent=50 // loop_header_branch
                  %359 = sbr.rel (%p357) target = $region58
                $region55: #{basic_conv_net.3} parent=50 // loop_body
                  _
                $region56: #{basic_conv_net.3} parent=50 // loop_footer
                  %s360 = sadd.s32 1, %s356
                $region57: #{basic_conv_net.3} parent=50 // loop_footer_branch
                  %355 = sbr.rel target = $region53
                $region58: #{basic_conv_net.3} parent=50 // loop_exit
                  _
                loop: start=0, step=1, limit=1
                $region59: #{basic_conv_net.3} parent=50 // loop_pre_header
                  _
                $region60: #{basic_conv_net.3} parent=50 // loop_header
                  %s365 = sphi 0, %s369
                  %p366 = scmp.ge.s32.totalorder %s365, 1
                  %s370 = sphi %s137, %s137
                  %s371 = sphi %s134, %s134
                $region61: #{basic_conv_net.3} parent=50 // loop_header_branch
                  %368 = sbr.rel (%p366) target = $region65
                $region62: #{basic_conv_net.3} parent=50 // loop_body
                  %v372 = vld [vmem:[%s370] sm:$0xf]
                  %373 = vst [vmem:[%s371] sm:$0xf] %v372
                  %v374 = vld [vmem:[%s370 + $0x4] sm:$0xf]
                  %375 = vst [vmem:[%s371 + $0x4] sm:$0xf] %v374
                  %v376 = vld [vmem:[%s370 + $0x8] sm:$0xf]
                  %377 = vst [vmem:[%s371 + $0x8] sm:$0xf] %v376
                  %v378 = vld [vmem:[%s370 + $0xc] sm:$0xf]
                  %379 = vst [vmem:[%s371 + $0xc] sm:$0xf] %v378
                  %v380 = vld [vmem:[%s370 + $0x10] sm:$0xf]
                  %381 = vst [vmem:[%s371 + $0x10] sm:$0xf] %v380
                  %v382 = vld [vmem:[%s370 + $0x14] sm:$0xf]
                  %383 = vst [vmem:[%s371 + $0x14] sm:$0xf] %v382
                  %v384 = vld [vmem:[%s370 + $0x18] sm:$0xf]
                  %385 = vst [vmem:[%s371 + $0x18] sm:$0xf] %v384
                  %v386 = vld [vmem:[%s370 + $0x1c] sm:$0xf]
                  %387 = vst [vmem:[%s371 + $0x1c] sm:$0xf] %v386
                  %v388 = vld [vmem:[%s370 + $0x20] sm:$0xf]
                  %389 = vst [vmem:[%s371 + $0x20] sm:$0xf] %v388
                  %v390 = vld [vmem:[%s370 + $0x24] sm:$0xf]
                  %391 = vst [vmem:[%s371 + $0x24] sm:$0xf] %v390
                  %v392 = vld [vmem:[%s370 + $0x28] sm:$0xf]
                  %393 = vst [vmem:[%s371 + $0x28] sm:$0xf] %v392
                  %v394 = vld [vmem:[%s370 + $0x2c] sm:$0xf]
                  %395 = vst [vmem:[%s371 + $0x2c] sm:$0xf] %v394
                  %v396 = vld [vmem:[%s370 + $0x30] sm:$0xf]
                  %397 = vst [vmem:[%s371 + $0x30] sm:$0xf] %v396
                  %v398 = vld [vmem:[%s370 + $0x34] sm:$0xf]
                  %399 = vst [vmem:[%s371 + $0x34] sm:$0xf] %v398
                  %v400 = vld [vmem:[%s370 + $0x38] sm:$0xf]
                  %401 = vst [vmem:[%s371 + $0x38] sm:$0xf] %v400
                  %v402 = vld [vmem:[%s370 + $0x3c] sm:$0xf]
                  %403 = vst [vmem:[%s371 + $0x3c] sm:$0xf] %v402
                  %v404 = vld [vmem:[%s370 + $0x40] sm:$0xf]
                  %405 = vst [vmem:[%s371 + $0x40] sm:$0xf] %v404
                  %v406 = vld [vmem:[%s370 + $0x44] sm:$0xf]
                  %407 = vst [vmem:[%s371 + $0x44] sm:$0xf] %v406
                  %v408 = vld [vmem:[%s370 + $0x48] sm:$0xf]
                  %409 = vst [vmem:[%s371 + $0x48] sm:$0xf] %v408
                  %v410 = vld [vmem:[%s370 + $0x4c] sm:$0xf]
                  %411 = vst [vmem:[%s371 + $0x4c] sm:$0xf] %v410
                  %v412 = vld [vmem:[%s370 + $0x50] sm:$0xf]
                  %413 = vst [vmem:[%s371 + $0x50] sm:$0xf] %v412
                  %v414 = vld [vmem:[%s370 + $0x54] sm:$0xf]
                  %415 = vst [vmem:[%s371 + $0x54] sm:$0xf] %v414
                  %v416 = vld [vmem:[%s370 + $0x58] sm:$0xf]
                  %417 = vst [vmem:[%s371 + $0x58] sm:$0xf] %v416
                  %v418 = vld [vmem:[%s370 + $0x5c] sm:$0xf]
                  %419 = vst [vmem:[%s371 + $0x5c] sm:$0xf] %v418
                  %v420 = vld [vmem:[%s370 + $0x60] sm:$0xf]
                  %421 = vst [vmem:[%s371 + $0x60] sm:$0xf] %v420
                  %v422 = vld [vmem:[%s370 + $0xc8] sm:$0xf]
                  %423 = vst [vmem:[%s371 + $0x64] sm:$0xf] %v422
                  %v424 = vld [vmem:[%s370 + $0xcc] sm:$0xf]
                  %425 = vst [vmem:[%s371 + $0x68] sm:$0xf] %v424
                  %v426 = vld [vmem:[%s370 + $0xd0] sm:$0xf]
                  %427 = vst [vmem:[%s371 + $0x6c] sm:$0xf] %v426
                  %v428 = vld [vmem:[%s370 + $0xd4] sm:$0xf]
                  %429 = vst [vmem:[%s371 + $0x70] sm:$0xf] %v428
                  %v430 = vld [vmem:[%s370 + $0xd8] sm:$0xf]
                  %431 = vst [vmem:[%s371 + $0x74] sm:$0xf] %v430
                  %v432 = vld [vmem:[%s370 + $0xdc] sm:$0xf]
                  %433 = vst [vmem:[%s371 + $0x78] sm:$0xf] %v432
                  %v434 = vld [vmem:[%s370 + $0xe0] sm:$0xf]
                  %435 = vst [vmem:[%s371 + $0x7c] sm:$0xf] %v434
                  %v436 = vld [vmem:[%s370 + $0xe4] sm:$0xf]
                  %437 = vst [vmem:[%s371 + $0x80] sm:$0xf] %v436
                  %v438 = vld [vmem:[%s370 + $0xe8] sm:$0xf]
                  %439 = vst [vmem:[%s371 + $0x84] sm:$0xf] %v438
                  %v440 = vld [vmem:[%s370 + $0xec] sm:$0xf]
                  %441 = vst [vmem:[%s371 + $0x88] sm:$0xf] %v440
                  %v442 = vld [vmem:[%s370 + $0xf0] sm:$0xf]
                  %443 = vst [vmem:[%s371 + $0x8c] sm:$0xf] %v442
                  %v444 = vld [vmem:[%s370 + $0xf4] sm:$0xf]
                  %445 = vst [vmem:[%s371 + $0x90] sm:$0xf] %v444
                  %v446 = vld [vmem:[%s370 + $0xf8] sm:$0xf]
                  %447 = vst [vmem:[%s371 + $0x94] sm:$0xf] %v446
                  %v448 = vld [vmem:[%s370 + $0xfc] sm:$0xf]
                  %449 = vst [vmem:[%s371 + $0x98] sm:$0xf] %v448
                  %v450 = vld [vmem:[%s370 + $0x100] sm:$0xf]
                  %451 = vst [vmem:[%s371 + $0x9c] sm:$0xf] %v450
                  %v452 = vld [vmem:[%s370 + $0x104] sm:$0xf]
                  %453 = vst [vmem:[%s371 + $0xa0] sm:$0xf] %v452
                  %v454 = vld [vmem:[%s370 + $0x108] sm:$0xf]
                  %455 = vst [vmem:[%s371 + $0xa4] sm:$0xf] %v454
                  %v456 = vld [vmem:[%s370 + $0x10c] sm:$0xf]
                  %457 = vst [vmem:[%s371 + $0xa8] sm:$0xf] %v456
                  %v458 = vld [vmem:[%s370 + $0x110] sm:$0xf]
                  %459 = vst [vmem:[%s371 + $0xac] sm:$0xf] %v458
                  %v460 = vld [vmem:[%s370 + $0x114] sm:$0xf]
                  %461 = vst [vmem:[%s371 + $0xb0] sm:$0xf] %v460
                  %v462 = vld [vmem:[%s370 + $0x118] sm:$0xf]
                  %463 = vst [vmem:[%s371 + $0xb4] sm:$0xf] %v462
                  %v464 = vld [vmem:[%s370 + $0x11c] sm:$0xf]
                  %465 = vst [vmem:[%s371 + $0xb8] sm:$0xf] %v464
                  %v466 = vld [vmem:[%s370 + $0x120] sm:$0xf]
                  %467 = vst [vmem:[%s371 + $0xbc] sm:$0xf] %v466
                  %v468 = vld [vmem:[%s370 + $0x124] sm:$0xf]
                  %469 = vst [vmem:[%s371 + $0xc0] sm:$0xf] %v468
                  %v470 = vld [vmem:[%s370 + $0x128] sm:$0xf]
                  %471 = vst [vmem:[%s371 + $0xc4] sm:$0xf] %v470
                  %v472 = vld [vmem:[%s370 + $0x190] sm:$0xf]
                  %473 = vst [vmem:[%s371 + $0xc8] sm:$0xf] %v472
                  %v474 = vld [vmem:[%s370 + $0x194] sm:$0xf]
                  %475 = vst [vmem:[%s371 + $0xcc] sm:$0xf] %v474
                  %v476 = vld [vmem:[%s370 + $0x198] sm:$0xf]
                  %477 = vst [vmem:[%s371 + $0xd0] sm:$0xf] %v476
                  %v478 = vld [vmem:[%s370 + $0x19c] sm:$0xf]
                  %479 = vst [vmem:[%s371 + $0xd4] sm:$0xf] %v478
                  %v480 = vld [vmem:[%s370 + $0x1a0] sm:$0xf]
                  %481 = vst [vmem:[%s371 + $0xd8] sm:$0xf] %v480
                  %v482 = vld [vmem:[%s370 + $0x1a4] sm:$0xf]
                  %483 = vst [vmem:[%s371 + $0xdc] sm:$0xf] %v482
                  %v484 = vld [vmem:[%s370 + $0x1a8] sm:$0xf]
                  %485 = vst [vmem:[%s371 + $0xe0] sm:$0xf] %v484
                  %v486 = vld [vmem:[%s370 + $0x1ac] sm:$0xf]
                  %487 = vst [vmem:[%s371 + $0xe4] sm:$0xf] %v486
                  %v488 = vld [vmem:[%s370 + $0x1b0] sm:$0xf]
                  %489 = vst [vmem:[%s371 + $0xe8] sm:$0xf] %v488
                  %v490 = vld [vmem:[%s370 + $0x1b4] sm:$0xf]
                  %491 = vst [vmem:[%s371 + $0xec] sm:$0xf] %v490
                  %v492 = vld [vmem:[%s370 + $0x1b8] sm:$0xf]
                  %493 = vst [vmem:[%s371 + $0xf0] sm:$0xf] %v492
                  %v494 = vld [vmem:[%s370 + $0x1bc] sm:$0xf]
                  %495 = vst [vmem:[%s371 + $0xf4] sm:$0xf] %v494
                  %v496 = vld [vmem:[%s370 + $0x1c0] sm:$0xf]
                  %497 = vst [vmem:[%s371 + $0xf8] sm:$0xf] %v496
                  %v498 = vld [vmem:[%s370 + $0x1c4] sm:$0xf]
                  %499 = vst [vmem:[%s371 + $0xfc] sm:$0xf] %v498
                  %v500 = vld [vmem:[%s370 + $0x1c8] sm:$0xf]
                  %501 = vst [vmem:[%s371 + $0x100] sm:$0xf] %v500
                  %v502 = vld [vmem:[%s370 + $0x1cc] sm:$0xf]
                  %503 = vst [vmem:[%s371 + $0x104] sm:$0xf] %v502
                  %v504 = vld [vmem:[%s370 + $0x1d0] sm:$0xf]
                  %505 = vst [vmem:[%s371 + $0x108] sm:$0xf] %v504
                  %v506 = vld [vmem:[%s370 + $0x1d4] sm:$0xf]
                  %507 = vst [vmem:[%s371 + $0x10c] sm:$0xf] %v506
                  %v508 = vld [vmem:[%s370 + $0x1d8] sm:$0xf]
                  %509 = vst [vmem:[%s371 + $0x110] sm:$0xf] %v508
                  %v510 = vld [vmem:[%s370 + $0x1dc] sm:$0xf]
                  %511 = vst [vmem:[%s371 + $0x114] sm:$0xf] %v510
                  %v512 = vld [vmem:[%s370 + $0x1e0] sm:$0xf]
                  %513 = vst [vmem:[%s371 + $0x118] sm:$0xf] %v512
                  %v514 = vld [vmem:[%s370 + $0x1e4] sm:$0xf]
                  %515 = vst [vmem:[%s371 + $0x11c] sm:$0xf] %v514
                  %v516 = vld [vmem:[%s370 + $0x1e8] sm:$0xf]
                  %517 = vst [vmem:[%s371 + $0x120] sm:$0xf] %v516
                  %v518 = vld [vmem:[%s370 + $0x1ec] sm:$0xf]
                  %519 = vst [vmem:[%s371 + $0x124] sm:$0xf] %v518
                  %v520 = vld [vmem:[%s370 + $0x1f0] sm:$0xf]
                  %521 = vst [vmem:[%s371 + $0x128] sm:$0xf] %v520
                  %v522 = vld [vmem:[%s370 + $0x258] sm:$0xf]
                  %523 = vst [vmem:[%s371 + $0x12c] sm:$0xf] %v522
                  %v524 = vld [vmem:[%s370 + $0x25c] sm:$0xf]
                  %525 = vst [vmem:[%s371 + $0x130] sm:$0xf] %v524
                  %v526 = vld [vmem:[%s370 + $0x260] sm:$0xf]
                  %527 = vst [vmem:[%s371 + $0x134] sm:$0xf] %v526
                  %v528 = vld [vmem:[%s370 + $0x264] sm:$0xf]
                  %529 = vst [vmem:[%s371 + $0x138] sm:$0xf] %v528
                  %v530 = vld [vmem:[%s370 + $0x268] sm:$0xf]
                  %531 = vst [vmem:[%s371 + $0x13c] sm:$0xf] %v530
                  %v532 = vld [vmem:[%s370 + $0x26c] sm:$0xf]
                  %533 = vst [vmem:[%s371 + $0x140] sm:$0xf] %v532
                  %v534 = vld [vmem:[%s370 + $0x270] sm:$0xf]
                  %535 = vst [vmem:[%s371 + $0x144] sm:$0xf] %v534
                  %v536 = vld [vmem:[%s370 + $0x274] sm:$0xf]
                  %537 = vst [vmem:[%s371 + $0x148] sm:$0xf] %v536
                  %v538 = vld [vmem:[%s370 + $0x278] sm:$0xf]
                  %539 = vst [vmem:[%s371 + $0x14c] sm:$0xf] %v538
                  %v540 = vld [vmem:[%s370 + $0x27c] sm:$0xf]
                  %541 = vst [vmem:[%s371 + $0x150] sm:$0xf] %v540
                  %v542 = vld [vmem:[%s370 + $0x280] sm:$0xf]
                  %543 = vst [vmem:[%s371 + $0x154] sm:$0xf] %v542
                  %v544 = vld [vmem:[%s370 + $0x284] sm:$0xf]
                  %545 = vst [vmem:[%s371 + $0x158] sm:$0xf] %v544
                  %v546 = vld [vmem:[%s370 + $0x288] sm:$0xf]
                  %547 = vst [vmem:[%s371 + $0x15c] sm:$0xf] %v546
                  %v548 = vld [vmem:[%s370 + $0x28c] sm:$0xf]
                  %549 = vst [vmem:[%s371 + $0x160] sm:$0xf] %v548
                  %v550 = vld [vmem:[%s370 + $0x290] sm:$0xf]
                  %551 = vst [vmem:[%s371 + $0x164] sm:$0xf] %v550
                  %v552 = vld [vmem:[%s370 + $0x294] sm:$0xf]
                  %553 = vst [vmem:[%s371 + $0x168] sm:$0xf] %v552
                  %v554 = vld [vmem:[%s370 + $0x298] sm:$0xf]
                  %555 = vst [vmem:[%s371 + $0x16c] sm:$0xf] %v554
                  %v556 = vld [vmem:[%s370 + $0x29c] sm:$0xf]
                  %557 = vst [vmem:[%s371 + $0x170] sm:$0xf] %v556
                  %v558 = vld [vmem:[%s370 + $0x2a0] sm:$0xf]
                  %559 = vst [vmem:[%s371 + $0x174] sm:$0xf] %v558
                  %v560 = vld [vmem:[%s370 + $0x2a4] sm:$0xf]
                  %561 = vst [vmem:[%s371 + $0x178] sm:$0xf] %v560
                  %v562 = vld [vmem:[%s370 + $0x2a8] sm:$0xf]
                  %563 = vst [vmem:[%s371 + $0x17c] sm:$0xf] %v562
                  %v564 = vld [vmem:[%s370 + $0x2ac] sm:$0xf]
                  %565 = vst [vmem:[%s371 + $0x180] sm:$0xf] %v564
                  %v566 = vld [vmem:[%s370 + $0x2b0] sm:$0xf]
                  %567 = vst [vmem:[%s371 + $0x184] sm:$0xf] %v566
                  %v568 = vld [vmem:[%s370 + $0x2b4] sm:$0xf]
                  %569 = vst [vmem:[%s371 + $0x188] sm:$0xf] %v568
                  %v570 = vld [vmem:[%s370 + $0x2b8] sm:$0xf]
                  %571 = vst [vmem:[%s371 + $0x18c] sm:$0xf] %v570
                $region63: #{basic_conv_net.3} parent=50 // loop_footer
                  %s369 = sadd.s32 1, %s365
                $region64: #{basic_conv_net.3} parent=50 // loop_footer_branch
                  %364 = sbr.rel target = $region60
                $region65: #{basic_conv_net.3} parent=50 // loop_exit
                  _
              $region51: #{basic_conv_net.3} parent=35 // pred_fallthru
                _
            $region36: #{basic_conv_net.3} parent=31 // pred_fallthru
              _
            // Predicated region
            $region37: #{basic_conv_net.3} parent=31 // pred_check
              _
            $region38: #{basic_conv_net.3} parent=31 // pred_check_branch
              %143 = sbr.rel (0) target = $region40
            $region39: #{basic_conv_net.3} parent=31 // pred_region
              loop: start=0, step=1, limit=1
              $region41: #{basic_conv_net.3} parent=39 // loop_pre_header
                _
              $region42: #{basic_conv_net.3} parent=39 // loop_header
                %s146 = sphi 0, %s150
                %p147 = scmp.ge.s32.totalorder %s146, 1
                %s151 = sphi %s137, %s137
                %s152 = sphi %s134, %s134
              $region43: #{basic_conv_net.3} parent=39 // loop_header_branch
                %149 = sbr.rel (%p147) target = $region47
              $region44: #{basic_conv_net.3} parent=39 // loop_body
                %v153 = vld [vmem:[%s151] sm:$0xf]
                %154 = vst [vmem:[%s152] sm:$0xf] %v153
                %v155 = vld [vmem:[%s151 + $0x4] sm:$0xf]
                %156 = vst [vmem:[%s152 + $0x4] sm:$0xf] %v155
                %v157 = vld [vmem:[%s151 + $0x8] sm:$0xf]
                %158 = vst [vmem:[%s152 + $0x8] sm:$0xf] %v157
                %v159 = vld [vmem:[%s151 + $0xc] sm:$0xf]
                %160 = vst [vmem:[%s152 + $0xc] sm:$0xf] %v159
                %v161 = vld [vmem:[%s151 + $0x10] sm:$0xf]
                %162 = vst [vmem:[%s152 + $0x10] sm:$0xf] %v161
                %v163 = vld [vmem:[%s151 + $0x14] sm:$0xf]
                %164 = vst [vmem:[%s152 + $0x14] sm:$0xf] %v163
                %v165 = vld [vmem:[%s151 + $0x18] sm:$0xf]
                %166 = vst [vmem:[%s152 + $0x18] sm:$0xf] %v165
                %v167 = vld [vmem:[%s151 + $0x1c] sm:$0xf]
                %168 = vst [vmem:[%s152 + $0x1c] sm:$0xf] %v167
                %v169 = vld [vmem:[%s151 + $0x20] sm:$0xf]
                %170 = vst [vmem:[%s152 + $0x20] sm:$0xf] %v169
                %v171 = vld [vmem:[%s151 + $0x24] sm:$0xf]
                %172 = vst [vmem:[%s152 + $0x24] sm:$0xf] %v171
                %v173 = vld [vmem:[%s151 + $0x28] sm:$0xf]
                %174 = vst [vmem:[%s152 + $0x28] sm:$0xf] %v173
                %v175 = vld [vmem:[%s151 + $0x2c] sm:$0xf]
                %176 = vst [vmem:[%s152 + $0x2c] sm:$0xf] %v175
                %v177 = vld [vmem:[%s151 + $0x30] sm:$0xf]
                %178 = vst [vmem:[%s152 + $0x30] sm:$0xf] %v177
                %v179 = vld [vmem:[%s151 + $0x34] sm:$0xf]
                %180 = vst [vmem:[%s152 + $0x34] sm:$0xf] %v179
                %v181 = vld [vmem:[%s151 + $0x38] sm:$0xf]
                %182 = vst [vmem:[%s152 + $0x38] sm:$0xf] %v181
                %v183 = vld [vmem:[%s151 + $0x3c] sm:$0xf]
                %184 = vst [vmem:[%s152 + $0x3c] sm:$0xf] %v183
                %v185 = vld [vmem:[%s151 + $0x40] sm:$0xf]
                %186 = vst [vmem:[%s152 + $0x40] sm:$0xf] %v185
                %v187 = vld [vmem:[%s151 + $0x44] sm:$0xf]
                %188 = vst [vmem:[%s152 + $0x44] sm:$0xf] %v187
                %v189 = vld [vmem:[%s151 + $0x48] sm:$0xf]
                %190 = vst [vmem:[%s152 + $0x48] sm:$0xf] %v189
                %v191 = vld [vmem:[%s151 + $0x4c] sm:$0xf]
                %192 = vst [vmem:[%s152 + $0x4c] sm:$0xf] %v191
                %v193 = vld [vmem:[%s151 + $0x50] sm:$0xf]
                %194 = vst [vmem:[%s152 + $0x50] sm:$0xf] %v193
                %v195 = vld [vmem:[%s151 + $0x54] sm:$0xf]
                %196 = vst [vmem:[%s152 + $0x54] sm:$0xf] %v195
                %v197 = vld [vmem:[%s151 + $0x58] sm:$0xf]
                %198 = vst [vmem:[%s152 + $0x58] sm:$0xf] %v197
                %v199 = vld [vmem:[%s151 + $0x5c] sm:$0xf]
                %200 = vst [vmem:[%s152 + $0x5c] sm:$0xf] %v199
                %v201 = vld [vmem:[%s151 + $0x60] sm:$0xf]
                %202 = vst [vmem:[%s152 + $0x60] sm:$0xf] %v201
                %v203 = vld [vmem:[%s151 + $0xc8] sm:$0xf]
                %204 = vst [vmem:[%s152 + $0x64] sm:$0xf] %v203
                %v205 = vld [vmem:[%s151 + $0xcc] sm:$0xf]
                %206 = vst [vmem:[%s152 + $0x68] sm:$0xf] %v205
                %v207 = vld [vmem:[%s151 + $0xd0] sm:$0xf]
                %208 = vst [vmem:[%s152 + $0x6c] sm:$0xf] %v207
                %v209 = vld [vmem:[%s151 + $0xd4] sm:$0xf]
                %210 = vst [vmem:[%s152 + $0x70] sm:$0xf] %v209
                %v211 = vld [vmem:[%s151 + $0xd8] sm:$0xf]
                %212 = vst [vmem:[%s152 + $0x74] sm:$0xf] %v211
                %v213 = vld [vmem:[%s151 + $0xdc] sm:$0xf]
                %214 = vst [vmem:[%s152 + $0x78] sm:$0xf] %v213
                %v215 = vld [vmem:[%s151 + $0xe0] sm:$0xf]
                %216 = vst [vmem:[%s152 + $0x7c] sm:$0xf] %v215
                %v217 = vld [vmem:[%s151 + $0xe4] sm:$0xf]
                %218 = vst [vmem:[%s152 + $0x80] sm:$0xf] %v217
                %v219 = vld [vmem:[%s151 + $0xe8] sm:$0xf]
                %220 = vst [vmem:[%s152 + $0x84] sm:$0xf] %v219
                %v221 = vld [vmem:[%s151 + $0xec] sm:$0xf]
                %222 = vst [vmem:[%s152 + $0x88] sm:$0xf] %v221
                %v223 = vld [vmem:[%s151 + $0xf0] sm:$0xf]
                %224 = vst [vmem:[%s152 + $0x8c] sm:$0xf] %v223
                %v225 = vld [vmem:[%s151 + $0xf4] sm:$0xf]
                %226 = vst [vmem:[%s152 + $0x90] sm:$0xf] %v225
                %v227 = vld [vmem:[%s151 + $0xf8] sm:$0xf]
                %228 = vst [vmem:[%s152 + $0x94] sm:$0xf] %v227
                %v229 = vld [vmem:[%s151 + $0xfc] sm:$0xf]
                %230 = vst [vmem:[%s152 + $0x98] sm:$0xf] %v229
                %v231 = vld [vmem:[%s151 + $0x100] sm:$0xf]
                %232 = vst [vmem:[%s152 + $0x9c] sm:$0xf] %v231
                %v233 = vld [vmem:[%s151 + $0x104] sm:$0xf]
                %234 = vst [vmem:[%s152 + $0xa0] sm:$0xf] %v233
                %v235 = vld [vmem:[%s151 + $0x108] sm:$0xf]
                %236 = vst [vmem:[%s152 + $0xa4] sm:$0xf] %v235
                %v237 = vld [vmem:[%s151 + $0x10c] sm:$0xf]
                %238 = vst [vmem:[%s152 + $0xa8] sm:$0xf] %v237
                %v239 = vld [vmem:[%s151 + $0x110] sm:$0xf]
                %240 = vst [vmem:[%s152 + $0xac] sm:$0xf] %v239
                %v241 = vld [vmem:[%s151 + $0x114] sm:$0xf]
                %242 = vst [vmem:[%s152 + $0xb0] sm:$0xf] %v241
                %v243 = vld [vmem:[%s151 + $0x118] sm:$0xf]
                %244 = vst [vmem:[%s152 + $0xb4] sm:$0xf] %v243
                %v245 = vld [vmem:[%s151 + $0x11c] sm:$0xf]
                %246 = vst [vmem:[%s152 + $0xb8] sm:$0xf] %v245
                %v247 = vld [vmem:[%s151 + $0x120] sm:$0xf]
                %248 = vst [vmem:[%s152 + $0xbc] sm:$0xf] %v247
                %v249 = vld [vmem:[%s151 + $0x124] sm:$0xf]
                %250 = vst [vmem:[%s152 + $0xc0] sm:$0xf] %v249
                %v251 = vld [vmem:[%s151 + $0x128] sm:$0xf]
                %252 = vst [vmem:[%s152 + $0xc4] sm:$0xf] %v251
                %v253 = vld [vmem:[%s151 + $0x190] sm:$0xf]
                %254 = vst [vmem:[%s152 + $0xc8] sm:$0xf] %v253
                %v255 = vld [vmem:[%s151 + $0x194] sm:$0xf]
                %256 = vst [vmem:[%s152 + $0xcc] sm:$0xf] %v255
                %v257 = vld [vmem:[%s151 + $0x198] sm:$0xf]
                %258 = vst [vmem:[%s152 + $0xd0] sm:$0xf] %v257
                %v259 = vld [vmem:[%s151 + $0x19c] sm:$0xf]
                %260 = vst [vmem:[%s152 + $0xd4] sm:$0xf] %v259
                %v261 = vld [vmem:[%s151 + $0x1a0] sm:$0xf]
                %262 = vst [vmem:[%s152 + $0xd8] sm:$0xf] %v261
                %v263 = vld [vmem:[%s151 + $0x1a4] sm:$0xf]
                %264 = vst [vmem:[%s152 + $0xdc] sm:$0xf] %v263
                %v265 = vld [vmem:[%s151 + $0x1a8] sm:$0xf]
                %266 = vst [vmem:[%s152 + $0xe0] sm:$0xf] %v265
                %v267 = vld [vmem:[%s151 + $0x1ac] sm:$0xf]
                %268 = vst [vmem:[%s152 + $0xe4] sm:$0xf] %v267
                %v269 = vld [vmem:[%s151 + $0x1b0] sm:$0xf]
                %270 = vst [vmem:[%s152 + $0xe8] sm:$0xf] %v269
                %v271 = vld [vmem:[%s151 + $0x1b4] sm:$0xf]
                %272 = vst [vmem:[%s152 + $0xec] sm:$0xf] %v271
                %v273 = vld [vmem:[%s151 + $0x1b8] sm:$0xf]
                %274 = vst [vmem:[%s152 + $0xf0] sm:$0xf] %v273
                %v275 = vld [vmem:[%s151 + $0x1bc] sm:$0xf]
                %276 = vst [vmem:[%s152 + $0xf4] sm:$0xf] %v275
                %v277 = vld [vmem:[%s151 + $0x1c0] sm:$0xf]
                %278 = vst [vmem:[%s152 + $0xf8] sm:$0xf] %v277
                %v279 = vld [vmem:[%s151 + $0x1c4] sm:$0xf]
                %280 = vst [vmem:[%s152 + $0xfc] sm:$0xf] %v279
                %v281 = vld [vmem:[%s151 + $0x1c8] sm:$0xf]
                %282 = vst [vmem:[%s152 + $0x100] sm:$0xf] %v281
                %v283 = vld [vmem:[%s151 + $0x1cc] sm:$0xf]
                %284 = vst [vmem:[%s152 + $0x104] sm:$0xf] %v283
                %v285 = vld [vmem:[%s151 + $0x1d0] sm:$0xf]
                %286 = vst [vmem:[%s152 + $0x108] sm:$0xf] %v285
                %v287 = vld [vmem:[%s151 + $0x1d4] sm:$0xf]
                %288 = vst [vmem:[%s152 + $0x10c] sm:$0xf] %v287
                %v289 = vld [vmem:[%s151 + $0x1d8] sm:$0xf]
                %290 = vst [vmem:[%s152 + $0x110] sm:$0xf] %v289
                %v291 = vld [vmem:[%s151 + $0x1dc] sm:$0xf]
                %292 = vst [vmem:[%s152 + $0x114] sm:$0xf] %v291
                %v293 = vld [vmem:[%s151 + $0x1e0] sm:$0xf]
                %294 = vst [vmem:[%s152 + $0x118] sm:$0xf] %v293
                %v295 = vld [vmem:[%s151 + $0x1e4] sm:$0xf]
                %296 = vst [vmem:[%s152 + $0x11c] sm:$0xf] %v295
                %v297 = vld [vmem:[%s151 + $0x1e8] sm:$0xf]
                %298 = vst [vmem:[%s152 + $0x120] sm:$0xf] %v297
                %v299 = vld [vmem:[%s151 + $0x1ec] sm:$0xf]
                %300 = vst [vmem:[%s152 + $0x124] sm:$0xf] %v299
                %v301 = vld [vmem:[%s151 + $0x1f0] sm:$0xf]
                %302 = vst [vmem:[%s152 + $0x128] sm:$0xf] %v301
                %v303 = vld [vmem:[%s151 + $0x258] sm:$0xf]
                %304 = vst [vmem:[%s152 + $0x12c] sm:$0xf] %v303
                %v305 = vld [vmem:[%s151 + $0x25c] sm:$0xf]
                %306 = vst [vmem:[%s152 + $0x130] sm:$0xf] %v305
                %v307 = vld [vmem:[%s151 + $0x260] sm:$0xf]
                %308 = vst [vmem:[%s152 + $0x134] sm:$0xf] %v307
                %v309 = vld [vmem:[%s151 + $0x264] sm:$0xf]
                %310 = vst [vmem:[%s152 + $0x138] sm:$0xf] %v309
                %v311 = vld [vmem:[%s151 + $0x268] sm:$0xf]
                %312 = vst [vmem:[%s152 + $0x13c] sm:$0xf] %v311
                %v313 = vld [vmem:[%s151 + $0x26c] sm:$0xf]
                %314 = vst [vmem:[%s152 + $0x140] sm:$0xf] %v313
                %v315 = vld [vmem:[%s151 + $0x270] sm:$0xf]
                %316 = vst [vmem:[%s152 + $0x144] sm:$0xf] %v315
                %v317 = vld [vmem:[%s151 + $0x274] sm:$0xf]
                %318 = vst [vmem:[%s152 + $0x148] sm:$0xf] %v317
                %v319 = vld [vmem:[%s151 + $0x278] sm:$0xf]
                %320 = vst [vmem:[%s152 + $0x14c] sm:$0xf] %v319
                %v321 = vld [vmem:[%s151 + $0x27c] sm:$0xf]
                %322 = vst [vmem:[%s152 + $0x150] sm:$0xf] %v321
                %v323 = vld [vmem:[%s151 + $0x280] sm:$0xf]
                %324 = vst [vmem:[%s152 + $0x154] sm:$0xf] %v323
                %v325 = vld [vmem:[%s151 + $0x284] sm:$0xf]
                %326 = vst [vmem:[%s152 + $0x158] sm:$0xf] %v325
                %v327 = vld [vmem:[%s151 + $0x288] sm:$0xf]
                %328 = vst [vmem:[%s152 + $0x15c] sm:$0xf] %v327
                %v329 = vld [vmem:[%s151 + $0x28c] sm:$0xf]
                %330 = vst [vmem:[%s152 + $0x160] sm:$0xf] %v329
                %v331 = vld [vmem:[%s151 + $0x290] sm:$0xf]
                %332 = vst [vmem:[%s152 + $0x164] sm:$0xf] %v331
                %v333 = vld [vmem:[%s151 + $0x294] sm:$0xf]
                %334 = vst [vmem:[%s152 + $0x168] sm:$0xf] %v333
                %v335 = vld [vmem:[%s151 + $0x298] sm:$0xf]
                %336 = vst [vmem:[%s152 + $0x16c] sm:$0xf] %v335
                %v337 = vld [vmem:[%s151 + $0x29c] sm:$0xf]
                %338 = vst [vmem:[%s152 + $0x170] sm:$0xf] %v337
                %v339 = vld [vmem:[%s151 + $0x2a0] sm:$0xf]
                %340 = vst [vmem:[%s152 + $0x174] sm:$0xf] %v339
                %v341 = vld [vmem:[%s151 + $0x2a4] sm:$0xf]
                %342 = vst [vmem:[%s152 + $0x178] sm:$0xf] %v341
                %v343 = vld [vmem:[%s151 + $0x2a8] sm:$0xf]
                %344 = vst [vmem:[%s152 + $0x17c] sm:$0xf] %v343
                %v345 = vld [vmem:[%s151 + $0x2ac] sm:$0xf]
                %346 = vst [vmem:[%s152 + $0x180] sm:$0xf] %v345
                %v347 = vld [vmem:[%s151 + $0x2b0] sm:$0xf]
                %348 = vst [vmem:[%s152 + $0x184] sm:$0xf] %v347
                %v349 = vld [vmem:[%s151 + $0x2b4] sm:$0xf]
                %350 = vst [vmem:[%s152 + $0x188] sm:$0xf] %v349
                %v351 = vld [vmem:[%s151 + $0x2b8] sm:$0xf]
                %352 = vst [vmem:[%s152 + $0x18c] sm:$0xf] %v351
              $region45: #{basic_conv_net.3} parent=39 // loop_footer
                %s150 = sadd.s32 1, %s146
              $region46: #{basic_conv_net.3} parent=39 // loop_footer_branch
                %145 = sbr.rel target = $region42
              $region47: #{basic_conv_net.3} parent=39 // loop_exit
                _
            $region40: #{basic_conv_net.3} parent=31 // pred_fallthru
              _
          $region32: #{basic_conv_net.3} parent=27 // pred_fallthru
            _
          %572 = vnop
        $region28: #{basic_conv_net.3} parent=23 // pred_fallthru
          _
      $region24: #{basic_conv_net.3} parent=5 // pred_fallthru
        _
      %p573 = scmp.le.s32.totalorder 1, %s9
      %p574 = scmp.lt.s32.totalorder %s9, 3
      %p575 = pnand %p573, %p574
      %p576 = pneg %p575
      // Predicated region
      $region66: #{basic_conv_net.3} parent=5 // pred_check
        _
      $region67: #{basic_conv_net.3} parent=5 // pred_check_branch
        %578 = sbr.rel (%p575) target = $region69
      $region68: #{basic_conv_net.3} parent=5 // pred_region
        %s579 = ssub.s32 %s9, 1
        %s580 = sand.u32 %s22, 1
        %s581 = sand.u32 %s22, 1
        %s582 = smul.addr %s581, 400
        %s583 = scalar_lea.vmem [#allocation2], %s582
        // Predicated region
        $region70: #{basic_conv_net.3} parent=68 // pred_check
          %p584 = pneg %p35
        $region71: #{basic_conv_net.3} parent=68 // pred_check_branch
          %586 = sbr.rel (%p584) target = $region73
        $region72: #{basic_conv_net.3} parent=68 // pred_region
          _
        $region73: #{basic_conv_net.3} parent=68 // pred_fallthru
          _
        %s587 = sand.u32 %s22, 1
        %s588 = sand.u32 %s22, 1
        %s589 = smul.addr %s588, 400
        %s590 = scalar_lea.vmem [#allocation2], %s589
        %p591 = pneg %p35
        %p592 = pneg %p32
        %p593 = pneg %p56
        %p594 = pneg %p53
        %p595 = pneg %p77
        %p596 = pneg %p74
        %p597 = pneg %p103
        %p598 = pneg %p100
        %s599 = smul.u32 25, %s14
        %p600 = scmp.lt.s32.totalorder %s599, 49
        %s601 = scalar_select %p600, %s599, 49
        %s602 = smul.addr %s601, 4
        %s603 = scalar_lea.vmem %s3, %s602
        %s604 = smul.u32 25, %s14
        %s605 = smul.u32 25, %s14
        %p606 = scmp.lt.s32.totalorder %s605, 49
        %s607 = scalar_select %p606, %s605, 49
        %s608 = smul.addr %s607, 4
        %s609 = scalar_lea.vmem %s3, %s608
        %s610 = smul.u32 25, %s14
        %v612 = vld [vmem:[%s583] sm:$0xf]
        %v613 = vld [vmem:[%s583 + $0x4] sm:$0xf]
        %v614 = vld [vmem:[%s583 + $0x8] sm:$0xf]
        %v615 = vld [vmem:[%s583 + $0xc] sm:$0xf]
        %v616 = vld [vmem:[%s583 + $0x10] sm:$0xf]
        %v617 = vld [vmem:[%s583 + $0x14] sm:$0xf]
        %v618 = vld [vmem:[%s583 + $0x18] sm:$0xf]
        %v619 = vld [vmem:[%s583 + $0x1c] sm:$0xf]
        %v620 = vld [vmem:[%s583 + $0x20] sm:$0xf]
        %v621 = vld [vmem:[%s583 + $0x24] sm:$0xf]
        %v622 = vld [vmem:[%s583 + $0x28] sm:$0xf]
        %v623 = vld [vmem:[%s583 + $0x2c] sm:$0xf]
        %v624 = vld [vmem:[%s583 + $0x30] sm:$0xf]
        %v625 = vld [vmem:[%s583 + $0x34] sm:$0xf]
        %v626 = vld [vmem:[%s583 + $0x38] sm:$0xf]
        %v627 = vld [vmem:[%s583 + $0x3c] sm:$0xf]
        %v628 = vld [vmem:[%s583 + $0x40] sm:$0xf]
        %v629 = vld [vmem:[%s583 + $0x44] sm:$0xf]
        %v630 = vld [vmem:[%s583 + $0x48] sm:$0xf]
        %v631 = vld [vmem:[%s583 + $0x4c] sm:$0xf]
        %v632 = vld [vmem:[%s583 + $0x50] sm:$0xf]
        %v633 = vld [vmem:[%s583 + $0x54] sm:$0xf]
        %v634 = vld [vmem:[%s583 + $0x58] sm:$0xf]
        %v635 = vld [vmem:[%s583 + $0x5c] sm:$0xf]
        %v636 = vld [vmem:[%s583 + $0x60] sm:$0xf]
        %v637 = vld [vmem:[%s1] sm:$0xf]
        %v638 = vld [vmem:[%s1 + $0x4] sm:$0xf]
        %v639 = vld [vmem:[%s1 + $0x8] sm:$0xf]
        %v640 = vld [vmem:[%s1 + $0xc] sm:$0xf]
        %v641 = vld [vmem:[%s1 + $0x10] sm:$0xf]
        %v642 = vld [vmem:[%s1 + $0x14] sm:$0xf]
        %v643 = vld [vmem:[%s1 + $0x18] sm:$0xf]
        %v644 = vld [vmem:[%s1 + $0x1c] sm:$0xf]
        %v645 = vld [vmem:[%s1 + $0x20] sm:$0xf]
        %v646 = vld [vmem:[%s1 + $0x24] sm:$0xf]
        %v672 = vunpack.c.l.b16 %v612
        %v673 = vunpack.c.l.b16 %v613
        %v674 = vunpack.c.l.b16 %v614
        %v675 = vunpack.c.l.b16 %v615
        %v676 = vunpack.c.l.b16 %v616
        %v677 = vunpack.c.l.b16 %v617
        %v678 = vunpack.c.l.b16 %v618
        %v679 = vunpack.c.l.b16 %v619
        %v680 = vunpack.c.l.b16 %v620
        %v681 = vunpack.c.l.b16 %v621
        %v682 = vunpack.c.l.b16 %v622
        %v683 = vunpack.c.l.b16 %v623
        %v684 = vunpack.c.l.b16 %v624
        %v685 = vunpack.c.l.b16 %v625
        %v686 = vunpack.c.l.b16 %v626
        %v687 = vunpack.c.l.b16 %v627
        %v688 = vunpack.c.l.b16 %v628
        %v689 = vunpack.c.l.b16 %v629
        %v690 = vunpack.c.l.b16 %v630
        %v691 = vunpack.c.l.b16 %v631
        %v692 = vunpack.c.l.b16 %v632
        %v693 = vunpack.c.l.b16 %v633
        %v694 = vunpack.c.l.b16 %v634
        %v695 = vunpack.c.l.b16 %v635
        %v696 = vunpack.c.l.b16 %v636
        %v697 = vpack.c.b16 %v673, %v672
        %v698 = vpack.c.b16 %v675, %v674
        %v699 = vpack.c.b16 %v677, %v676
        %v700 = vpack.c.b16 %v679, %v678
        %v701 = vpack.c.b16 %v681, %v680
        %v702 = vpack.c.b16 %v683, %v682
        %v703 = vpack.c.b16 %v685, %v684
        %v704 = vpack.c.b16 %v687, %v686
        %v705 = vpack.c.b16 %v689, %v688
        %v706 = vpack.c.b16 %v691, %v690
        %v707 = vpack.c.b16 %v693, %v692
        %v708 = vpack.c.b16 %v695, %v694
        %v709 = vpack.c.b16 %v696, %v696
        %v720 = vunpack.c.l.b16 %v637
        %v721 = vunpack.c.l.b16 %v638
        %v722 = vunpack.c.l.b16 %v639
        %v723 = vunpack.c.l.b16 %v640
        %v724 = vunpack.c.l.b16 %v641
        %v725 = vunpack.c.l.b16 %v642
        %v726 = vunpack.c.l.b16 %v643
        %v727 = vunpack.c.l.b16 %v644
        %v728 = vunpack.c.l.b16 %v645
        %v729 = vunpack.c.l.b16 %v646
        %v730 = vpack.c.b16 %v721, %v720
        %v731 = vpack.c.b16 %v723, %v722
        %v732 = vpack.c.b16 %v725, %v724
        %v733 = vpack.c.b16 %v727, %v726
        %v734 = vpack.c.b16 %v729, %v728
        %vm740 = vcmask 654336
        %v742 = vsel %vm740, %v697, 0
        %v745 = vsel %vm740, %v698, 0
        %v748 = vsel %vm740, %v699, 0
        %v751 = vsel %vm740, %v700, 0
        %v754 = vsel %vm740, %v701, 0
        %v757 = vsel %vm740, %v702, 0
        %v760 = vsel %vm740, %v703, 0
        %v763 = vsel %vm740, %v704, 0
        %v766 = vsel %vm740, %v705, 0
        %v769 = vsel %vm740, %v706, 0
        %v772 = vsel %vm740, %v707, 0
        %v775 = vsel %vm740, %v708, 0
        %v778 = vsel %vm740, %v709, 0
        %780 = vmatprep.subr.bf16.mxu0 0
        %781 = vmatpush1.bf16.msra.mxu0 %v730
        %782 = vmatprep.subr.bf16.mxu0 0
        %783 = vmatpush1.bf16.msra.mxu0 %v731
        %784 = vmatprep.subr.bf16.mxu0 0
        %785 = vmatpush1.bf16.msra.mxu0 %v732
        %786 = vmatprep.subr.bf16.mxu0 0
        %787 = vmatpush1.bf16.msra.mxu0 %v733
        %788 = vmatprep.subr.bf16.mxu0 0
        %789 = vmatpush1.bf16.msra.mxu0 %v734
        %790 = vmatprep.subr.bf16.mxu0 0
        %791 = vmatpush1.bf16.msra.mxu0 0
        %792 = vmatprep.subr.bf16.mxu0 0
        %793 = vmatpush1.bf16.msra.mxu0 0
        %794 = vmatprep.subr.bf16.mxu0 0
        %795 = vmatpush1.bf16.msra.mxu0 0
        %796 = vmatprep.subr.bf16.mxu0 0
        %797 = vmatpush1.bf16.msra.mxu0 0
        %798 = vmatprep.subr.bf16.mxu0 0
        %799 = vmatpush1.bf16.msra.mxu0 0
        %800 = vmatprep.subr.bf16.mxu0 0
        %801 = vmatpush1.bf16.msra.mxu0 0
        %802 = vmatprep.subr.bf16.mxu0 0
        %803 = vmatpush1.bf16.msra.mxu0 0
        %804 = vmatprep.subr.bf16.mxu0 0
        %805 = vmatpush1.bf16.msra.mxu0 0
        %806 = vmatprep.subr.bf16.mxu0 0
        %807 = vmatpush1.bf16.msra.mxu0 0
        %808 = vmatprep.subr.bf16.mxu0 0
        %809 = vmatpush1.bf16.msra.mxu0 0
        %810 = vmatprep.subr.bf16.mxu0 0
        %811 = vmatpush1.bf16.msra.mxu0 0
        %812 = vmatprep.mubr.bf16.mxu0 0
        %813 = vmatmul.mubr.bf16.gmra.mrb[0].mxu0 %v742
        %v814 = vpop.f32.mrb[0].mxu0
        %v815 = vadd.f32 0.0, %v814
        %v816 = vpop.f32.mrb[0].mxu0
        %v817 = vpop.f32.mrb[0].mxu0
        %v818 = vadd.f32 0.0, %v817
        %v819 = vpop.f32.mrb[0].mxu0
        %820 = vmatprep.mubr.bf16.mxu0 0
        %821 = vmatmul.mubr.bf16.gmra.mrb[0].mxu0 %v745
        %v822 = vpop.f32.mrb[0].mxu0
        %v823 = vadd.f32 0.0, %v822
        %v824 = vpop.f32.mrb[0].mxu0
        %v825 = vpop.f32.mrb[0].mxu0
        %v826 = vadd.f32 0.0, %v825
        %v827 = vpop.f32.mrb[0].mxu0
        %828 = vmatprep.mubr.bf16.mxu0 0
        %829 = vmatmul.mubr.bf16.gmra.mrb[0].mxu0 %v748
        %v830 = vpop.f32.mrb[0].mxu0
        %v831 = vadd.f32 0.0, %v830
        %v832 = vpop.f32.mrb[0].mxu0
        %v833 = vpop.f32.mrb[0].mxu0
        %v834 = vadd.f32 0.0, %v833
        %v835 = vpop.f32.mrb[0].mxu0
        %836 = vmatprep.mubr.bf16.mxu0 0
        %837 = vmatmul.mubr.bf16.gmra.mrb[0].mxu0 %v751
        %v838 = vpop.f32.mrb[0].mxu0
        %v839 = vadd.f32 0.0, %v838
        %v840 = vpop.f32.mrb[0].mxu0
        %v841 = vpop.f32.mrb[0].mxu0
        %v842 = vadd.f32 0.0, %v841
        %v843 = vpop.f32.mrb[0].mxu0
        %844 = vmatprep.mubr.bf16.mxu0 0
        %845 = vmatmul.mubr.bf16.gmra.mrb[0].mxu0 %v754
        %v846 = vpop.f32.mrb[0].mxu0
        %v847 = vadd.f32 0.0, %v846
        %v848 = vpop.f32.mrb[0].mxu0
        %v849 = vpop.f32.mrb[0].mxu0
        %v850 = vadd.f32 0.0, %v849
        %v851 = vpop.f32.mrb[0].mxu0
        %852 = vmatprep.mubr.bf16.mxu0 0
        %853 = vmatmul.mubr.bf16.gmra.mrb[0].mxu0 %v757
        %v854 = vpop.f32.mrb[0].mxu0
        %v855 = vadd.f32 0.0, %v854
        %v856 = vpop.f32.mrb[0].mxu0
        %v857 = vpop.f32.mrb[0].mxu0
        %v858 = vadd.f32 0.0, %v857
        %v859 = vpop.f32.mrb[0].mxu0
        %860 = vmatprep.mubr.bf16.mxu0 0
        %861 = vmatmul.mubr.bf16.gmra.mrb[0].mxu0 %v760
        %v862 = vpop.f32.mrb[0].mxu0
        %v863 = vadd.f32 0.0, %v862
        %v864 = vpop.f32.mrb[0].mxu0
        %v865 = vpop.f32.mrb[0].mxu0
        %v866 = vadd.f32 0.0, %v865
        %v867 = vpop.f32.mrb[0].mxu0
        %868 = vmatprep.mubr.bf16.mxu0 0
        %869 = vmatmul.mubr.bf16.gmra.mrb[0].mxu0 %v763
        %v870 = vpop.f32.mrb[0].mxu0
        %v871 = vadd.f32 0.0, %v870
        %v872 = vpop.f32.mrb[0].mxu0
        %v873 = vpop.f32.mrb[0].mxu0
        %v874 = vadd.f32 0.0, %v873
        %v875 = vpop.f32.mrb[0].mxu0
        %876 = vmatprep.mubr.bf16.mxu0 0
        %877 = vmatmul.mubr.bf16.gmra.mrb[0].mxu0 %v766
        %v878 = vpop.f32.mrb[0].mxu0
        %v879 = vadd.f32 0.0, %v878
        %v880 = vpop.f32.mrb[0].mxu0
        %v881 = vpop.f32.mrb[0].mxu0
        %v882 = vadd.f32 0.0, %v881
        %v883 = vpop.f32.mrb[0].mxu0
        %884 = vmatprep.mubr.bf16.mxu0 0
        %885 = vmatmul.mubr.bf16.gmra.mrb[0].mxu0 %v769
        %v886 = vpop.f32.mrb[0].mxu0
        %v887 = vadd.f32 0.0, %v886
        %v888 = vpop.f32.mrb[0].mxu0
        %v889 = vpop.f32.mrb[0].mxu0
        %v890 = vadd.f32 0.0, %v889
        %v891 = vpop.f32.mrb[0].mxu0
        %892 = vmatprep.mubr.bf16.mxu0 0
        %893 = vmatmul.mubr.bf16.gmra.mrb[0].mxu0 %v772
        %v894 = vpop.f32.mrb[0].mxu0
        %v895 = vadd.f32 0.0, %v894
        %v896 = vpop.f32.mrb[0].mxu0
        %v897 = vpop.f32.mrb[0].mxu0
        %v898 = vadd.f32 0.0, %v897
        %v899 = vpop.f32.mrb[0].mxu0
        %900 = vmatprep.mubr.bf16.mxu0 0
        %901 = vmatmul.mubr.bf16.gmra.mrb[0].mxu0 %v775
        %v902 = vpop.f32.mrb[0].mxu0
        %v903 = vadd.f32 0.0, %v902
        %v904 = vpop.f32.mrb[0].mxu0
        %v905 = vpop.f32.mrb[0].mxu0
        %v906 = vadd.f32 0.0, %v905
        %v907 = vpop.f32.mrb[0].mxu0
        %908 = vmatprep.mubr.bf16.mxu0 0
        %909 = vmatmul.mubr.bf16.gmra.mrb[0].mxu0 %v778
        %v910 = vpop.f32.mrb[0].mxu0
        %v911 = vadd.f32 0.0, %v910
        %v912 = vpop.f32.mrb[0].mxu0
        %v913 = vpop.f32.mrb[0].mxu0
        %v914 = vpop.f32.mrb[0].mxu0
        %915 = vdwg.mxu0
        %s916 = scalar_lea.vmem %s583, 100 [#allocation2]
        %v917 = vld [vmem:[%s916] sm:$0xf]
        %v918 = vld [vmem:[%s916 + $0x4] sm:$0xf]
        %v919 = vld [vmem:[%s916 + $0x8] sm:$0xf]
        %v920 = vld [vmem:[%s916 + $0xc] sm:$0xf]
        %v921 = vld [vmem:[%s916 + $0x10] sm:$0xf]
        %v922 = vld [vmem:[%s916 + $0x14] sm:$0xf]
        %v923 = vld [vmem:[%s916 + $0x18] sm:$0xf]
        %v924 = vld [vmem:[%s916 + $0x1c] sm:$0xf]
        %v925 = vld [vmem:[%s916 + $0x20] sm:$0xf]
        %v926 = vld [vmem:[%s916 + $0x24] sm:$0xf]
        %v927 = vld [vmem:[%s916 + $0x28] sm:$0xf]
        %v928 = vld [vmem:[%s916 + $0x2c] sm:$0xf]
        %v929 = vld [vmem:[%s916 + $0x30] sm:$0xf]
        %v930 = vld [vmem:[%s916 + $0x34] sm:$0xf]
        %v931 = vld [vmem:[%s916 + $0x38] sm:$0xf]
        %v932 = vld [vmem:[%s916 + $0x3c] sm:$0xf]
        %v933 = vld [vmem:[%s916 + $0x40] sm:$0xf]
        %v934 = vld [vmem:[%s916 + $0x44] sm:$0xf]
        %v935 = vld [vmem:[%s916 + $0x48] sm:$0xf]
        %v936 = vld [vmem:[%s916 + $0x4c] sm:$0xf]
        %v937 = vld [vmem:[%s916 + $0x50] sm:$0xf]
        %v938 = vld [vmem:[%s916 + $0x54] sm:$0xf]
        %v939 = vld [vmem:[%s916 + $0x58] sm:$0xf]
        %v940 = vld [vmem:[%s916 + $0x5c] sm:$0xf]
        %v941 = vld [vmem:[%s916 + $0x60] sm:$0xf]
        %v967 = vunpack.c.l.b16 %v917
        %v968 = vunpack.c.l.b16 %v918
        %v969 = vunpack.c.l.b16 %v919
        %v970 = vunpack.c.l.b16 %v920
        %v971 = vunpack.c.l.b16 %v921
        %v972 = vunpack.c.l.b16 %v922
        %v973 = vunpack.c.l.b16 %v923
        %v974 = vunpack.c.l.b16 %v924
        %v975 = vunpack.c.l.b16 %v925
        %v976 = vunpack.c.l.b16 %v926
        %v977 = vunpack.c.l.b16 %v927
        %v978 = vunpack.c.l.b16 %v928
        %v979 = vunpack.c.l.b16 %v929
        %v980 = vunpack.c.l.b16 %v930
        %v981 = vunpack.c.l.b16 %v931
        %v982 = vunpack.c.l.b16 %v932
        %v983 = vunpack.c.l.b16 %v933
        %v984 = vunpack.c.l.b16 %v934
        %v985 = vunpack.c.l.b16 %v935
        %v986 = vunpack.c.l.b16 %v936
        %v987 = vunpack.c.l.b16 %v937
        %v988 = vunpack.c.l.b16 %v938
        %v989 = vunpack.c.l.b16 %v939
        %v990 = vunpack.c.l.b16 %v940
        %v991 = vunpack.c.l.b16 %v941
        %v992 = vpack.c.b16 %v968, %v967
        %v993 = vpack.c.b16 %v970, %v969
        %v994 = vpack.c.b16 %v972, %v971
        %v995 = vpack.c.b16 %v974, %v973
        %v996 = vpack.c.b16 %v976, %v975
        %v997 = vpack.c.b16 %v978, %v977
        %v998 = vpack.c.b16 %v980, %v979
        %v999 = vpack.c.b16 %v982, %v981
        %v1000 = vpack.c.b16 %v984, %v983
        %v1001 = vpack.c.b16 %v986, %v985
        %v1002 = vpack.c.b16 %v988, %v987
        %v1003 = vpack.c.b16 %v990, %v989
        %v1004 = vpack.c.b16 %v991, %v991
        %v1006 = vsel %vm740, %v992, 0
        %v1009 = vsel %vm740, %v993, 0
        %v1012 = vsel %vm740, %v994, 0
        %v1015 = vsel %vm740, %v995, 0
        %v1018 = vsel %vm740, %v996, 0
        %v1021 = vsel %vm740, %v997, 0
        %v1024 = vsel %vm740, %v998, 0
        %v1027 = vsel %vm740, %v999, 0
        %v1030 = vsel %vm740, %v1000, 0
        %v1033 = vsel %vm740, %v1001, 0
        %v1036 = vsel %vm740, %v1002, 0
        %v1039 = vsel %vm740, %v1003, 0
        %v1042 = vsel %vm740, %v1004, 0
        %1044 = vmatprep.subr.bf16.mxu0 0
        %1045 = vmatpush1.bf16.msra.mxu0 %v730
        %1046 = vmatprep.subr.bf16.mxu0 0
        %1047 = vmatpush1.bf16.msra.mxu0 %v731
        %1048 = vmatprep.subr.bf16.mxu0 0
        %1049 = vmatpush1.bf16.msra.mxu0 %v732
        %1050 = vmatprep.subr.bf16.mxu0 0
        %1051 = vmatpush1.bf16.msra.mxu0 %v733
        %1052 = vmatprep.subr.bf16.mxu0 0
        %1053 = vmatpush1.bf16.msra.mxu0 %v734
        %1054 = vmatprep.subr.bf16.mxu0 0
        %1055 = vmatpush1.bf16.msra.mxu0 0
        %1056 = vmatprep.subr.bf16.mxu0 0
        %1057 = vmatpush1.bf16.msra.mxu0 0
        %1058 = vmatprep.subr.bf16.mxu0 0
        %1059 = vmatpush1.bf16.msra.mxu0 0
        %1060 = vmatprep.subr.bf16.mxu0 0
        %1061 = vmatpush1.bf16.msra.mxu0 0
        %1062 = vmatprep.subr.bf16.mxu0 0
        %1063 = vmatpush1.bf16.msra.mxu0 0
        %1064 = vmatprep.subr.bf16.mxu0 0
        %1065 = vmatpush1.bf16.msra.mxu0 0
        %1066 = vmatprep.subr.bf16.mxu0 0
        %1067 = vmatpush1.bf16.msra.mxu0 0
        %1068 = vmatprep.subr.bf16.mxu0 0
        %1069 = vmatpush1.bf16.msra.mxu0 0
        %1070 = vmatprep.subr.bf16.mxu0 0
        %1071 = vmatpush1.bf16.msra.mxu0 0
        %1072 = vmatprep.subr.bf16.mxu0 0
        %1073 = vmatpush1.bf16.msra.mxu0 0
        %1074 = vmatprep.subr.bf16.mxu0 0
        %1075 = vmatpush1.bf16.msra.mxu0 0
        %1076 = vmatprep.mubr.bf16.mxu0 0
        %1077 = vmatmul.mubr.bf16.gmra.mrb[0].mxu0 %v1006
        %v1078 = vpop.f32.mrb[0].mxu0
        %v1079 = vadd.f32 0.0, %v1078
        %v1080 = vpop.f32.mrb[0].mxu0
        %v1081 = vpop.f32.mrb[0].mxu0
        %v1082 = vadd.f32 0.0, %v1081
        %v1083 = vpop.f32.mrb[0].mxu0
        %1084 = vmatprep.mubr.bf16.mxu0 0
        %1085 = vmatmul.mubr.bf16.gmra.mrb[0].mxu0 %v1009
        %v1086 = vpop.f32.mrb[0].mxu0
        %v1087 = vadd.f32 0.0, %v1086
        %v1088 = vpop.f32.mrb[0].mxu0
        %v1089 = vpop.f32.mrb[0].mxu0
        %v1090 = vadd.f32 0.0, %v1089
        %v1091 = vpop.f32.mrb[0].mxu0
        %1092 = vmatprep.mubr.bf16.mxu0 0
        %1093 = vmatmul.mubr.bf16.gmra.mrb[0].mxu0 %v1012
        %v1094 = vpop.f32.mrb[0].mxu0
        %v1095 = vadd.f32 0.0, %v1094
        %v1096 = vpop.f32.mrb[0].mxu0
        %v1097 = vpop.f32.mrb[0].mxu0
        %v1098 = vadd.f32 0.0, %v1097
        %v1099 = vpop.f32.mrb[0].mxu0
        %1100 = vmatprep.mubr.bf16.mxu0 0
        %1101 = vmatmul.mubr.bf16.gmra.mrb[0].mxu0 %v1015
        %v1102 = vpop.f32.mrb[0].mxu0
        %v1103 = vadd.f32 0.0, %v1102
        %v1104 = vpop.f32.mrb[0].mxu0
        %v1105 = vpop.f32.mrb[0].mxu0
        %v1106 = vadd.f32 0.0, %v1105
        %v1107 = vpop.f32.mrb[0].mxu0
        %1108 = vmatprep.mubr.bf16.mxu0 0
        %1109 = vmatmul.mubr.bf16.gmra.mrb[0].mxu0 %v1018
        %v1110 = vpop.f32.mrb[0].mxu0
        %v1111 = vadd.f32 0.0, %v1110
        %v1112 = vpop.f32.mrb[0].mxu0
        %v1113 = vpop.f32.mrb[0].mxu0
        %v1114 = vadd.f32 0.0, %v1113
        %v1115 = vpop.f32.mrb[0].mxu0
        %1116 = vmatprep.mubr.bf16.mxu0 0
        %1117 = vmatmul.mubr.bf16.gmra.mrb[0].mxu0 %v1021
        %v1118 = vpop.f32.mrb[0].mxu0
        %v1119 = vadd.f32 0.0, %v1118
        %v1120 = vpop.f32.mrb[0].mxu0
        %v1121 = vpop.f32.mrb[0].mxu0
        %v1122 = vadd.f32 0.0, %v1121
        %v1123 = vpop.f32.mrb[0].mxu0
        %1124 = vmatprep.mubr.bf16.mxu0 0
        %1125 = vmatmul.mubr.bf16.gmra.mrb[0].mxu0 %v1024
        %v1126 = vpop.f32.mrb[0].mxu0
        %v1127 = vadd.f32 0.0, %v1126
        %v1128 = vpop.f32.mrb[0].mxu0
        %v1129 = vpop.f32.mrb[0].mxu0
        %v1130 = vadd.f32 0.0, %v1129
        %v1131 = vpop.f32.mrb[0].mxu0
        %1132 = vmatprep.mubr.bf16.mxu0 0
        %1133 = vmatmul.mubr.bf16.gmra.mrb[0].mxu0 %v1027
        %v1134 = vpop.f32.mrb[0].mxu0
        %v1135 = vadd.f32 0.0, %v1134
        %v1136 = vpop.f32.mrb[0].mxu0
        %v1137 = vpop.f32.mrb[0].mxu0
        %v1138 = vadd.f32 0.0, %v1137
        %v1139 = vpop.f32.mrb[0].mxu0
        %1140 = vmatprep.mubr.bf16.mxu0 0
        %1141 = vmatmul.mubr.bf16.gmra.mrb[0].mxu0 %v1030
        %v1142 = vpop.f32.mrb[0].mxu0
        %v1143 = vadd.f32 0.0, %v1142
        %v1144 = vpop.f32.mrb[0].mxu0
        %v1145 = vpop.f32.mrb[0].mxu0
        %v1146 = vadd.f32 0.0, %v1145
        %v1147 = vpop.f32.mrb[0].mxu0
        %1148 = vmatprep.mubr.bf16.mxu0 0
        %1149 = vmatmul.mubr.bf16.gmra.mrb[0].mxu0 %v1033
        %v1150 = vpop.f32.mrb[0].mxu0
        %v1151 = vadd.f32 0.0, %v1150
        %v1152 = vpop.f32.mrb[0].mxu0
        %v1153 = vpop.f32.mrb[0].mxu0
        %v1154 = vadd.f32 0.0, %v1153
        %v1155 = vpop.f32.mrb[0].mxu0
        %1156 = vmatprep.mubr.bf16.mxu0 0
        %1157 = vmatmul.mubr.bf16.gmra.mrb[0].mxu0 %v1036
        %v1158 = vpop.f32.mrb[0].mxu0
        %v1159 = vadd.f32 0.0, %v1158
        %v1160 = vpop.f32.mrb[0].mxu0
        %v1161 = vpop.f32.mrb[0].mxu0
        %v1162 = vadd.f32 0.0, %v1161
        %v1163 = vpop.f32.mrb[0].mxu0
        %1164 = vmatprep.mubr.bf16.mxu0 0
        %1165 = vmatmul.mubr.bf16.gmra.mrb[0].mxu0 %v1039
        %v1166 = vpop.f32.mrb[0].mxu0
        %v1167 = vadd.f32 0.0, %v1166
        %v1168 = vpop.f32.mrb[0].mxu0
        %v1169 = vpop.f32.mrb[0].mxu0
        %v1170 = vadd.f32 0.0, %v1169
        %v1171 = vpop.f32.mrb[0].mxu0
        %1172 = vmatprep.mubr.bf16.mxu0 0
        %1173 = vmatmul.mubr.bf16.gmra.mrb[0].mxu0 %v1042
        %v1174 = vpop.f32.mrb[0].mxu0
        %v1175 = vadd.f32 0.0, %v1174
        %v1176 = vpop.f32.mrb[0].mxu0
        %v1177 = vpop.f32.mrb[0].mxu0
        %v1178 = vpop.f32.mrb[0].mxu0
        %1179 = vdwg.mxu0
        %s1180 = scalar_lea.vmem %s583, 200 [#allocation2]
        %v1181 = vld [vmem:[%s1180] sm:$0xf]
        %v1182 = vld [vmem:[%s1180 + $0x4] sm:$0xf]
        %v1183 = vld [vmem:[%s1180 + $0x8] sm:$0xf]
        %v1184 = vld [vmem:[%s1180 + $0xc] sm:$0xf]
        %v1185 = vld [vmem:[%s1180 + $0x10] sm:$0xf]
        %v1186 = vld [vmem:[%s1180 + $0x14] sm:$0xf]
        %v1187 = vld [vmem:[%s1180 + $0x18] sm:$0xf]
        %v1188 = vld [vmem:[%s1180 + $0x1c] sm:$0xf]
        %v1189 = vld [vmem:[%s1180 + $0x20] sm:$0xf]
        %v1190 = vld [vmem:[%s1180 + $0x24] sm:$0xf]
        %v1191 = vld [vmem:[%s1180 + $0x28] sm:$0xf]
        %v1192 = vld [vmem:[%s1180 + $0x2c] sm:$0xf]
        %v1193 = vld [vmem:[%s1180 + $0x30] sm:$0xf]
        %v1194 = vld [vmem:[%s1180 + $0x34] sm:$0xf]
        %v1195 = vld [vmem:[%s1180 + $0x38] sm:$0xf]
        %v1196 = vld [vmem:[%s1180 + $0x3c] sm:$0xf]
        %v1197 = vld [vmem:[%s1180 + $0x40] sm:$0xf]
        %v1198 = vld [vmem:[%s1180 + $0x44] sm:$0xf]
        %v1199 = vld [vmem:[%s1180 + $0x48] sm:$0xf]
        %v1200 = vld [vmem:[%s1180 + $0x4c] sm:$0xf]
        %v1201 = vld [vmem:[%s1180 + $0x50] sm:$0xf]
        %v1202 = vld [vmem:[%s1180 + $0x54] sm:$0xf]
        %v1203 = vld [vmem:[%s1180 + $0x58] sm:$0xf]
        %v1204 = vld [vmem:[%s1180 + $0x5c] sm:$0xf]
        %v1205 = vld [vmem:[%s1180 + $0x60] sm:$0xf]
        %v1231 = vunpack.c.l.b16 %v1181
        %v1232 = vunpack.c.l.b16 %v1182
        %v1233 = vunpack.c.l.b16 %v1183
        %v1234 = vunpack.c.l.b16 %v1184
        %v1235 = vunpack.c.l.b16 %v1185
        %v1236 = vunpack.c.l.b16 %v1186
        %v1237 = vunpack.c.l.b16 %v1187
        %v1238 = vunpack.c.l.b16 %v1188
        %v1239 = vunpack.c.l.b16 %v1189
        %v1240 = vunpack.c.l.b16 %v1190
        %v1241 = vunpack.c.l.b16 %v1191
        %v1242 = vunpack.c.l.b16 %v1192
        %v1243 = vunpack.c.l.b16 %v1193
        %v1244 = vunpack.c.l.b16 %v1194
        %v1245 = vunpack.c.l.b16 %v1195
        %v1246 = vunpack.c.l.b16 %v1196
        %v1247 = vunpack.c.l.b16 %v1197
        %v1248 = vunpack.c.l.b16 %v1198
        %v1249 = vunpack.c.l.b16 %v1199
        %v1250 = vunpack.c.l.b16 %v1200
        %v1251 = vunpack.c.l.b16 %v1201
        %v1252 = vunpack.c.l.b16 %v1202
        %v1253 = vunpack.c.l.b16 %v1203
        %v1254 = vunpack.c.l.b16 %v1204
        %v1255 = vunpack.c.l.b16 %v1205
        %v1256 = vpack.c.b16 %v1232, %v1231
        %v1257 = vpack.c.b16 %v1234, %v1233
        %v1258 = vpack.c.b16 %v1236, %v1235
        %v1259 = vpack.c.b16 %v1238, %v1237
        %v1260 = vpack.c.b16 %v1240, %v1239
        %v1261 = vpack.c.b16 %v1242, %v1241
        %v1262 = vpack.c.b16 %v1244, %v1243
        %v1263 = vpack.c.b16 %v1246, %v1245
        %v1264 = vpack.c.b16 %v1248, %v1247
        %v1265 = vpack.c.b16 %v1250, %v1249
        %v1266 = vpack.c.b16 %v1252, %v1251
        %v1267 = vpack.c.b16 %v1254, %v1253
        %v1268 = vpack.c.b16 %v1255, %v1255
        %v1270 = vsel %vm740, %v1256, 0
        %v1273 = vsel %vm740, %v1257, 0
        %v1276 = vsel %vm740, %v1258, 0
        %v1279 = vsel %vm740, %v1259, 0
        %v1282 = vsel %vm740, %v1260, 0
        %v1285 = vsel %vm740, %v1261, 0
        %v1288 = vsel %vm740, %v1262, 0
        %v1291 = vsel %vm740, %v1263, 0
        %v1294 = vsel %vm740, %v1264, 0
        %v1297 = vsel %vm740, %v1265, 0
        %v1300 = vsel %vm740, %v1266, 0
        %v1303 = vsel %vm740, %v1267, 0
        %v1306 = vsel %vm740, %v1268, 0
        %1308 = vmatprep.subr.bf16.mxu0 0
        %1309 = vmatpush1.bf16.msra.mxu0 %v730
        %1310 = vmatprep.subr.bf16.mxu0 0
        %1311 = vmatpush1.bf16.msra.mxu0 %v731
        %1312 = vmatprep.subr.bf16.mxu0 0
        %1313 = vmatpush1.bf16.msra.mxu0 %v732
        %1314 = vmatprep.subr.bf16.mxu0 0
        %1315 = vmatpush1.bf16.msra.mxu0 %v733
        %1316 = vmatprep.subr.bf16.mxu0 0
        %1317 = vmatpush1.bf16.msra.mxu0 %v734
        %1318 = vmatprep.subr.bf16.mxu0 0
        %1319 = vmatpush1.bf16.msra.mxu0 0
        %1320 = vmatprep.subr.bf16.mxu0 0
        %1321 = vmatpush1.bf16.msra.mxu0 0
        %1322 = vmatprep.subr.bf16.mxu0 0
        %1323 = vmatpush1.bf16.msra.mxu0 0
        %1324 = vmatprep.subr.bf16.mxu0 0
        %1325 = vmatpush1.bf16.msra.mxu0 0
        %1326 = vmatprep.subr.bf16.mxu0 0
        %1327 = vmatpush1.bf16.msra.mxu0 0
        %1328 = vmatprep.subr.bf16.mxu0 0
        %1329 = vmatpush1.bf16.msra.mxu0 0
        %1330 = vmatprep.subr.bf16.mxu0 0
        %1331 = vmatpush1.bf16.msra.mxu0 0
        %1332 = vmatprep.subr.bf16.mxu0 0
        %1333 = vmatpush1.bf16.msra.mxu0 0
        %1334 = vmatprep.subr.bf16.mxu0 0
        %1335 = vmatpush1.bf16.msra.mxu0 0
        %1336 = vmatprep.subr.bf16.mxu0 0
        %1337 = vmatpush1.bf16.msra.mxu0 0
        %1338 = vmatprep.subr.bf16.mxu0 0
        %1339 = vmatpush1.bf16.msra.mxu0 0
        %1340 = vmatprep.mubr.bf16.mxu0 0
        %1341 = vmatmul.mubr.bf16.gmra.mrb[0].mxu0 %v1270
        %v1342 = vpop.f32.mrb[0].mxu0
        %v1343 = vadd.f32 0.0, %v1342
        %v1344 = vpop.f32.mrb[0].mxu0
        %v1345 = vpop.f32.mrb[0].mxu0
        %v1346 = vadd.f32 0.0, %v1345
        %v1347 = vpop.f32.mrb[0].mxu0
        %1348 = vmatprep.mubr.bf16.mxu0 0
        %1349 = vmatmul.mubr.bf16.gmra.mrb[0].mxu0 %v1273
        %v1350 = vpop.f32.mrb[0].mxu0
        %v1351 = vadd.f32 0.0, %v1350
        %v1352 = vpop.f32.mrb[0].mxu0
        %v1353 = vpop.f32.mrb[0].mxu0
        %v1354 = vadd.f32 0.0, %v1353
        %v1355 = vpop.f32.mrb[0].mxu0
        %1356 = vmatprep.mubr.bf16.mxu0 0
        %1357 = vmatmul.mubr.bf16.gmra.mrb[0].mxu0 %v1276
        %v1358 = vpop.f32.mrb[0].mxu0
        %v1359 = vadd.f32 0.0, %v1358
        %v1360 = vpop.f32.mrb[0].mxu0
        %v1361 = vpop.f32.mrb[0].mxu0
        %v1362 = vadd.f32 0.0, %v1361
        %v1363 = vpop.f32.mrb[0].mxu0
        %1364 = vmatprep.mubr.bf16.mxu0 0
        %1365 = vmatmul.mubr.bf16.gmra.mrb[0].mxu0 %v1279
        %v1366 = vpop.f32.mrb[0].mxu0
        %v1367 = vadd.f32 0.0, %v1366
        %v1368 = vpop.f32.mrb[0].mxu0
        %v1369 = vpop.f32.mrb[0].mxu0
        %v1370 = vadd.f32 0.0, %v1369
        %v1371 = vpop.f32.mrb[0].mxu0
        %1372 = vmatprep.mubr.bf16.mxu0 0
        %1373 = vmatmul.mubr.bf16.gmra.mrb[0].mxu0 %v1282
        %v1374 = vpop.f32.mrb[0].mxu0
        %v1375 = vadd.f32 0.0, %v1374
        %v1376 = vpop.f32.mrb[0].mxu0
        %v1377 = vpop.f32.mrb[0].mxu0
        %v1378 = vadd.f32 0.0, %v1377
        %v1379 = vpop.f32.mrb[0].mxu0
        %1380 = vmatprep.mubr.bf16.mxu0 0
        %1381 = vmatmul.mubr.bf16.gmra.mrb[0].mxu0 %v1285
        %v1382 = vpop.f32.mrb[0].mxu0
        %v1383 = vadd.f32 0.0, %v1382
        %v1384 = vpop.f32.mrb[0].mxu0
        %v1385 = vpop.f32.mrb[0].mxu0
        %v1386 = vadd.f32 0.0, %v1385
        %v1387 = vpop.f32.mrb[0].mxu0
        %1388 = vmatprep.mubr.bf16.mxu0 0
        %1389 = vmatmul.mubr.bf16.gmra.mrb[0].mxu0 %v1288
        %v1390 = vpop.f32.mrb[0].mxu0
        %v1391 = vadd.f32 0.0, %v1390
        %v1392 = vpop.f32.mrb[0].mxu0
        %v1393 = vpop.f32.mrb[0].mxu0
        %v1394 = vadd.f32 0.0, %v1393
        %v1395 = vpop.f32.mrb[0].mxu0
        %1396 = vmatprep.mubr.bf16.mxu0 0
        %1397 = vmatmul.mubr.bf16.gmra.mrb[0].mxu0 %v1291
        %v1398 = vpop.f32.mrb[0].mxu0
        %v1399 = vadd.f32 0.0, %v1398
        %v1400 = vpop.f32.mrb[0].mxu0
        %v1401 = vpop.f32.mrb[0].mxu0
        %v1402 = vadd.f32 0.0, %v1401
        %v1403 = vpop.f32.mrb[0].mxu0
        %1404 = vmatprep.mubr.bf16.mxu0 0
        %1405 = vmatmul.mubr.bf16.gmra.mrb[0].mxu0 %v1294
        %v1406 = vpop.f32.mrb[0].mxu0
        %v1407 = vadd.f32 0.0, %v1406
        %v1408 = vpop.f32.mrb[0].mxu0
        %v1409 = vpop.f32.mrb[0].mxu0
        %v1410 = vadd.f32 0.0, %v1409
        %v1411 = vpop.f32.mrb[0].mxu0
        %1412 = vmatprep.mubr.bf16.mxu0 0
        %1413 = vmatmul.mubr.bf16.gmra.mrb[0].mxu0 %v1297
        %v1414 = vpop.f32.mrb[0].mxu0
        %v1415 = vadd.f32 0.0, %v1414
        %v1416 = vpop.f32.mrb[0].mxu0
        %v1417 = vpop.f32.mrb[0].mxu0
        %v1418 = vadd.f32 0.0, %v1417
        %v1419 = vpop.f32.mrb[0].mxu0
        %1420 = vmatprep.mubr.bf16.mxu0 0
        %1421 = vmatmul.mubr.bf16.gmra.mrb[0].mxu0 %v1300
        %v1422 = vpop.f32.mrb[0].mxu0
        %v1423 = vadd.f32 0.0, %v1422
        %v1424 = vpop.f32.mrb[0].mxu0
        %v1425 = vpop.f32.mrb[0].mxu0
        %v1426 = vadd.f32 0.0, %v1425
        %v1427 = vpop.f32.mrb[0].mxu0
        %1428 = vmatprep.mubr.bf16.mxu0 0
        %1429 = vmatmul.mubr.bf16.gmra.mrb[0].mxu0 %v1303
        %v1430 = vpop.f32.mrb[0].mxu0
        %v1431 = vadd.f32 0.0, %v1430
        %v1432 = vpop.f32.mrb[0].mxu0
        %v1433 = vpop.f32.mrb[0].mxu0
        %v1434 = vadd.f32 0.0, %v1433
        %v1435 = vpop.f32.mrb[0].mxu0
        %1436 = vmatprep.mubr.bf16.mxu0 0
        %1437 = vmatmul.mubr.bf16.gmra.mrb[0].mxu0 %v1306
        %v1438 = vpop.f32.mrb[0].mxu0
        %v1439 = vadd.f32 0.0, %v1438
        %v1440 = vpop.f32.mrb[0].mxu0
        %v1441 = vpop.f32.mrb[0].mxu0
        %v1442 = vpop.f32.mrb[0].mxu0
        %1443 = vdwg.mxu0
        %s1444 = scalar_lea.vmem %s583, 300 [#allocation2]
        %v1445 = vld [vmem:[%s1444] sm:$0xf]
        %v1446 = vld [vmem:[%s1444 + $0x4] sm:$0xf]
        %v1447 = vld [vmem:[%s1444 + $0x8] sm:$0xf]
        %v1448 = vld [vmem:[%s1444 + $0xc] sm:$0xf]
        %v1449 = vld [vmem:[%s1444 + $0x10] sm:$0xf]
        %v1450 = vld [vmem:[%s1444 + $0x14] sm:$0xf]
        %v1451 = vld [vmem:[%s1444 + $0x18] sm:$0xf]
        %v1452 = vld [vmem:[%s1444 + $0x1c] sm:$0xf]
        %v1453 = vld [vmem:[%s1444 + $0x20] sm:$0xf]
        %v1454 = vld [vmem:[%s1444 + $0x24] sm:$0xf]
        %v1455 = vld [vmem:[%s1444 + $0x28] sm:$0xf]
        %v1456 = vld [vmem:[%s1444 + $0x2c] sm:$0xf]
        %v1457 = vld [vmem:[%s1444 + $0x30] sm:$0xf]
        %v1458 = vld [vmem:[%s1444 + $0x34] sm:$0xf]
        %v1459 = vld [vmem:[%s1444 + $0x38] sm:$0xf]
        %v1460 = vld [vmem:[%s1444 + $0x3c] sm:$0xf]
        %v1461 = vld [vmem:[%s1444 + $0x40] sm:$0xf]
        %v1462 = vld [vmem:[%s1444 + $0x44] sm:$0xf]
        %v1463 = vld [vmem:[%s1444 + $0x48] sm:$0xf]
        %v1464 = vld [vmem:[%s1444 + $0x4c] sm:$0xf]
        %v1465 = vld [vmem:[%s1444 + $0x50] sm:$0xf]
        %v1466 = vld [vmem:[%s1444 + $0x54] sm:$0xf]
        %v1467 = vld [vmem:[%s1444 + $0x58] sm:$0xf]
        %v1468 = vld [vmem:[%s1444 + $0x5c] sm:$0xf]
        %v1469 = vld [vmem:[%s1444 + $0x60] sm:$0xf]
        %v1495 = vunpack.c.l.b16 %v1445
        %v1496 = vunpack.c.l.b16 %v1446
        %v1497 = vunpack.c.l.b16 %v1447
        %v1498 = vunpack.c.l.b16 %v1448
        %v1499 = vunpack.c.l.b16 %v1449
        %v1500 = vunpack.c.l.b16 %v1450
        %v1501 = vunpack.c.l.b16 %v1451
        %v1502 = vunpack.c.l.b16 %v1452
        %v1503 = vunpack.c.l.b16 %v1453
        %v1504 = vunpack.c.l.b16 %v1454
        %v1505 = vunpack.c.l.b16 %v1455
        %v1506 = vunpack.c.l.b16 %v1456
        %v1507 = vunpack.c.l.b16 %v1457
        %v1508 = vunpack.c.l.b16 %v1458
        %v1509 = vunpack.c.l.b16 %v1459
        %v1510 = vunpack.c.l.b16 %v1460
        %v1511 = vunpack.c.l.b16 %v1461
        %v1512 = vunpack.c.l.b16 %v1462
        %v1513 = vunpack.c.l.b16 %v1463
        %v1514 = vunpack.c.l.b16 %v1464
        %v1515 = vunpack.c.l.b16 %v1465
        %v1516 = vunpack.c.l.b16 %v1466
        %v1517 = vunpack.c.l.b16 %v1467
        %v1518 = vunpack.c.l.b16 %v1468
        %v1519 = vunpack.c.l.b16 %v1469
        %v1520 = vpack.c.b16 %v1496, %v1495
        %v1521 = vpack.c.b16 %v1498, %v1497
        %v1522 = vpack.c.b16 %v1500, %v1499
        %v1523 = vpack.c.b16 %v1502, %v1501
        %v1524 = vpack.c.b16 %v1504, %v1503
        %v1525 = vpack.c.b16 %v1506, %v1505
        %v1526 = vpack.c.b16 %v1508, %v1507
        %v1527 = vpack.c.b16 %v1510, %v1509
        %v1528 = vpack.c.b16 %v1512, %v1511
        %v1529 = vpack.c.b16 %v1514, %v1513
        %v1530 = vpack.c.b16 %v1516, %v1515
        %v1531 = vpack.c.b16 %v1518, %v1517
        %v1532 = vpack.c.b16 %v1519, %v1519
        %v1534 = vsel %vm740, %v1520, 0
        %v1537 = vsel %vm740, %v1521, 0
        %v1540 = vsel %vm740, %v1522, 0
        %v1543 = vsel %vm740, %v1523, 0
        %v1546 = vsel %vm740, %v1524, 0
        %v1549 = vsel %vm740, %v1525, 0
        %v1552 = vsel %vm740, %v1526, 0
        %v1555 = vsel %vm740, %v1527, 0
        %v1558 = vsel %vm740, %v1528, 0
        %v1561 = vsel %vm740, %v1529, 0
        %v1564 = vsel %vm740, %v1530, 0
        %v1567 = vsel %vm740, %v1531, 0
        %v1570 = vsel %vm740, %v1532, 0
        %1572 = vmatprep.subr.bf16.mxu0 0
        %1573 = vmatpush1.bf16.msra.mxu0 %v730
        %1574 = vmatprep.subr.bf16.mxu0 0
        %1575 = vmatpush1.bf16.msra.mxu0 %v731
        %1576 = vmatprep.subr.bf16.mxu0 0
        %1577 = vmatpush1.bf16.msra.mxu0 %v732
        %1578 = vmatprep.subr.bf16.mxu0 0
        %1579 = vmatpush1.bf16.msra.mxu0 %v733
        %1580 = vmatprep.subr.bf16.mxu0 0
        %1581 = vmatpush1.bf16.msra.mxu0 %v734
        %1582 = vmatprep.subr.bf16.mxu0 0
        %1583 = vmatpush1.bf16.msra.mxu0 0
        %1584 = vmatprep.subr.bf16.mxu0 0
        %1585 = vmatpush1.bf16.msra.mxu0 0
        %1586 = vmatprep.subr.bf16.mxu0 0
        %1587 = vmatpush1.bf16.msra.mxu0 0
        %1588 = vmatprep.subr.bf16.mxu0 0
        %1589 = vmatpush1.bf16.msra.mxu0 0
        %1590 = vmatprep.subr.bf16.mxu0 0
        %1591 = vmatpush1.bf16.msra.mxu0 0
        %1592 = vmatprep.subr.bf16.mxu0 0
        %1593 = vmatpush1.bf16.msra.mxu0 0
        %1594 = vmatprep.subr.bf16.mxu0 0
        %1595 = vmatpush1.bf16.msra.mxu0 0
        %1596 = vmatprep.subr.bf16.mxu0 0
        %1597 = vmatpush1.bf16.msra.mxu0 0
        %1598 = vmatprep.subr.bf16.mxu0 0
        %1599 = vmatpush1.bf16.msra.mxu0 0
        %1600 = vmatprep.subr.bf16.mxu0 0
        %1601 = vmatpush1.bf16.msra.mxu0 0
        %1602 = vmatprep.subr.bf16.mxu0 0
        %1603 = vmatpush1.bf16.msra.mxu0 0
        %1604 = vmatprep.mubr.bf16.mxu0 0
        %1605 = vmatmul.mubr.bf16.gmra.mrb[0].mxu0 %v1534
        %v1606 = vpop.f32.mrb[0].mxu0
        %v1607 = vadd.f32 0.0, %v1606
        %v1608 = vpop.f32.mrb[0].mxu0
        %v1609 = vpop.f32.mrb[0].mxu0
        %v1610 = vadd.f32 0.0, %v1609
        %v1611 = vpop.f32.mrb[0].mxu0
        %1612 = vmatprep.mubr.bf16.mxu0 0
        %1613 = vmatmul.mubr.bf16.gmra.mrb[0].mxu0 %v1537
        %v1614 = vpop.f32.mrb[0].mxu0
        %v1615 = vadd.f32 0.0, %v1614
        %v1616 = vpop.f32.mrb[0].mxu0
        %v1617 = vpop.f32.mrb[0].mxu0
        %v1618 = vadd.f32 0.0, %v1617
        %v1619 = vpop.f32.mrb[0].mxu0
        %1620 = vmatprep.mubr.bf16.mxu0 0
        %1621 = vmatmul.mubr.bf16.gmra.mrb[0].mxu0 %v1540
        %v1622 = vpop.f32.mrb[0].mxu0
        %v1623 = vadd.f32 0.0, %v1622
        %v1624 = vpop.f32.mrb[0].mxu0
        %v1625 = vpop.f32.mrb[0].mxu0
        %v1626 = vadd.f32 0.0, %v1625
        %v1627 = vpop.f32.mrb[0].mxu0
        %1628 = vmatprep.mubr.bf16.mxu0 0
        %1629 = vmatmul.mubr.bf16.gmra.mrb[0].mxu0 %v1543
        %v1630 = vpop.f32.mrb[0].mxu0
        %v1631 = vadd.f32 0.0, %v1630
        %v1632 = vpop.f32.mrb[0].mxu0
        %v1633 = vpop.f32.mrb[0].mxu0
        %v1634 = vadd.f32 0.0, %v1633
        %v1635 = vpop.f32.mrb[0].mxu0
        %1636 = vmatprep.mubr.bf16.mxu0 0
        %1637 = vmatmul.mubr.bf16.gmra.mrb[0].mxu0 %v1546
        %v1638 = vpop.f32.mrb[0].mxu0
        %v1639 = vadd.f32 0.0, %v1638
        %v1640 = vpop.f32.mrb[0].mxu0
        %v1641 = vpop.f32.mrb[0].mxu0
        %v1642 = vadd.f32 0.0, %v1641
        %v1643 = vpop.f32.mrb[0].mxu0
        %1644 = vmatprep.mubr.bf16.mxu0 0
        %1645 = vmatmul.mubr.bf16.gmra.mrb[0].mxu0 %v1549
        %v1646 = vpop.f32.mrb[0].mxu0
        %v1647 = vadd.f32 0.0, %v1646
        %v1648 = vpop.f32.mrb[0].mxu0
        %v1649 = vpop.f32.mrb[0].mxu0
        %v1650 = vadd.f32 0.0, %v1649
        %v1651 = vpop.f32.mrb[0].mxu0
        %1652 = vmatprep.mubr.bf16.mxu0 0
        %1653 = vmatmul.mubr.bf16.gmra.mrb[0].mxu0 %v1552
        %v1654 = vpop.f32.mrb[0].mxu0
        %v1655 = vadd.f32 0.0, %v1654
        %v1656 = vpop.f32.mrb[0].mxu0
        %v1657 = vpop.f32.mrb[0].mxu0
        %v1658 = vadd.f32 0.0, %v1657
        %v1659 = vpop.f32.mrb[0].mxu0
        %1660 = vmatprep.mubr.bf16.mxu0 0
        %1661 = vmatmul.mubr.bf16.gmra.mrb[0].mxu0 %v1555
        %v1662 = vpop.f32.mrb[0].mxu0
        %v1663 = vadd.f32 0.0, %v1662
        %v1664 = vpop.f32.mrb[0].mxu0
        %v1665 = vpop.f32.mrb[0].mxu0
        %v1666 = vadd.f32 0.0, %v1665
        %v1667 = vpop.f32.mrb[0].mxu0
        %1668 = vmatprep.mubr.bf16.mxu0 0
        %1669 = vmatmul.mubr.bf16.gmra.mrb[0].mxu0 %v1558
        %v1670 = vpop.f32.mrb[0].mxu0
        %v1671 = vadd.f32 0.0, %v1670
        %v1672 = vpop.f32.mrb[0].mxu0
        %v1673 = vpop.f32.mrb[0].mxu0
        %v1674 = vadd.f32 0.0, %v1673
        %v1675 = vpop.f32.mrb[0].mxu0
        %1676 = vmatprep.mubr.bf16.mxu0 0
        %1677 = vmatmul.mubr.bf16.gmra.mrb[0].mxu0 %v1561
        %v1678 = vpop.f32.mrb[0].mxu0
        %v1679 = vadd.f32 0.0, %v1678
        %v1680 = vpop.f32.mrb[0].mxu0
        %v1681 = vpop.f32.mrb[0].mxu0
        %v1682 = vadd.f32 0.0, %v1681
        %v1683 = vpop.f32.mrb[0].mxu0
        %1684 = vmatprep.mubr.bf16.mxu0 0
        %1685 = vmatmul.mubr.bf16.gmra.mrb[0].mxu0 %v1564
        %v1686 = vpop.f32.mrb[0].mxu0
        %v1687 = vadd.f32 0.0, %v1686
        %v1688 = vpop.f32.mrb[0].mxu0
        %v1689 = vpop.f32.mrb[0].mxu0
        %v1690 = vadd.f32 0.0, %v1689
        %v1691 = vpop.f32.mrb[0].mxu0
        %1692 = vmatprep.mubr.bf16.mxu0 0
        %1693 = vmatmul.mubr.bf16.gmra.mrb[0].mxu0 %v1567
        %v1694 = vpop.f32.mrb[0].mxu0
        %v1695 = vadd.f32 0.0, %v1694
        %v1696 = vpop.f32.mrb[0].mxu0
        %v1697 = vpop.f32.mrb[0].mxu0
        %v1698 = vadd.f32 0.0, %v1697
        %v1699 = vpop.f32.mrb[0].mxu0
        %1700 = vmatprep.mubr.bf16.mxu0 0
        %1701 = vmatmul.mubr.bf16.gmra.mrb[0].mxu0 %v1570
        %v1702 = vpop.f32.mrb[0].mxu0
        %v1703 = vadd.f32 0.0, %v1702
        %v1704 = vpop.f32.mrb[0].mxu0
        %v1705 = vpop.f32.mrb[0].mxu0
        %v1706 = vpop.f32.mrb[0].mxu0
        %1707 = vdwg.mxu0
        %v1708 = vmax.f32 %v815, %v1079
        %v1709 = vmax.f32 %v818, %v1082
        %v1710 = vmax.f32 %v823, %v1087
        %v1711 = vmax.f32 %v826, %v1090
        %v1712 = vmax.f32 %v831, %v1095
        %v1713 = vmax.f32 %v834, %v1098
        %v1714 = vmax.f32 %v839, %v1103
        %v1715 = vmax.f32 %v842, %v1106
        %v1716 = vmax.f32 %v847, %v1111
        %v1717 = vmax.f32 %v850, %v1114
        %v1718 = vmax.f32 %v855, %v1119
        %v1719 = vmax.f32 %v858, %v1122
        %v1720 = vmax.f32 %v863, %v1127
        %v1721 = vmax.f32 %v866, %v1130
        %v1722 = vmax.f32 %v871, %v1135
        %v1723 = vmax.f32 %v874, %v1138
        %v1724 = vmax.f32 %v879, %v1143
        %v1725 = vmax.f32 %v882, %v1146
        %v1726 = vmax.f32 %v887, %v1151
        %v1727 = vmax.f32 %v890, %v1154
        %v1728 = vmax.f32 %v895, %v1159
        %v1729 = vmax.f32 %v898, %v1162
        %v1730 = vmax.f32 %v903, %v1167
        %v1731 = vmax.f32 %v906, %v1170
        %v1732 = vmax.f32 %v911, %v1175
        %v1733 = vmax.f32 %v1343, %v1607
        %v1734 = vmax.f32 %v1346, %v1610
        %v1735 = vmax.f32 %v1351, %v1615
        %v1736 = vmax.f32 %v1354, %v1618
        %v1737 = vmax.f32 %v1359, %v1623
        %v1738 = vmax.f32 %v1362, %v1626
        %v1739 = vmax.f32 %v1367, %v1631
        %v1740 = vmax.f32 %v1370, %v1634
        %v1741 = vmax.f32 %v1375, %v1639
        %v1742 = vmax.f32 %v1378, %v1642
        %v1743 = vmax.f32 %v1383, %v1647
        %v1744 = vmax.f32 %v1386, %v1650
        %v1745 = vmax.f32 %v1391, %v1655
        %v1746 = vmax.f32 %v1394, %v1658
        %v1747 = vmax.f32 %v1399, %v1663
        %v1748 = vmax.f32 %v1402, %v1666
        %v1749 = vmax.f32 %v1407, %v1671
        %v1750 = vmax.f32 %v1410, %v1674
        %v1751 = vmax.f32 %v1415, %v1679
        %v1752 = vmax.f32 %v1418, %v1682
        %v1753 = vmax.f32 %v1423, %v1687
        %v1754 = vmax.f32 %v1426, %v1690
        %v1755 = vmax.f32 %v1431, %v1695
        %v1756 = vmax.f32 %v1434, %v1698
        %v1757 = vmax.f32 %v1439, %v1703
        %v1758 = vmax.f32 %v1708, %v1733
        %v1759 = vmax.f32 %v1709, %v1734
        %v1760 = vmax.f32 %v1710, %v1735
        %v1761 = vmax.f32 %v1711, %v1736
        %v1762 = vmax.f32 %v1712, %v1737
        %v1763 = vmax.f32 %v1713, %v1738
        %v1764 = vmax.f32 %v1714, %v1739
        %v1765 = vmax.f32 %v1715, %v1740
        %v1766 = vmax.f32 %v1716, %v1741
        %v1767 = vmax.f32 %v1717, %v1742
        %v1768 = vmax.f32 %v1718, %v1743
        %v1769 = vmax.f32 %v1719, %v1744
        %v1770 = vmax.f32 %v1720, %v1745
        %v1771 = vmax.f32 %v1721, %v1746
        %v1772 = vmax.f32 %v1722, %v1747
        %v1773 = vmax.f32 %v1723, %v1748
        %v1774 = vmax.f32 %v1724, %v1749
        %v1775 = vmax.f32 %v1725, %v1750
        %v1776 = vmax.f32 %v1726, %v1751
        %v1777 = vmax.f32 %v1727, %v1752
        %v1778 = vmax.f32 %v1728, %v1753
        %v1779 = vmax.f32 %v1729, %v1754
        %v1780 = vmax.f32 %v1730, %v1755
        %v1781 = vmax.f32 %v1731, %v1756
        %v1782 = vmax.f32 %v1732, %v1757
        %v1783 = vld [vmem:[%s2] sm:$0x1]
        %v1785 = vlaneseq
        %v1786 = vshrl.u32 %v1785, 7
        %v1787 = vsub.s32 0, %v1786
        %v1788 = vrot.slane %v1783, %v1787
        %v1790 = vadd.f32 %v1758, %v1788
        %v1791 = vadd.f32 %v1759, %v1788
        %v1792 = vadd.f32 %v1760, %v1788
        %v1793 = vadd.f32 %v1761, %v1788
        %v1794 = vadd.f32 %v1762, %v1788
        %v1795 = vadd.f32 %v1763, %v1788
        %v1796 = vadd.f32 %v1764, %v1788
        %v1797 = vadd.f32 %v1765, %v1788
        %v1798 = vadd.f32 %v1766, %v1788
        %v1799 = vadd.f32 %v1767, %v1788
        %v1800 = vadd.f32 %v1768, %v1788
        %v1801 = vadd.f32 %v1769, %v1788
        %v1802 = vadd.f32 %v1770, %v1788
        %v1803 = vadd.f32 %v1771, %v1788
        %v1804 = vadd.f32 %v1772, %v1788
        %v1805 = vadd.f32 %v1773, %v1788
        %v1806 = vadd.f32 %v1774, %v1788
        %v1807 = vadd.f32 %v1775, %v1788
        %v1808 = vadd.f32 %v1776, %v1788
        %v1809 = vadd.f32 %v1777, %v1788
        %v1810 = vadd.f32 %v1778, %v1788
        %v1811 = vadd.f32 %v1779, %v1788
        %v1812 = vadd.f32 %v1780, %v1788
        %v1813 = vadd.f32 %v1781, %v1788
        %v1814 = vadd.f32 %v1782, %v1788
        %v1815 = vmax.f32 %v1790, 0.0
        %v1816 = vmax.f32 %v1791, 0.0
        %v1817 = vmax.f32 %v1792, 0.0
        %v1818 = vmax.f32 %v1793, 0.0
        %v1819 = vmax.f32 %v1794, 0.0
        %v1820 = vmax.f32 %v1795, 0.0
        %v1821 = vmax.f32 %v1796, 0.0
        %v1822 = vmax.f32 %v1797, 0.0
        %v1823 = vmax.f32 %v1798, 0.0
        %v1824 = vmax.f32 %v1799, 0.0
        %v1825 = vmax.f32 %v1800, 0.0
        %v1826 = vmax.f32 %v1801, 0.0
        %v1827 = vmax.f32 %v1802, 0.0
        %v1828 = vmax.f32 %v1803, 0.0
        %v1829 = vmax.f32 %v1804, 0.0
        %v1830 = vmax.f32 %v1805, 0.0
        %v1831 = vmax.f32 %v1806, 0.0
        %v1832 = vmax.f32 %v1807, 0.0
        %v1833 = vmax.f32 %v1808, 0.0
        %v1834 = vmax.f32 %v1809, 0.0
        %v1835 = vmax.f32 %v1810, 0.0
        %v1836 = vmax.f32 %v1811, 0.0
        %v1837 = vmax.f32 %v1812, 0.0
        %v1838 = vmax.f32 %v1813, 0.0
        %v1839 = vmax.f32 %v1814, 0.0
        %v1840 = vpack.c.bf16 %v1816, %v1815
        %v1841 = vpack.c.bf16 %v1818, %v1817
        %v1842 = vpack.c.bf16 %v1820, %v1819
        %v1843 = vpack.c.bf16 %v1822, %v1821
        %v1844 = vpack.c.bf16 %v1824, %v1823
        %v1845 = vpack.c.bf16 %v1826, %v1825
        %v1846 = vpack.c.bf16 %v1828, %v1827
        %v1847 = vpack.c.bf16 %v1830, %v1829
        %v1848 = vpack.c.bf16 %v1832, %v1831
        %v1849 = vpack.c.bf16 %v1834, %v1833
        %v1850 = vpack.c.bf16 %v1836, %v1835
        %v1851 = vpack.c.bf16 %v1838, %v1837
        %v1852 = vpack.c.bf16 %v1839, %v1839
        %v1866 = vunpack.c.l.b16 %v1840
        %v1867 = vunpack.c.h.b16 %v1840
        %v1868 = vunpack.c.l.b16 %v1841
        %v1869 = vunpack.c.h.b16 %v1841
        %v1870 = vunpack.c.l.b16 %v1842
        %v1871 = vunpack.c.h.b16 %v1842
        %v1872 = vunpack.c.l.b16 %v1843
        %v1873 = vunpack.c.h.b16 %v1843
        %v1874 = vunpack.c.l.b16 %v1844
        %v1875 = vunpack.c.h.b16 %v1844
        %v1876 = vunpack.c.l.b16 %v1845
        %v1877 = vunpack.c.h.b16 %v1845
        %v1878 = vunpack.c.l.b16 %v1846
        %v1879 = vunpack.c.h.b16 %v1846
        %v1880 = vunpack.c.l.b16 %v1847
        %v1881 = vunpack.c.h.b16 %v1847
        %v1882 = vunpack.c.l.b16 %v1848
        %v1883 = vunpack.c.h.b16 %v1848
        %v1884 = vunpack.c.l.b16 %v1849
        %v1885 = vunpack.c.h.b16 %v1849
        %v1886 = vunpack.c.l.b16 %v1850
        %v1887 = vunpack.c.h.b16 %v1850
        %v1888 = vunpack.c.l.b16 %v1851
        %v1889 = vunpack.c.h.b16 %v1851
        %v1890 = vunpack.c.l.b16 %v1852
        %v1891 = vpack.c.b16 %v1866, %v1866
        %v1892 = vpack.c.b16 %v1867, %v1867
        %v1893 = vpack.c.b16 %v1868, %v1868
        %v1894 = vpack.c.b16 %v1869, %v1869
        %v1895 = vpack.c.b16 %v1870, %v1870
        %v1896 = vpack.c.b16 %v1871, %v1871
        %v1897 = vpack.c.b16 %v1872, %v1872
        %v1898 = vpack.c.b16 %v1873, %v1873
        %v1899 = vpack.c.b16 %v1874, %v1874
        %v1900 = vpack.c.b16 %v1875, %v1875
        %v1901 = vpack.c.b16 %v1876, %v1876
        %v1902 = vpack.c.b16 %v1877, %v1877
        %v1903 = vpack.c.b16 %v1878, %v1878
        %v1904 = vpack.c.b16 %v1879, %v1879
        %v1905 = vpack.c.b16 %v1880, %v1880
        %v1906 = vpack.c.b16 %v1881, %v1881
        %v1907 = vpack.c.b16 %v1882, %v1882
        %v1908 = vpack.c.b16 %v1883, %v1883
        %v1909 = vpack.c.b16 %v1884, %v1884
        %v1910 = vpack.c.b16 %v1885, %v1885
        %v1911 = vpack.c.b16 %v1886, %v1886
        %v1912 = vpack.c.b16 %v1887, %v1887
        %v1913 = vpack.c.b16 %v1888, %v1888
        %v1914 = vpack.c.b16 %v1889, %v1889
        %v1915 = vpack.c.b16 %v1890, %v1890
        %1941 = vst [vmem:[%s609] sm:$0xf] %v1891
        %1942 = vst [vmem:[%s609 + $0x4] sm:$0xf] %v1892
        %1943 = vst [vmem:[%s609 + $0x8] sm:$0xf] %v1893
        %1944 = vst [vmem:[%s609 + $0xc] sm:$0xf] %v1894
        %1945 = vst [vmem:[%s609 + $0x10] sm:$0xf] %v1895
        %1946 = vst [vmem:[%s609 + $0x14] sm:$0xf] %v1896
        %1947 = vst [vmem:[%s609 + $0x18] sm:$0xf] %v1897
        %1948 = vst [vmem:[%s609 + $0x1c] sm:$0xf] %v1898
        %1949 = vst [vmem:[%s609 + $0x20] sm:$0xf] %v1899
        %1950 = vst [vmem:[%s609 + $0x24] sm:$0xf] %v1900
        %1951 = vst [vmem:[%s609 + $0x28] sm:$0xf] %v1901
        %1952 = vst [vmem:[%s609 + $0x2c] sm:$0xf] %v1902
        %1953 = vst [vmem:[%s609 + $0x30] sm:$0xf] %v1903
        %1954 = vst [vmem:[%s609 + $0x34] sm:$0xf] %v1904
        %1955 = vst [vmem:[%s609 + $0x38] sm:$0xf] %v1905
        %1956 = vst [vmem:[%s609 + $0x3c] sm:$0xf] %v1906
        %1957 = vst [vmem:[%s609 + $0x40] sm:$0xf] %v1907
        %1958 = vst [vmem:[%s609 + $0x44] sm:$0xf] %v1908
        %1959 = vst [vmem:[%s609 + $0x48] sm:$0xf] %v1909
        %1960 = vst [vmem:[%s609 + $0x4c] sm:$0xf] %v1910
        %1961 = vst [vmem:[%s609 + $0x50] sm:$0xf] %v1911
        %1962 = vst [vmem:[%s609 + $0x54] sm:$0xf] %v1912
        %1963 = vst [vmem:[%s609 + $0x58] sm:$0xf] %v1913
        %1964 = vst [vmem:[%s609 + $0x5c] sm:$0xf] %v1914
        %1965 = vst [vmem:[%s609 + $0x60] sm:$0xf] %v1915
        %s1966 = smul.u32 25, %s14
        %p1967 = scmp.lt.s32.totalorder %s1966, 49
        %s1968 = scalar_select %p1967, %s1966, 49
        %s1969 = smul.addr %s1968, 4
        %s1970 = scalar_lea.vmem %s3, %s1969
        // Predicated region
        $region74: #{basic_conv_net.3} parent=68 // pred_check
          %p1971 = pneg %p100
        $region75: #{basic_conv_net.3} parent=68 // pred_check_branch
          %1973 = sbr.rel (%p1971) target = $region77
        $region76: #{basic_conv_net.3} parent=68 // pred_region
          %s1974 = smul.u32 25, %s14
        $region77: #{basic_conv_net.3} parent=68 // pred_fallthru
          _
      $region69: #{basic_conv_net.3} parent=5 // pred_fallthru
        _
      %p1975 = scmp.le.s32.totalorder 2, %s9
      // Predicated region
      $region78: #{basic_conv_net.3} parent=5 // pred_check
        %p1976 = pneg %p1975
      $region79: #{basic_conv_net.3} parent=5 // pred_check_branch
        %1978 = sbr.rel (%p1976) target = $region81
      $region80: #{basic_conv_net.3} parent=5 // pred_region
        %s1979 = ssub.s32 %s9, 2
        // Predicated region
        $region82: #{basic_conv_net.3} parent=80 // pred_check
          %p1980 = pneg %p106
        $region83: #{basic_conv_net.3} parent=80 // pred_check_branch
          %1982 = sbr.rel (%p1980) target = $region85
        $region84: #{basic_conv_net.3} parent=80 // pred_region
          %s1983 = smul.u32 25, %s15
          %p1984 = scmp.lt.s32.totalorder %s1983, 49
          %s1985 = scalar_select %p1984, %s1983, 49
          %s1986 = smul.addr %s1985, 4
          %s1987 = scalar_lea.vmem %s3, %s1986
        $region85: #{basic_conv_net.3} parent=80 // pred_fallthru
          _
      $region81: #{basic_conv_net.3} parent=5 // pred_fallthru
        _
    $region6: #{basic_conv_net.3} parent=1 // loop_footer
      %s13 = sadd.s32 1, %s9
    $region7: #{basic_conv_net.3} parent=1 // loop_footer_branch
      %8 = sbr.rel target = $region3
    $region8: #{basic_conv_net.3} parent=1 // loop_exit
      _

// kernel: basic_conv_net.4
$region0: #{basic_conv_net.4}
  #allocation0 [shape = 'u32[]', space=smem, size = 0x4, offset = 0x4, fixed_abs, tag = 'smem constant byte address 0x4 - core index']
  #allocation1 [shape = 'u32[144,128]{1,0:T(1,128)}', space=vmem, size = 0x12000, scoped, tag = 'internal scratch']
  %s0 = inlined_call_operand.vmem [shape: bf16[4,64,160], index: 0, kind: input, shape index: {}]
  %s1 = inlined_call_operand.vmem [shape: bf16[160,128], index: 1, kind: input, shape index: {}]
  %s2 = inlined_call_operand.vmem [shape: f32[1,128], index: 2, kind: input, shape index: {}]
  %s3 = inlined_call_operand.vmem [shape: bf16[64,128], index: 3, kind: output, shape index: {}]
  %s4 = sld [smem:[#allocation0]]
  $region83: #{basic_conv_net.4} parent=0
    _
  %s6 = ssub.s32 1, %s4
  %s7 = scalar_select 0, %s6, %s4
  $region1: #{basic_conv_net.4} parent=0
    #allocation2 [shape = 'u8[131072]{0}', space=vmem, size = 0x20000, scoped, tag = 'input window, operand 0']
    loop: start=0, step=1, limit=4
    $region2: #{basic_conv_net.4} parent=1 // loop_pre_header
      _
    $region3: #{basic_conv_net.4} parent=1 // loop_header
      %s9 = sphi 0, %s13
      %p10 = scmp.ge.s32.totalorder %s9, 4
      %s19 = sphi 0, %s21
      %s22 = sphi 0, %s19
      %s23 = sphi 0, %s22
      %s39 = sphi 0, %s23
      %s43 = sphi 0, %s43
      %s45 = sphi 0, %s43
      %s46 = sphi 0, %s45
      %s60 = sphi 0, %s46
      %s64 = sphi 0, %s64
      %s66 = sphi 0, %s64
      %s67 = sphi 0, %s66
      %s81 = sphi 0, %s67
      %s87 = sphi 0, %s89
      %s90 = sphi 0, %s87
      %s91 = sphi 0, %s90
      %s107 = sphi 0, %s91
    $region4: #{basic_conv_net.4} parent=1 // loop_header_branch
      %12 = sbr.rel (%p10) target = $region8
    $region5: #{basic_conv_net.4} parent=1 // loop_body
      %s14 = ssub.s32 %s9, 1
      %s15 = ssub.s32 %s9, 2
      %s16 = sadd.s32 %s9, 1
      %s17 = ssub.s32 %s9, %s16
      %p18 = scmp.eq.s32.totalorder %s17, 0
      %s20 = sadd.s32 %s19, 1
      %s21 = scalar_select %p18, %s19, %s20
      %p24 = pneg %p18
      %p25 = scmp.eq.s32.totalorder %s9, 1
      %p26 = por %p24, %p25
      %p27 = scmp.ne.s32.totalorder %s19, %s22
      %p28 = scmp.eq.s32.totalorder %s9, 0
      %p29 = por %p27, %p28
      %p30 = scmp.ne.s32.totalorder %s19, %s22
      %p31 = scmp.eq.s32.totalorder %s14, 1
      %p32 = por %p30, %p31
      %p33 = scmp.ne.s32.totalorder %s22, %s23
      %p34 = scmp.eq.s32.totalorder %s14, 0
      %p35 = por %p33, %p34
      %p36 = scmp.ne.s32.totalorder %s22, %s23
      %p37 = scmp.eq.s32.totalorder %s15, 1
      %p38 = por %p36, %p37
      %p40 = scmp.ne.s32.totalorder %s23, %s39
      %p41 = scmp.eq.s32.totalorder %s15, 0
      %p42 = por %p40, %p41
      %s44 = sadd.s32 %s43, 1
      %p47 = scmp.eq.s32.totalorder %s9, 1
      %p48 = scmp.ne.s32.totalorder %s43, %s45
      %p49 = scmp.eq.s32.totalorder %s9, 0
      %p50 = por %p48, %p49
      %p51 = scmp.ne.s32.totalorder %s43, %s45
      %p52 = scmp.eq.s32.totalorder %s14, 1
      %p53 = por %p51, %p52
      %p54 = scmp.ne.s32.totalorder %s45, %s46
      %p55 = scmp.eq.s32.totalorder %s14, 0
      %p56 = por %p54, %p55
      %p57 = scmp.ne.s32.totalorder %s45, %s46
      %p58 = scmp.eq.s32.totalorder %s15, 1
      %p59 = por %p57, %p58
      %p61 = scmp.ne.s32.totalorder %s46, %s60
      %p62 = scmp.eq.s32.totalorder %s15, 0
      %p63 = por %p61, %p62
      %s65 = sadd.s32 %s64, 1
      %p68 = scmp.eq.s32.totalorder %s9, 1
      %p69 = scmp.ne.s32.totalorder %s64, %s66
      %p70 = scmp.eq.s32.totalorder %s9, 0
      %p71 = por %p69, %p70
      %p72 = scmp.ne.s32.totalorder %s64, %s66
      %p73 = scmp.eq.s32.totalorder %s14, 1
      %p74 = por %p72, %p73
      %p75 = scmp.ne.s32.totalorder %s66, %s67
      %p76 = scmp.eq.s32.totalorder %s14, 0
      %p77 = por %p75, %p76
      %p78 = scmp.ne.s32.totalorder %s66, %s67
      %p79 = scmp.eq.s32.totalorder %s15, 1
      %p80 = por %p78, %p79
      %p82 = scmp.ne.s32.totalorder %s67, %s81
      %p83 = scmp.eq.s32.totalorder %s15, 0
      %p84 = por %p82, %p83
      %s85 = ssub.s32 %s9, %s16
      %p86 = scmp.eq.s32.totalorder %s85, 0
      %s88 = sadd.s32 %s87, 1
      %s89 = scalar_select %p86, %s87, %s88
      %p92 = pneg %p86
      %p93 = scmp.eq.s32.totalorder %s9, 1
      %p94 = por %p92, %p93
      %p95 = scmp.ne.s32.totalorder %s87, %s90
      %p96 = scmp.eq.s32.totalorder %s9, 0
      %p97 = por %p95, %p96
      %p98 = scmp.ne.s32.totalorder %s87, %s90
      %p99 = scmp.eq.s32.totalorder %s14, 1
      %p100 = por %p98, %p99
      %p101 = scmp.ne.s32.totalorder %s90, %s91
      %p102 = scmp.eq.s32.totalorder %s14, 0
      %p103 = por %p101, %p102
      %p104 = scmp.ne.s32.totalorder %s90, %s91
      %p105 = scmp.eq.s32.totalorder %s15, 1
      %p106 = por %p104, %p105
      %p108 = scmp.ne.s32.totalorder %s91, %s107
      %p109 = scmp.eq.s32.totalorder %s15, 0
      %p110 = por %p108, %p109
      %p111 = scmp.le.s32.totalorder 1, %s9
      %p112 = scmp.lt.s32.totalorder %s9, 3
      %p113 = pnand %p111, %p112
      %p114 = pneg %p113
      // Predicated region
      $region9: #{basic_conv_net.4} parent=5 // pred_check
        _
      $region10: #{basic_conv_net.4} parent=5 // pred_check_branch
        %116 = sbr.rel (%p113) target = $region12
      $region11: #{basic_conv_net.4} parent=5 // pred_region
        %s117 = ssub.s32 %s9, 1
        // Predicated region
        $region13: #{basic_conv_net.4} parent=11 // pred_check
          %p118 = pneg %p56
        $region14: #{basic_conv_net.4} parent=11 // pred_check_branch
          %120 = sbr.rel (%p118) target = $region16
        $region15: #{basic_conv_net.4} parent=11 // pred_region
          _
        $region16: #{basic_conv_net.4} parent=11 // pred_fallthru
          _
        // Predicated region
        $region17: #{basic_conv_net.4} parent=11 // pred_check
          %p121 = pneg %p77
        $region18: #{basic_conv_net.4} parent=11 // pred_check_branch
          %123 = sbr.rel (%p121) target = $region20
        $region19: #{basic_conv_net.4} parent=11 // pred_region
          _
        $region20: #{basic_conv_net.4} parent=11 // pred_fallthru
          _
      $region12: #{basic_conv_net.4} parent=5 // pred_fallthru
        _
      %p124 = scmp.lt.s32.totalorder %s9, 2
      // Predicated region
      $region21: #{basic_conv_net.4} parent=5 // pred_check
        %p125 = pneg %p124
      $region22: #{basic_conv_net.4} parent=5 // pred_check_branch
        %127 = sbr.rel (%p125) target = $region24
      $region23: #{basic_conv_net.4} parent=5 // pred_region
        // Predicated region
        $region25: #{basic_conv_net.4} parent=23 // pred_check
          %p128 = pneg %p29
        $region26: #{basic_conv_net.4} parent=23 // pred_check_branch
          %130 = sbr.rel (%p128) target = $region28
        $region27: #{basic_conv_net.4} parent=23 // pred_region
          %s131 = sand.u32 %s19, 1
          %s132 = sand.u32 %s19, 1
          %s133 = smul.addr %s132, 128
          %s134 = scalar_lea.vmem [#allocation2], %s133
          %s135 = smul.u32 4, %s9
          %s136 = smul.addr %s135, 2
          %s137 = smul.addr %s136, 4
          %s138 = scalar_lea.vmem %s0, %s137
          // Predicated region
          $region29: #{basic_conv_net.4} parent=27 // pred_check
            _
          $region30: #{basic_conv_net.4} parent=27 // pred_check_branch
            %140 = sbr.rel (0) target = $region32
          $region31: #{basic_conv_net.4} parent=27 // pred_region
            // Predicated region
            $region33: #{basic_conv_net.4} parent=31 // pred_check
              _
            $region34: #{basic_conv_net.4} parent=31 // pred_check_branch
              %142 = sbr.rel (0) target = $region36
            $region35: #{basic_conv_net.4} parent=31 // pred_region
              // Predicated region
              $region48: #{basic_conv_net.4} parent=35 // pred_check
                _
              $region49: #{basic_conv_net.4} parent=35 // pred_check_branch
                %187 = sbr.rel (0) target = $region51
              $region50: #{basic_conv_net.4} parent=35 // pred_region
                loop: start=0, step=1, limit=1
                $region52: #{basic_conv_net.4} parent=50 // loop_pre_header
                  _
                $region53: #{basic_conv_net.4} parent=50 // loop_header
                  %s189 = sphi 0, %s193
                  %p190 = scmp.ge.s32.totalorder %s189, 1
                  %s194 = sphi %s138, %s138
                  %s195 = sphi %s134, %s134
                $region54: #{basic_conv_net.4} parent=50 // loop_header_branch
                  %192 = sbr.rel (%p190) target = $region58
                $region55: #{basic_conv_net.4} parent=50 // loop_body
                  %v196 = vld [vmem:[%s194] sm:$0xff]
                  %197 = vst [vmem:[%s195] sm:$0xff] %v196
                  %v198 = vld [vmem:[%s194 + $0x8] sm:$0xff]
                  %199 = vst [vmem:[%s195 + $0x8] sm:$0xff] %v198
                  %v200 = vld [vmem:[%s194 + $0x10] sm:$0xff]
                  %201 = vst [vmem:[%s195 + $0x10] sm:$0xff] %v200
                  %v202 = vld [vmem:[%s194 + $0x18] sm:$0xff]
                  %203 = vst [vmem:[%s195 + $0x18] sm:$0xff] %v202
                  %v204 = vld [vmem:[%s194 + $0x40] sm:$0xff]
                  %205 = vst [vmem:[%s195 + $0x20] sm:$0xff] %v204
                  %v206 = vld [vmem:[%s194 + $0x48] sm:$0xff]
                  %207 = vst [vmem:[%s195 + $0x28] sm:$0xff] %v206
                  %v208 = vld [vmem:[%s194 + $0x50] sm:$0xff]
                  %209 = vst [vmem:[%s195 + $0x30] sm:$0xff] %v208
                  %v210 = vld [vmem:[%s194 + $0x58] sm:$0xff]
                  %211 = vst [vmem:[%s195 + $0x38] sm:$0xff] %v210
                  %v212 = vld [vmem:[%s194 + $0x80] sm:$0xff]
                  %213 = vst [vmem:[%s195 + $0x40] sm:$0xff] %v212
                  %v214 = vld [vmem:[%s194 + $0x88] sm:$0xff]
                  %215 = vst [vmem:[%s195 + $0x48] sm:$0xff] %v214
                  %v216 = vld [vmem:[%s194 + $0x90] sm:$0xff]
                  %217 = vst [vmem:[%s195 + $0x50] sm:$0xff] %v216
                  %v218 = vld [vmem:[%s194 + $0x98] sm:$0xff]
                  %219 = vst [vmem:[%s195 + $0x58] sm:$0xff] %v218
                  %v220 = vld [vmem:[%s194 + $0xc0] sm:$0xff]
                  %221 = vst [vmem:[%s195 + $0x60] sm:$0xff] %v220
                  %v222 = vld [vmem:[%s194 + $0xc8] sm:$0xff]
                  %223 = vst [vmem:[%s195 + $0x68] sm:$0xff] %v222
                  %v224 = vld [vmem:[%s194 + $0xd0] sm:$0xff]
                  %225 = vst [vmem:[%s195 + $0x70] sm:$0xff] %v224
                  %v226 = vld [vmem:[%s194 + $0xd8] sm:$0xff]
                  %227 = vst [vmem:[%s195 + $0x78] sm:$0xff] %v226
                $region56: #{basic_conv_net.4} parent=50 // loop_footer
                  %s193 = sadd.s32 1, %s189
                $region57: #{basic_conv_net.4} parent=50 // loop_footer_branch
                  %188 = sbr.rel target = $region53
                $region58: #{basic_conv_net.4} parent=50 // loop_exit
                  _
              $region51: #{basic_conv_net.4} parent=35 // pred_fallthru
                _
              // Predicated region
              $region59: #{basic_conv_net.4} parent=35 // pred_check
                _
              $region60: #{basic_conv_net.4} parent=35 // pred_check_branch
                %229 = sbr.rel target = $region62
              $region61: #{basic_conv_net.4} parent=35 // pred_region
                _
              $region62: #{basic_conv_net.4} parent=35 // pred_fallthru
                _
            $region36: #{basic_conv_net.4} parent=31 // pred_fallthru
              _
            // Predicated region
            $region37: #{basic_conv_net.4} parent=31 // pred_check
              _
            $region38: #{basic_conv_net.4} parent=31 // pred_check_branch
              %144 = sbr.rel target = $region40
            $region39: #{basic_conv_net.4} parent=31 // pred_region
              loop: start=0, step=1, limit=1
              $region41: #{basic_conv_net.4} parent=39 // loop_pre_header
                _
              $region42: #{basic_conv_net.4} parent=39 // loop_header
                %s147 = sphi 0, %s151
                %p148 = scmp.ge.s32.totalorder %s147, 1
                %s152 = sphi %s138, %s138
                %s153 = sphi %s134, %s134
              $region43: #{basic_conv_net.4} parent=39 // loop_header_branch
                %150 = sbr.rel (%p148) target = $region47
              $region44: #{basic_conv_net.4} parent=39 // loop_body
                %v154 = vld [vmem:[%s152] sm:$0xff]
                %155 = vst [vmem:[%s153] sm:$0xff] %v154
                %v156 = vld [vmem:[%s152 + $0x8] sm:$0xff]
                %157 = vst [vmem:[%s153 + $0x8] sm:$0xff] %v156
                %v158 = vld [vmem:[%s152 + $0x10] sm:$0xff]
                %159 = vst [vmem:[%s153 + $0x10] sm:$0xff] %v158
                %v160 = vld [vmem:[%s152 + $0x18] sm:$0xff]
                %161 = vst [vmem:[%s153 + $0x18] sm:$0xff] %v160
                %v162 = vld [vmem:[%s152 + $0x40] sm:$0xff]
                %163 = vst [vmem:[%s153 + $0x20] sm:$0xff] %v162
                %v164 = vld [vmem:[%s152 + $0x48] sm:$0xff]
                %165 = vst [vmem:[%s153 + $0x28] sm:$0xff] %v164
                %v166 = vld [vmem:[%s152 + $0x50] sm:$0xff]
                %167 = vst [vmem:[%s153 + $0x30] sm:$0xff] %v166
                %v168 = vld [vmem:[%s152 + $0x58] sm:$0xff]
                %169 = vst [vmem:[%s153 + $0x38] sm:$0xff] %v168
                %v170 = vld [vmem:[%s152 + $0x80] sm:$0xff]
                %171 = vst [vmem:[%s153 + $0x40] sm:$0xff] %v170
                %v172 = vld [vmem:[%s152 + $0x88] sm:$0xff]
                %173 = vst [vmem:[%s153 + $0x48] sm:$0xff] %v172
                %v174 = vld [vmem:[%s152 + $0x90] sm:$0xff]
                %175 = vst [vmem:[%s153 + $0x50] sm:$0xff] %v174
                %v176 = vld [vmem:[%s152 + $0x98] sm:$0xff]
                %177 = vst [vmem:[%s153 + $0x58] sm:$0xff] %v176
                %v178 = vld [vmem:[%s152 + $0xc0] sm:$0xff]
                %179 = vst [vmem:[%s153 + $0x60] sm:$0xff] %v178
                %v180 = vld [vmem:[%s152 + $0xc8] sm:$0xff]
                %181 = vst [vmem:[%s153 + $0x68] sm:$0xff] %v180
                %v182 = vld [vmem:[%s152 + $0xd0] sm:$0xff]
                %183 = vst [vmem:[%s153 + $0x70] sm:$0xff] %v182
                %v184 = vld [vmem:[%s152 + $0xd8] sm:$0xff]
                %185 = vst [vmem:[%s153 + $0x78] sm:$0xff] %v184
              $region45: #{basic_conv_net.4} parent=39 // loop_footer
                %s151 = sadd.s32 1, %s147
              $region46: #{basic_conv_net.4} parent=39 // loop_footer_branch
                %146 = sbr.rel target = $region42
              $region47: #{basic_conv_net.4} parent=39 // loop_exit
                _
            $region40: #{basic_conv_net.4} parent=31 // pred_fallthru
              _
          $region32: #{basic_conv_net.4} parent=27 // pred_fallthru
            _
          %230 = vnop
        $region28: #{basic_conv_net.4} parent=23 // pred_fallthru
          _
      $region24: #{basic_conv_net.4} parent=5 // pred_fallthru
        _
      %p231 = scmp.le.s32.totalorder 1, %s9
      %p232 = scmp.lt.s32.totalorder %s9, 3
      %p233 = pnand %p231, %p232
      %p234 = pneg %p233
      // Predicated region
      $region63: #{basic_conv_net.4} parent=5 // pred_check
        _
      $region64: #{basic_conv_net.4} parent=5 // pred_check_branch
        %236 = sbr.rel (%p233) target = $region66
      $region65: #{basic_conv_net.4} parent=5 // pred_region
        %s237 = ssub.s32 %s9, 1
        %s238 = sand.u32 %s22, 1
        %s239 = sand.u32 %s22, 1
        %s240 = smul.addr %s239, 128
        %s241 = scalar_lea.vmem [#allocation2], %s240
        // Predicated region
        $region67: #{basic_conv_net.4} parent=65 // pred_check
          %p242 = pneg %p35
        $region68: #{basic_conv_net.4} parent=65 // pred_check_branch
          %244 = sbr.rel (%p242) target = $region70
        $region69: #{basic_conv_net.4} parent=65 // pred_region
          _
        $region70: #{basic_conv_net.4} parent=65 // pred_fallthru
          _
        %s245 = sand.u32 %s22, 1
        %s246 = sand.u32 %s22, 1
        %s247 = smul.addr %s246, 128
        %s248 = scalar_lea.vmem [#allocation2], %s247
        %p249 = pneg %p35
        %p250 = pneg %p32
        %p251 = pneg %p56
        %p252 = pneg %p53
        %p253 = pneg %p77
        %p254 = pneg %p74
        %p255 = pneg %p103
        %p256 = pneg %p100
        %s257 = smul.u32 4, %s14
        %p258 = scmp.lt.s32.totalorder %s257, 7
        %s259 = scalar_select %p258, %s257, 7
        %s260 = smul.addr %s259, 4
        %s261 = scalar_lea.vmem %s3, %s260
        %s262 = smul.u32 4, %s14
        %s263 = smul.u32 4, %s14
        %p264 = scmp.lt.s32.totalorder %s263, 7
        %s265 = scalar_select %p264, %s263, 7
        %s266 = smul.addr %s265, 4
        %s267 = scalar_lea.vmem %s3, %s266
        %s268 = smul.u32 4, %s14
        %v270 = vld [vmem:[%s241] sm:$0xff]
        %v271 = vld [vmem:[%s241 + $0x8] sm:$0xff]
        %v272 = vld [vmem:[%s241 + $0x10] sm:$0xff]
        %v273 = vld [vmem:[%s241 + $0x18] sm:$0xff]
        %v274 = vld [vmem:[%s1] sm:$0xf]
        %v275 = vld [vmem:[%s1 + $0x4] sm:$0xf]
        %v276 = vld [vmem:[%s1 + $0x8] sm:$0xf]
        %v277 = vld [vmem:[%s1 + $0xc] sm:$0xf]
        %v278 = vld [vmem:[%s1 + $0x10] sm:$0xf]
        %v279 = vld [vmem:[%s1 + $0x14] sm:$0xf]
        %v280 = vld [vmem:[%s1 + $0x18] sm:$0xf]
        %v281 = vld [vmem:[%s1 + $0x1c] sm:$0xf]
        %v282 = vld [vmem:[%s1 + $0x20] sm:$0xf]
        %v283 = vld [vmem:[%s1 + $0x24] sm:$0xf]
        %v284 = vld [vmem:[%s1 + $0x28] sm:$0xf]
        %v285 = vld [vmem:[%s1 + $0x2c] sm:$0xf]
        %v286 = vld [vmem:[%s1 + $0x30] sm:$0xf]
        %v287 = vld [vmem:[%s1 + $0x34] sm:$0xf]
        %v288 = vld [vmem:[%s1 + $0x38] sm:$0xf]
        %v289 = vld [vmem:[%s1 + $0x3c] sm:$0xf]
        %v290 = vld [vmem:[%s1 + $0x40] sm:$0xf]
        %v291 = vld [vmem:[%s1 + $0x44] sm:$0xf]
        %v292 = vld [vmem:[%s1 + $0x48] sm:$0xf]
        %v293 = vld [vmem:[%s1 + $0x4c] sm:$0xf]
        %v298 = vunpack.c.l.b16 %v270
        %v299 = vunpack.c.h.b16 %v270
        %v300 = vunpack.c.l.b16 %v271
        %v301 = vunpack.c.h.b16 %v271
        %v302 = vunpack.c.l.b16 %v272
        %v303 = vunpack.c.h.b16 %v272
        %v304 = vunpack.c.l.b16 %v273
        %v305 = vunpack.c.h.b16 %v273
        %v306 = vpack.c.b16 %v300, %v298
        %v307 = vpack.c.b16 %v301, %v299
        %v308 = vpack.c.b16 %v304, %v302
        %v309 = vpack.c.b16 %v305, %v303
        %v332 = vunpack.c.l.b16 %v274
        %v333 = vunpack.c.l.b16 %v275
        %v334 = vunpack.c.l.b16 %v276
        %v335 = vunpack.c.l.b16 %v277
        %v336 = vunpack.c.l.b16 %v278
        %v337 = vunpack.c.l.b16 %v279
        %v338 = vunpack.c.l.b16 %v280
        %v339 = vunpack.c.l.b16 %v281
        %v340 = vunpack.c.l.b16 %v282
        %v341 = vunpack.c.l.b16 %v283
        %v342 = vunpack.c.l.b16 %v284
        %v343 = vunpack.c.l.b16 %v285
        %v344 = vunpack.c.l.b16 %v286
        %v345 = vunpack.c.l.b16 %v287
        %v346 = vunpack.c.l.b16 %v288
        %v347 = vunpack.c.l.b16 %v289
        %v348 = vunpack.c.l.b16 %v290
        %v349 = vunpack.c.l.b16 %v291
        %v350 = vunpack.c.l.b16 %v292
        %v351 = vunpack.c.l.b16 %v293
        %v352 = vpack.c.b16 %v333, %v332
        %v353 = vpack.c.b16 %v335, %v334
        %v354 = vpack.c.b16 %v337, %v336
        %v355 = vpack.c.b16 %v339, %v338
        %v356 = vpack.c.b16 %v341, %v340
        %v357 = vpack.c.b16 %v343, %v342
        %v358 = vpack.c.b16 %v345, %v344
        %v359 = vpack.c.b16 %v347, %v346
        %v360 = vpack.c.b16 %v349, %v348
        %v361 = vpack.c.b16 %v351, %v350
        %vm372 = vcmask 261120
        %v374 = vsel %vm372, %v307, 0
        %v377 = vsel %vm372, %v309, 0
        %379 = vmatprep.subr.bf16.mxu0 0
        %380 = vmatpush1.bf16.msra.mxu0 %v352
        %381 = vmatprep.subr.bf16.mxu0 0
        %382 = vmatpush1.bf16.msra.mxu0 %v353
        %383 = vmatprep.subr.bf16.mxu0 0
        %384 = vmatpush1.bf16.msra.mxu0 %v354
        %385 = vmatprep.subr.bf16.mxu0 0
        %386 = vmatpush1.bf16.msra.mxu0 %v355
        %387 = vmatprep.subr.bf16.mxu0 0
        %388 = vmatpush1.bf16.msra.mxu0 %v356
        %389 = vmatprep.subr.bf16.mxu0 0
        %390 = vmatpush1.bf16.msra.mxu0 %v357
        %391 = vmatprep.subr.bf16.mxu0 0
        %392 = vmatpush1.bf16.msra.mxu0 %v358
        %393 = vmatprep.subr.bf16.mxu0 0
        %394 = vmatpush1.bf16.msra.mxu0 %v359
        %395 = vmatprep.subr.bf16.mxu0 0
        %396 = vmatpush1.bf16.msra.mxu0 %v360
        %397 = vmatprep.subr.bf16.mxu0 0
        %398 = vmatpush1.bf16.msra.mxu0 %v361
        %399 = vmatprep.subr.bf16.mxu0 0
        %400 = vmatpush1.bf16.msra.mxu0 0
        %401 = vmatprep.subr.bf16.mxu0 0
        %402 = vmatpush1.bf16.msra.mxu0 0
        %403 = vmatprep.subr.bf16.mxu0 0
        %404 = vmatpush1.bf16.msra.mxu0 0
        %405 = vmatprep.subr.bf16.mxu0 0
        %406 = vmatpush1.bf16.msra.mxu0 0
        %407 = vmatprep.subr.bf16.mxu0 0
        %408 = vmatpush1.bf16.msra.mxu0 0
        %409 = vmatprep.subr.bf16.mxu0 0
        %410 = vmatpush1.bf16.msra.mxu0 0
        %411 = vmatprep.mubr.bf16.mxu0 %v374
        %412 = vmatmul.mubr.bf16.gmra.mrb[0].mxu0 %v306
        %v413 = vpop.f32.mrb[0].mxu0
        %v414 = vadd.f32 0.0, %v413
        %v415 = vpop.f32.mrb[0].mxu0
        %v416 = vpop.f32.mrb[0].mxu0
        %v417 = vadd.f32 0.0, %v416
        %v418 = vpop.f32.mrb[0].mxu0
        %419 = vmatprep.mubr.bf16.mxu0 %v377
        %420 = vmatmul.mubr.bf16.gmra.mrb[0].mxu0 %v308
        %v421 = vpop.f32.mrb[0].mxu0
        %v422 = vadd.f32 0.0, %v421
        %v423 = vpop.f32.mrb[0].mxu0
        %v424 = vpop.f32.mrb[0].mxu0
        %v425 = vadd.f32 0.0, %v424
        %v426 = vpop.f32.mrb[0].mxu0
        %427 = vdwg.mxu0
        %s428 = scalar_lea.vmem %s241, 32 [#allocation2]
        %v429 = vld [vmem:[%s428] sm:$0xff]
        %v430 = vld [vmem:[%s428 + $0x8] sm:$0xff]
        %v431 = vld [vmem:[%s428 + $0x10] sm:$0xff]
        %v432 = vld [vmem:[%s428 + $0x18] sm:$0xff]
        %v437 = vunpack.c.l.b16 %v429
        %v438 = vunpack.c.h.b16 %v429
        %v439 = vunpack.c.l.b16 %v430
        %v440 = vunpack.c.h.b16 %v430
        %v441 = vunpack.c.l.b16 %v431
        %v442 = vunpack.c.h.b16 %v431
        %v443 = vunpack.c.l.b16 %v432
        %v444 = vunpack.c.h.b16 %v432
        %v445 = vpack.c.b16 %v439, %v437
        %v446 = vpack.c.b16 %v440, %v438
        %v447 = vpack.c.b16 %v443, %v441
        %v448 = vpack.c.b16 %v444, %v442
        %v452 = vsel %vm372, %v446, 0
        %v455 = vsel %vm372, %v448, 0
        %457 = vmatprep.subr.bf16.mxu0 0
        %458 = vmatpush1.bf16.msra.mxu0 %v352
        %459 = vmatprep.subr.bf16.mxu0 0
        %460 = vmatpush1.bf16.msra.mxu0 %v353
        %461 = vmatprep.subr.bf16.mxu0 0
        %462 = vmatpush1.bf16.msra.mxu0 %v354
        %463 = vmatprep.subr.bf16.mxu0 0
        %464 = vmatpush1.bf16.msra.mxu0 %v355
        %465 = vmatprep.subr.bf16.mxu0 0
        %466 = vmatpush1.bf16.msra.mxu0 %v356
        %467 = vmatprep.subr.bf16.mxu0 0
        %468 = vmatpush1.bf16.msra.mxu0 %v357
        %469 = vmatprep.subr.bf16.mxu0 0
        %470 = vmatpush1.bf16.msra.mxu0 %v358
        %471 = vmatprep.subr.bf16.mxu0 0
        %472 = vmatpush1.bf16.msra.mxu0 %v359
        %473 = vmatprep.subr.bf16.mxu0 0
        %474 = vmatpush1.bf16.msra.mxu0 %v360
        %475 = vmatprep.subr.bf16.mxu0 0
        %476 = vmatpush1.bf16.msra.mxu0 %v361
        %477 = vmatprep.subr.bf16.mxu0 0
        %478 = vmatpush1.bf16.msra.mxu0 0
        %479 = vmatprep.subr.bf16.mxu0 0
        %480 = vmatpush1.bf16.msra.mxu0 0
        %481 = vmatprep.subr.bf16.mxu0 0
        %482 = vmatpush1.bf16.msra.mxu0 0
        %483 = vmatprep.subr.bf16.mxu0 0
        %484 = vmatpush1.bf16.msra.mxu0 0
        %485 = vmatprep.subr.bf16.mxu0 0
        %486 = vmatpush1.bf16.msra.mxu0 0
        %487 = vmatprep.subr.bf16.mxu0 0
        %488 = vmatpush1.bf16.msra.mxu0 0
        %489 = vmatprep.mubr.bf16.mxu0 %v452
        %490 = vmatmul.mubr.bf16.gmra.mrb[0].mxu0 %v445
        %v491 = vpop.f32.mrb[0].mxu0
        %v492 = vadd.f32 0.0, %v491
        %v493 = vpop.f32.mrb[0].mxu0
        %v494 = vpop.f32.mrb[0].mxu0
        %v495 = vadd.f32 0.0, %v494
        %v496 = vpop.f32.mrb[0].mxu0
        %497 = vmatprep.mubr.bf16.mxu0 %v455
        %498 = vmatmul.mubr.bf16.gmra.mrb[0].mxu0 %v447
        %v499 = vpop.f32.mrb[0].mxu0
        %v500 = vadd.f32 0.0, %v499
        %v501 = vpop.f32.mrb[0].mxu0
        %v502 = vpop.f32.mrb[0].mxu0
        %v503 = vadd.f32 0.0, %v502
        %v504 = vpop.f32.mrb[0].mxu0
        %505 = vdwg.mxu0
        %s506 = scalar_lea.vmem %s241, 64 [#allocation2]
        %v507 = vld [vmem:[%s506] sm:$0xff]
        %v508 = vld [vmem:[%s506 + $0x8] sm:$0xff]
        %v509 = vld [vmem:[%s506 + $0x10] sm:$0xff]
        %v510 = vld [vmem:[%s506 + $0x18] sm:$0xff]
        %v515 = vunpack.c.l.b16 %v507
        %v516 = vunpack.c.h.b16 %v507
        %v517 = vunpack.c.l.b16 %v508
        %v518 = vunpack.c.h.b16 %v508
        %v519 = vunpack.c.l.b16 %v509
        %v520 = vunpack.c.h.b16 %v509
        %v521 = vunpack.c.l.b16 %v510
        %v522 = vunpack.c.h.b16 %v510
        %v523 = vpack.c.b16 %v517, %v515
        %v524 = vpack.c.b16 %v518, %v516
        %v525 = vpack.c.b16 %v521, %v519
        %v526 = vpack.c.b16 %v522, %v520
        %v530 = vsel %vm372, %v524, 0
        %v533 = vsel %vm372, %v526, 0
        %535 = vmatprep.subr.bf16.mxu0 0
        %536 = vmatpush1.bf16.msra.mxu0 %v352
        %537 = vmatprep.subr.bf16.mxu0 0
        %538 = vmatpush1.bf16.msra.mxu0 %v353
        %539 = vmatprep.subr.bf16.mxu0 0
        %540 = vmatpush1.bf16.msra.mxu0 %v354
        %541 = vmatprep.subr.bf16.mxu0 0
        %542 = vmatpush1.bf16.msra.mxu0 %v355
        %543 = vmatprep.subr.bf16.mxu0 0
        %544 = vmatpush1.bf16.msra.mxu0 %v356
        %545 = vmatprep.subr.bf16.mxu0 0
        %546 = vmatpush1.bf16.msra.mxu0 %v357
        %547 = vmatprep.subr.bf16.mxu0 0
        %548 = vmatpush1.bf16.msra.mxu0 %v358
        %549 = vmatprep.subr.bf16.mxu0 0
        %550 = vmatpush1.bf16.msra.mxu0 %v359
        %551 = vmatprep.subr.bf16.mxu0 0
        %552 = vmatpush1.bf16.msra.mxu0 %v360
        %553 = vmatprep.subr.bf16.mxu0 0
        %554 = vmatpush1.bf16.msra.mxu0 %v361
        %555 = vmatprep.subr.bf16.mxu0 0
        %556 = vmatpush1.bf16.msra.mxu0 0
        %557 = vmatprep.subr.bf16.mxu0 0
        %558 = vmatpush1.bf16.msra.mxu0 0
        %559 = vmatprep.subr.bf16.mxu0 0
        %560 = vmatpush1.bf16.msra.mxu0 0
        %561 = vmatprep.subr.bf16.mxu0 0
        %562 = vmatpush1.bf16.msra.mxu0 0
        %563 = vmatprep.subr.bf16.mxu0 0
        %564 = vmatpush1.bf16.msra.mxu0 0
        %565 = vmatprep.subr.bf16.mxu0 0
        %566 = vmatpush1.bf16.msra.mxu0 0
        %567 = vmatprep.mubr.bf16.mxu0 %v530
        %568 = vmatmul.mubr.bf16.gmra.mrb[0].mxu0 %v523
        %v569 = vpop.f32.mrb[0].mxu0
        %v570 = vadd.f32 0.0, %v569
        %v571 = vpop.f32.mrb[0].mxu0
        %v572 = vpop.f32.mrb[0].mxu0
        %v573 = vadd.f32 0.0, %v572
        %v574 = vpop.f32.mrb[0].mxu0
        %575 = vmatprep.mubr.bf16.mxu0 %v533
        %576 = vmatmul.mubr.bf16.gmra.mrb[0].mxu0 %v525
        %v577 = vpop.f32.mrb[0].mxu0
        %v578 = vadd.f32 0.0, %v577
        %v579 = vpop.f32.mrb[0].mxu0
        %v580 = vpop.f32.mrb[0].mxu0
        %v581 = vadd.f32 0.0, %v580
        %v582 = vpop.f32.mrb[0].mxu0
        %583 = vdwg.mxu0
        %s584 = scalar_lea.vmem %s241, 96 [#allocation2]
        %v585 = vld [vmem:[%s584] sm:$0xff]
        %v586 = vld [vmem:[%s584 + $0x8] sm:$0xff]
        %v587 = vld [vmem:[%s584 + $0x10] sm:$0xff]
        %v588 = vld [vmem:[%s584 + $0x18] sm:$0xff]
        %v593 = vunpack.c.l.b16 %v585
        %v594 = vunpack.c.h.b16 %v585
        %v595 = vunpack.c.l.b16 %v586
        %v596 = vunpack.c.h.b16 %v586
        %v597 = vunpack.c.l.b16 %v587
        %v598 = vunpack.c.h.b16 %v587
        %v599 = vunpack.c.l.b16 %v588
        %v600 = vunpack.c.h.b16 %v588
        %v601 = vpack.c.b16 %v595, %v593
        %v602 = vpack.c.b16 %v596, %v594
        %v603 = vpack.c.b16 %v599, %v597
        %v604 = vpack.c.b16 %v600, %v598
        %v608 = vsel %vm372, %v602, 0
        %v611 = vsel %vm372, %v604, 0
        %613 = vmatprep.subr.bf16.mxu0 0
        %614 = vmatpush1.bf16.msra.mxu0 %v352
        %615 = vmatprep.subr.bf16.mxu0 0
        %616 = vmatpush1.bf16.msra.mxu0 %v353
        %617 = vmatprep.subr.bf16.mxu0 0
        %618 = vmatpush1.bf16.msra.mxu0 %v354
        %619 = vmatprep.subr.bf16.mxu0 0
        %620 = vmatpush1.bf16.msra.mxu0 %v355
        %621 = vmatprep.subr.bf16.mxu0 0
        %622 = vmatpush1.bf16.msra.mxu0 %v356
        %623 = vmatprep.subr.bf16.mxu0 0
        %624 = vmatpush1.bf16.msra.mxu0 %v357
        %625 = vmatprep.subr.bf16.mxu0 0
        %626 = vmatpush1.bf16.msra.mxu0 %v358
        %627 = vmatprep.subr.bf16.mxu0 0
        %628 = vmatpush1.bf16.msra.mxu0 %v359
        %629 = vmatprep.subr.bf16.mxu0 0
        %630 = vmatpush1.bf16.msra.mxu0 %v360
        %631 = vmatprep.subr.bf16.mxu0 0
        %632 = vmatpush1.bf16.msra.mxu0 %v361
        %633 = vmatprep.subr.bf16.mxu0 0
        %634 = vmatpush1.bf16.msra.mxu0 0
        %635 = vmatprep.subr.bf16.mxu0 0
        %636 = vmatpush1.bf16.msra.mxu0 0
        %637 = vmatprep.subr.bf16.mxu0 0
        %638 = vmatpush1.bf16.msra.mxu0 0
        %639 = vmatprep.subr.bf16.mxu0 0
        %640 = vmatpush1.bf16.msra.mxu0 0
        %641 = vmatprep.subr.bf16.mxu0 0
        %642 = vmatpush1.bf16.msra.mxu0 0
        %643 = vmatprep.subr.bf16.mxu0 0
        %644 = vmatpush1.bf16.msra.mxu0 0
        %645 = vmatprep.mubr.bf16.mxu0 %v608
        %646 = vmatmul.mubr.bf16.gmra.mrb[0].mxu0 %v601
        %v647 = vpop.f32.mrb[0].mxu0
        %v648 = vadd.f32 0.0, %v647
        %v649 = vpop.f32.mrb[0].mxu0
        %v650 = vpop.f32.mrb[0].mxu0
        %v651 = vadd.f32 0.0, %v650
        %v652 = vpop.f32.mrb[0].mxu0
        %653 = vmatprep.mubr.bf16.mxu0 %v611
        %654 = vmatmul.mubr.bf16.gmra.mrb[0].mxu0 %v603
        %v655 = vpop.f32.mrb[0].mxu0
        %v656 = vadd.f32 0.0, %v655
        %v657 = vpop.f32.mrb[0].mxu0
        %v658 = vpop.f32.mrb[0].mxu0
        %v659 = vadd.f32 0.0, %v658
        %v660 = vpop.f32.mrb[0].mxu0
        %661 = vdwg.mxu0
        %v662 = vmax.f32 %v414, %v492
        %v663 = vmax.f32 %v417, %v495
        %v664 = vmax.f32 %v422, %v500
        %v665 = vmax.f32 %v425, %v503
        %v666 = vmax.f32 %v570, %v648
        %v667 = vmax.f32 %v573, %v651
        %v668 = vmax.f32 %v578, %v656
        %v669 = vmax.f32 %v581, %v659
        %v670 = vmax.f32 %v662, %v666
        %v671 = vmax.f32 %v663, %v667
        %v672 = vmax.f32 %v664, %v668
        %v673 = vmax.f32 %v665, %v669
        %v674 = vld [vmem:[%s2] sm:$0x1]
        %v676 = vlaneseq
        %v677 = vshrl.u32 %v676, 7
        %v678 = vsub.s32 0, %v677
        %v679 = vrot.slane %v674, %v678
        %v681 = vadd.f32 %v670, %v679
        %v682 = vadd.f32 %v671, %v679
        %v683 = vadd.f32 %v672, %v679
        %v684 = vadd.f32 %v673, %v679
        %v685 = vmax.f32 %v681, 0.0
        %v686 = vmax.f32 %v682, 0.0
        %v687 = vmax.f32 %v683, 0.0
        %v688 = vmax.f32 %v684, 0.0
        %v689 = vpack.c.bf16 %v686, %v685
        %v690 = vpack.c.bf16 %v688, %v687
        %v693 = vunpack.c.l.b16 %v689
        %v694 = vunpack.c.h.b16 %v689
        %v695 = vunpack.c.l.b16 %v690
        %v696 = vunpack.c.h.b16 %v690
        %v697 = vpack.c.b16 %v693, %v693
        %v698 = vpack.c.b16 %v694, %v694
        %v699 = vpack.c.b16 %v695, %v695
        %v700 = vpack.c.b16 %v696, %v696
        %705 = vst [vmem:[%s267] sm:$0xf] %v697
        %706 = vst [vmem:[%s267 + $0x4] sm:$0xf] %v698
        %707 = vst [vmem:[%s267 + $0x8] sm:$0xf] %v699
        %708 = vst [vmem:[%s267 + $0xc] sm:$0xf] %v700
        %s709 = smul.u32 4, %s14
        %p710 = scmp.lt.s32.totalorder %s709, 7
        %s711 = scalar_select %p710, %s709, 7
        %s712 = smul.addr %s711, 4
        %s713 = scalar_lea.vmem %s3, %s712
        // Predicated region
        $region71: #{basic_conv_net.4} parent=65 // pred_check
          %p714 = pneg %p100
        $region72: #{basic_conv_net.4} parent=65 // pred_check_branch
          %716 = sbr.rel (%p714) target = $region74
        $region73: #{basic_conv_net.4} parent=65 // pred_region
          %s717 = smul.u32 4, %s14
        $region74: #{basic_conv_net.4} parent=65 // pred_fallthru
          _
      $region66: #{basic_conv_net.4} parent=5 // pred_fallthru
        _
      %p718 = scmp.le.s32.totalorder 2, %s9
      // Predicated region
      $region75: #{basic_conv_net.4} parent=5 // pred_check
        %p719 = pneg %p718
      $region76: #{basic_conv_net.4} parent=5 // pred_check_branch
        %721 = sbr.rel (%p719) target = $region78
      $region77: #{basic_conv_net.4} parent=5 // pred_region
        %s722 = ssub.s32 %s9, 2
        // Predicated region
        $region79: #{basic_conv_net.4} parent=77 // pred_check
          %p723 = pneg %p106
        $region80: #{basic_conv_net.4} parent=77 // pred_check_branch
          %725 = sbr.rel (%p723) target = $region82
        $region81: #{basic_conv_net.4} parent=77 // pred_region
          %s726 = smul.u32 4, %s15
          %p727 = scmp.lt.s32.totalorder %s726, 7
          %s728 = scalar_select %p727, %s726, 7
          %s729 = smul.addr %s728, 4
          %s730 = scalar_lea.vmem %s3, %s729
        $region82: #{basic_conv_net.4} parent=77 // pred_fallthru
          _
      $region78: #{basic_conv_net.4} parent=5 // pred_fallthru
        _
    $region6: #{basic_conv_net.4} parent=1 // loop_footer
      %s13 = sadd.s32 1, %s9
    $region7: #{basic_conv_net.4} parent=1 // loop_footer_branch
      %8 = sbr.rel target = $region3
    $region8: #{basic_conv_net.4} parent=1 // loop_exit
      _

// kernel: basic_conv_net.5
$region0: #{basic_conv_net.5}
  #allocation0 [shape = 'u32[]', space=smem, size = 0x4, offset = 0x4, fixed_abs, tag = 'smem constant byte address 0x4 - core index']
  #allocation1 [shape = 'u32[144,128]{1,0:T(1,128)}', space=vmem, size = 0x12000, scoped, tag = 'internal scratch']
  %s0 = inlined_call_operand.vmem [shape: bf16[8,3200], index: 0, kind: input, shape index: {}]
  %s1 = inlined_call_operand.vmem [shape: bf16[3200,128], index: 1, kind: input, shape index: {}]
  %s2 = inlined_call_operand.vmem [shape: f32[1,128], index: 2, kind: input, shape index: {}]
  %s3 = inlined_call_operand.vmem [shape: bf16[128,128], index: 3, kind: input, shape index: {}]
  %s4 = inlined_call_operand.vmem [shape: f32[1,128], index: 4, kind: input, shape index: {}]
  %s5 = inlined_call_operand.vmem [shape: bf16[128,128], index: 5, kind: input, shape index: {}]
  %s6 = inlined_call_operand.vmem [shape: f32[1,128], index: 6, kind: input, shape index: {}]
  %s7 = inlined_call_operand.vmem [shape: f32[8,128], index: 7, kind: output, shape index: {}]
  %s8 = sld [smem:[#allocation0]]
  $region38: #{basic_conv_net.5} parent=0
    _
  %s10 = ssub.s32 1, %s8
  %s11 = scalar_select 0, %s10, %s8
  // Predicated region
  $region2: #{basic_conv_net.5} parent=0 // pred_check
    _
  $region3: #{basic_conv_net.5} parent=0 // pred_check_branch
    %13 = sbr.rel (0) target = $region5
  $region4: #{basic_conv_net.5} parent=0 // pred_region
    _
  $region5: #{basic_conv_net.5} parent=0 // pred_fallthru
    _
  // Predicated region
  $region6: #{basic_conv_net.5} parent=0 // pred_check
    _
  $region7: #{basic_conv_net.5} parent=0 // pred_check_branch
    %15 = sbr.rel (0) target = $region9
  $region8: #{basic_conv_net.5} parent=0 // pred_region
    _
  $region9: #{basic_conv_net.5} parent=0 // pred_fallthru
    _
  // Predicated region
  $region10: #{basic_conv_net.5} parent=0 // pred_check
    _
  $region11: #{basic_conv_net.5} parent=0 // pred_check_branch
    %17 = sbr.rel (0) target = $region13
  $region12: #{basic_conv_net.5} parent=0 // pred_region
    _
  $region13: #{basic_conv_net.5} parent=0 // pred_fallthru
    _
  // Predicated region
  $region14: #{basic_conv_net.5} parent=0 // pred_check
    _
  $region15: #{basic_conv_net.5} parent=0 // pred_check_branch
    %19 = sbr.rel (0) target = $region17
  $region16: #{basic_conv_net.5} parent=0 // pred_region
    _
  $region17: #{basic_conv_net.5} parent=0 // pred_fallthru
    _
  // Predicated region
  $region18: #{basic_conv_net.5} parent=0 // pred_check
    _
  $region19: #{basic_conv_net.5} parent=0 // pred_check_branch
    %21 = sbr.rel (0) target = $region21
  $region20: #{basic_conv_net.5} parent=0 // pred_region
    _
  $region21: #{basic_conv_net.5} parent=0 // pred_fallthru
    _
  // Predicated region
  $region22: #{basic_conv_net.5} parent=0 // pred_check
    _
  $region23: #{basic_conv_net.5} parent=0 // pred_check_branch
    %23 = sbr.rel (0) target = $region25
  $region24: #{basic_conv_net.5} parent=0 // pred_region
    _
  $region25: #{basic_conv_net.5} parent=0 // pred_fallthru
    _
  // Predicated region
  $region26: #{basic_conv_net.5} parent=0 // pred_check
    _
  $region27: #{basic_conv_net.5} parent=0 // pred_check_branch
    %25 = sbr.rel (0) target = $region29
  $region28: #{basic_conv_net.5} parent=0 // pred_region
    _
  $region29: #{basic_conv_net.5} parent=0 // pred_fallthru
    _
  %v27 = vld [vmem:[%s0] sm:$0xff]
  %v28 = vld [vmem:[%s0 + $0x8] sm:$0xff]
  %v29 = vld [vmem:[%s0 + $0x10] sm:$0xff]
  %v30 = vld [vmem:[%s0 + $0x18] sm:$0xff]
  %v31 = vld [vmem:[%s0 + $0x20] sm:$0xff]
  %v32 = vld [vmem:[%s0 + $0x28] sm:$0xff]
  %v33 = vld [vmem:[%s0 + $0x30] sm:$0xff]
  %v34 = vld [vmem:[%s0 + $0x38] sm:$0xff]
  %v35 = vld [vmem:[%s0 + $0x40] sm:$0xff]
  %v36 = vld [vmem:[%s0 + $0x48] sm:$0xff]
  %v37 = vld [vmem:[%s0 + $0x50] sm:$0xff]
  %v38 = vld [vmem:[%s0 + $0x58] sm:$0xff]
  %v39 = vld [vmem:[%s0 + $0x60] sm:$0xf]
  %v40 = vld [vmem:[%s1] sm:$0xf]
  %v41 = vld [vmem:[%s1 + $0x4] sm:$0xf]
  %v42 = vld [vmem:[%s1 + $0x8] sm:$0xf]
  %v43 = vld [vmem:[%s1 + $0xc] sm:$0xf]
  %v44 = vld [vmem:[%s1 + $0x10] sm:$0xf]
  %v45 = vld [vmem:[%s1 + $0x14] sm:$0xf]
  %v46 = vld [vmem:[%s1 + $0x18] sm:$0xf]
  %v47 = vld [vmem:[%s1 + $0x1c] sm:$0xf]
  %v48 = vld [vmem:[%s1 + $0x20] sm:$0xf]
  %v49 = vld [vmem:[%s1 + $0x24] sm:$0xf]
  %v50 = vld [vmem:[%s1 + $0x28] sm:$0xf]
  %v51 = vld [vmem:[%s1 + $0x2c] sm:$0xf]
  %v52 = vld [vmem:[%s1 + $0x30] sm:$0xf]
  %v53 = vld [vmem:[%s1 + $0x34] sm:$0xf]
  %v54 = vld [vmem:[%s1 + $0x38] sm:$0xf]
  %v55 = vld [vmem:[%s1 + $0x3c] sm:$0xf]
  %v56 = vld [vmem:[%s1 + $0x40] sm:$0xf]
  %v57 = vld [vmem:[%s1 + $0x44] sm:$0xf]
  %v58 = vld [vmem:[%s1 + $0x48] sm:$0xf]
  %v59 = vld [vmem:[%s1 + $0x4c] sm:$0xf]
  %v60 = vld [vmem:[%s1 + $0x50] sm:$0xf]
  %v61 = vld [vmem:[%s1 + $0x54] sm:$0xf]
  %v62 = vld [vmem:[%s1 + $0x58] sm:$0xf]
  %v63 = vld [vmem:[%s1 + $0x5c] sm:$0xf]
  %v64 = vld [vmem:[%s1 + $0x60] sm:$0xf]
  %v65 = vld [vmem:[%s1 + $0x64] sm:$0xf]
  %v66 = vld [vmem:[%s1 + $0x68] sm:$0xf]
  %v67 = vld [vmem:[%s1 + $0x6c] sm:$0xf]
  %v68 = vld [vmem:[%s1 + $0x70] sm:$0xf]
  %v69 = vld [vmem:[%s1 + $0x74] sm:$0xf]
  %v70 = vld [vmem:[%s1 + $0x78] sm:$0xf]
  %v71 = vld [vmem:[%s1 + $0x7c] sm:$0xf]
  %v72 = vld [vmem:[%s1 + $0x80] sm:$0xf]
  %v73 = vld [vmem:[%s1 + $0x84] sm:$0xf]
  %v74 = vld [vmem:[%s1 + $0x88] sm:$0xf]
  %v75 = vld [vmem:[%s1 + $0x8c] sm:$0xf]
  %v76 = vld [vmem:[%s1 + $0x90] sm:$0xf]
  %v77 = vld [vmem:[%s1 + $0x94] sm:$0xf]
  %v78 = vld [vmem:[%s1 + $0x98] sm:$0xf]
  %v79 = vld [vmem:[%s1 + $0x9c] sm:$0xf]
  %v80 = vld [vmem:[%s1 + $0xa0] sm:$0xf]
  %v81 = vld [vmem:[%s1 + $0xa4] sm:$0xf]
  %v82 = vld [vmem:[%s1 + $0xa8] sm:$0xf]
  %v83 = vld [vmem:[%s1 + $0xac] sm:$0xf]
  %v84 = vld [vmem:[%s1 + $0xb0] sm:$0xf]
  %v85 = vld [vmem:[%s1 + $0xb4] sm:$0xf]
  %v86 = vld [vmem:[%s1 + $0xb8] sm:$0xf]
  %v87 = vld [vmem:[%s1 + $0xbc] sm:$0xf]
  %v88 = vld [vmem:[%s1 + $0xc0] sm:$0xf]
  %v89 = vld [vmem:[%s1 + $0xc4] sm:$0xf]
  %v90 = vld [vmem:[%s1 + $0xc8] sm:$0xf]
  %v91 = vld [vmem:[%s1 + $0xcc] sm:$0xf]
  %v92 = vld [vmem:[%s1 + $0xd0] sm:$0xf]
  %v93 = vld [vmem:[%s1 + $0xd4] sm:$0xf]
  %v94 = vld [vmem:[%s1 + $0xd8] sm:$0xf]
  %v95 = vld [vmem:[%s1 + $0xdc] sm:$0xf]
  %v96 = vld [vmem:[%s1 + $0xe0] sm:$0xf]
  %v97 = vld [vmem:[%s1 + $0xe4] sm:$0xf]
  %v98 = vld [vmem:[%s1 + $0xe8] sm:$0xf]
  %v99 = vld [vmem:[%s1 + $0xec] sm:$0xf]
  %v100 = vld [vmem:[%s1 + $0xf0] sm:$0xf]
  %v101 = vld [vmem:[%s1 + $0xf4] sm:$0xf]
  %v102 = vld [vmem:[%s1 + $0xf8] sm:$0xf]
  %v103 = vld [vmem:[%s1 + $0xfc] sm:$0xf]
  %v104 = vld [vmem:[%s1 + $0x100] sm:$0xf]
  %v105 = vld [vmem:[%s1 + $0x104] sm:$0xf]
  %v106 = vld [vmem:[%s1 + $0x108] sm:$0xf]
  %v107 = vld [vmem:[%s1 + $0x10c] sm:$0xf]
  %v108 = vld [vmem:[%s1 + $0x110] sm:$0xf]
  %v109 = vld [vmem:[%s1 + $0x114] sm:$0xf]
  %v110 = vld [vmem:[%s1 + $0x118] sm:$0xf]
  %v111 = vld [vmem:[%s1 + $0x11c] sm:$0xf]
  %v112 = vld [vmem:[%s1 + $0x120] sm:$0xf]
  %v113 = vld [vmem:[%s1 + $0x124] sm:$0xf]
  %v114 = vld [vmem:[%s1 + $0x128] sm:$0xf]
  %v115 = vld [vmem:[%s1 + $0x12c] sm:$0xf]
  %v116 = vld [vmem:[%s1 + $0x130] sm:$0xf]
  %v117 = vld [vmem:[%s1 + $0x134] sm:$0xf]
  %v118 = vld [vmem:[%s1 + $0x138] sm:$0xf]
  %v119 = vld [vmem:[%s1 + $0x13c] sm:$0xf]
  %v120 = vld [vmem:[%s1 + $0x140] sm:$0xf]
  %v121 = vld [vmem:[%s1 + $0x144] sm:$0xf]
  %v122 = vld [vmem:[%s1 + $0x148] sm:$0xf]
  %v123 = vld [vmem:[%s1 + $0x14c] sm:$0xf]
  %v124 = vld [vmem:[%s1 + $0x150] sm:$0xf]
  %v125 = vld [vmem:[%s1 + $0x154] sm:$0xf]
  %v126 = vld [vmem:[%s1 + $0x158] sm:$0xf]
  %v127 = vld [vmem:[%s1 + $0x15c] sm:$0xf]
  %v128 = vld [vmem:[%s1 + $0x160] sm:$0xf]
  %v129 = vld [vmem:[%s1 + $0x164] sm:$0xf]
  %v130 = vld [vmem:[%s1 + $0x168] sm:$0xf]
  %v131 = vld [vmem:[%s1 + $0x16c] sm:$0xf]
  %v132 = vld [vmem:[%s1 + $0x170] sm:$0xf]
  %v133 = vld [vmem:[%s1 + $0x174] sm:$0xf]
  %v134 = vld [vmem:[%s1 + $0x178] sm:$0xf]
  %v135 = vld [vmem:[%s1 + $0x17c] sm:$0xf]
  %v136 = vld [vmem:[%s1 + $0x180] sm:$0xf]
  %v137 = vld [vmem:[%s1 + $0x184] sm:$0xf]
  %v138 = vld [vmem:[%s1 + $0x188] sm:$0xf]
  %v139 = vld [vmem:[%s1 + $0x18c] sm:$0xf]
  %v140 = vld [vmem:[%s1 + $0x190] sm:$0xf]
  %v141 = vld [vmem:[%s1 + $0x194] sm:$0xf]
  %v142 = vld [vmem:[%s1 + $0x198] sm:$0xf]
  %v143 = vld [vmem:[%s1 + $0x19c] sm:$0xf]
  %v144 = vld [vmem:[%s1 + $0x1a0] sm:$0xf]
  %v145 = vld [vmem:[%s1 + $0x1a4] sm:$0xf]
  %v146 = vld [vmem:[%s1 + $0x1a8] sm:$0xf]
  %v147 = vld [vmem:[%s1 + $0x1ac] sm:$0xf]
  %v148 = vld [vmem:[%s1 + $0x1b0] sm:$0xf]
  %v149 = vld [vmem:[%s1 + $0x1b4] sm:$0xf]
  %v150 = vld [vmem:[%s1 + $0x1b8] sm:$0xf]
  %v151 = vld [vmem:[%s1 + $0x1bc] sm:$0xf]
  %v152 = vld [vmem:[%s1 + $0x1c0] sm:$0xf]
  %v153 = vld [vmem:[%s1 + $0x1c4] sm:$0xf]
  %v154 = vld [vmem:[%s1 + $0x1c8] sm:$0xf]
  %v155 = vld [vmem:[%s1 + $0x1cc] sm:$0xf]
  %v156 = vld [vmem:[%s1 + $0x1d0] sm:$0xf]
  %v157 = vld [vmem:[%s1 + $0x1d4] sm:$0xf]
  %v158 = vld [vmem:[%s1 + $0x1d8] sm:$0xf]
  %v159 = vld [vmem:[%s1 + $0x1dc] sm:$0xf]
  %v160 = vld [vmem:[%s1 + $0x1e0] sm:$0xf]
  %v161 = vld [vmem:[%s1 + $0x1e4] sm:$0xf]
  %v162 = vld [vmem:[%s1 + $0x1e8] sm:$0xf]
  %v163 = vld [vmem:[%s1 + $0x1ec] sm:$0xf]
  %v164 = vld [vmem:[%s1 + $0x1f0] sm:$0xf]
  %v165 = vld [vmem:[%s1 + $0x1f4] sm:$0xf]
  %v166 = vld [vmem:[%s1 + $0x1f8] sm:$0xf]
  %v167 = vld [vmem:[%s1 + $0x1fc] sm:$0xf]
  %v168 = vld [vmem:[%s1 + $0x200] sm:$0xf]
  %v169 = vld [vmem:[%s1 + $0x204] sm:$0xf]
  %v170 = vld [vmem:[%s1 + $0x208] sm:$0xf]
  %v171 = vld [vmem:[%s1 + $0x20c] sm:$0xf]
  %v172 = vld [vmem:[%s1 + $0x210] sm:$0xf]
  %v173 = vld [vmem:[%s1 + $0x214] sm:$0xf]
  %v174 = vld [vmem:[%s1 + $0x218] sm:$0xf]
  %v175 = vld [vmem:[%s1 + $0x21c] sm:$0xf]
  %v176 = vld [vmem:[%s1 + $0x220] sm:$0xf]
  %v177 = vld [vmem:[%s1 + $0x224] sm:$0xf]
  %v178 = vld [vmem:[%s1 + $0x228] sm:$0xf]
  %v179 = vld [vmem:[%s1 + $0x22c] sm:$0xf]
  %v180 = vld [vmem:[%s1 + $0x230] sm:$0xf]
  %v181 = vld [vmem:[%s1 + $0x234] sm:$0xf]
  %v182 = vld [vmem:[%s1 + $0x238] sm:$0xf]
  %v183 = vld [vmem:[%s1 + $0x23c] sm:$0xf]
  %v184 = vld [vmem:[%s1 + $0x240] sm:$0xf]
  %v185 = vld [vmem:[%s1 + $0x244] sm:$0xf]
  %v186 = vld [vmem:[%s1 + $0x248] sm:$0xf]
  %v187 = vld [vmem:[%s1 + $0x24c] sm:$0xf]
  %v188 = vld [vmem:[%s1 + $0x250] sm:$0xf]
  %v189 = vld [vmem:[%s1 + $0x254] sm:$0xf]
  %v190 = vld [vmem:[%s1 + $0x258] sm:$0xf]
  %v191 = vld [vmem:[%s1 + $0x25c] sm:$0xf]
  %v192 = vld [vmem:[%s1 + $0x260] sm:$0xf]
  %v193 = vld [vmem:[%s1 + $0x264] sm:$0xf]
  %v194 = vld [vmem:[%s1 + $0x268] sm:$0xf]
  %v195 = vld [vmem:[%s1 + $0x26c] sm:$0xf]
  %v196 = vld [vmem:[%s1 + $0x270] sm:$0xf]
  %v197 = vld [vmem:[%s1 + $0x274] sm:$0xf]
  %v198 = vld [vmem:[%s1 + $0x278] sm:$0xf]
  %v199 = vld [vmem:[%s1 + $0x27c] sm:$0xf]
  %v200 = vld [vmem:[%s1 + $0x280] sm:$0xf]
  %v201 = vld [vmem:[%s1 + $0x284] sm:$0xf]
  %v202 = vld [vmem:[%s1 + $0x288] sm:$0xf]
  %v203 = vld [vmem:[%s1 + $0x28c] sm:$0xf]
  %v204 = vld [vmem:[%s1 + $0x290] sm:$0xf]
  %v205 = vld [vmem:[%s1 + $0x294] sm:$0xf]
  %v206 = vld [vmem:[%s1 + $0x298] sm:$0xf]
  %v207 = vld [vmem:[%s1 + $0x29c] sm:$0xf]
  %v208 = vld [vmem:[%s1 + $0x2a0] sm:$0xf]
  %v209 = vld [vmem:[%s1 + $0x2a4] sm:$0xf]
  %v210 = vld [vmem:[%s1 + $0x2a8] sm:$0xf]
  %v211 = vld [vmem:[%s1 + $0x2ac] sm:$0xf]
  %v212 = vld [vmem:[%s1 + $0x2b0] sm:$0xf]
  %v213 = vld [vmem:[%s1 + $0x2b4] sm:$0xf]
  %v214 = vld [vmem:[%s1 + $0x2b8] sm:$0xf]
  %v215 = vld [vmem:[%s1 + $0x2bc] sm:$0xf]
  %v216 = vld [vmem:[%s1 + $0x2c0] sm:$0xf]
  %v217 = vld [vmem:[%s1 + $0x2c4] sm:$0xf]
  %v218 = vld [vmem:[%s1 + $0x2c8] sm:$0xf]
  %v219 = vld [vmem:[%s1 + $0x2cc] sm:$0xf]
  %v220 = vld [vmem:[%s1 + $0x2d0] sm:$0xf]
  %v221 = vld [vmem:[%s1 + $0x2d4] sm:$0xf]
  %v222 = vld [vmem:[%s1 + $0x2d8] sm:$0xf]
  %v223 = vld [vmem:[%s1 + $0x2dc] sm:$0xf]
  %v224 = vld [vmem:[%s1 + $0x2e0] sm:$0xf]
  %v225 = vld [vmem:[%s1 + $0x2e4] sm:$0xf]
  %v226 = vld [vmem:[%s1 + $0x2e8] sm:$0xf]
  %v227 = vld [vmem:[%s1 + $0x2ec] sm:$0xf]
  %v228 = vld [vmem:[%s1 + $0x2f0] sm:$0xf]
  %v229 = vld [vmem:[%s1 + $0x2f4] sm:$0xf]
  %v230 = vld [vmem:[%s1 + $0x2f8] sm:$0xf]
  %v231 = vld [vmem:[%s1 + $0x2fc] sm:$0xf]
  %v232 = vld [vmem:[%s1 + $0x300] sm:$0xf]
  %v233 = vld [vmem:[%s1 + $0x304] sm:$0xf]
  %v234 = vld [vmem:[%s1 + $0x308] sm:$0xf]
  %v235 = vld [vmem:[%s1 + $0x30c] sm:$0xf]
  %v236 = vld [vmem:[%s1 + $0x310] sm:$0xf]
  %v237 = vld [vmem:[%s1 + $0x314] sm:$0xf]
  %v238 = vld [vmem:[%s1 + $0x318] sm:$0xf]
  %v239 = vld [vmem:[%s1 + $0x31c] sm:$0xf]
  %v240 = vld [vmem:[%s1 + $0x320] sm:$0xf]
  %v241 = vld [vmem:[%s1 + $0x324] sm:$0xf]
  %v242 = vld [vmem:[%s1 + $0x328] sm:$0xf]
  %v243 = vld [vmem:[%s1 + $0x32c] sm:$0xf]
  %v244 = vld [vmem:[%s1 + $0x330] sm:$0xf]
  %v245 = vld [vmem:[%s1 + $0x334] sm:$0xf]
  %v246 = vld [vmem:[%s1 + $0x338] sm:$0xf]
  %v247 = vld [vmem:[%s1 + $0x33c] sm:$0xf]
  %v248 = vld [vmem:[%s1 + $0x340] sm:$0xf]
  %v249 = vld [vmem:[%s1 + $0x344] sm:$0xf]
  %v250 = vld [vmem:[%s1 + $0x348] sm:$0xf]
  %v251 = vld [vmem:[%s1 + $0x34c] sm:$0xf]
  %v252 = vld [vmem:[%s1 + $0x350] sm:$0xf]
  %v253 = vld [vmem:[%s1 + $0x354] sm:$0xf]
  %v254 = vld [vmem:[%s1 + $0x358] sm:$0xf]
  %v255 = vld [vmem:[%s1 + $0x35c] sm:$0xf]
  %v256 = vld [vmem:[%s1 + $0x360] sm:$0xf]
  %v257 = vld [vmem:[%s1 + $0x364] sm:$0xf]
  %v258 = vld [vmem:[%s1 + $0x368] sm:$0xf]
  %v259 = vld [vmem:[%s1 + $0x36c] sm:$0xf]
  %v260 = vld [vmem:[%s1 + $0x370] sm:$0xf]
  %v261 = vld [vmem:[%s1 + $0x374] sm:$0xf]
  %v262 = vld [vmem:[%s1 + $0x378] sm:$0xf]
  %v263 = vld [vmem:[%s1 + $0x37c] sm:$0xf]
  %v264 = vld [vmem:[%s1 + $0x380] sm:$0xf]
  %v265 = vld [vmem:[%s1 + $0x384] sm:$0xf]
  %v266 = vld [vmem:[%s1 + $0x388] sm:$0xf]
  %v267 = vld [vmem:[%s1 + $0x38c] sm:$0xf]
  %v268 = vld [vmem:[%s1 + $0x390] sm:$0xf]
  %v269 = vld [vmem:[%s1 + $0x394] sm:$0xf]
  %v270 = vld [vmem:[%s1 + $0x398] sm:$0xf]
  %v271 = vld [vmem:[%s1 + $0x39c] sm:$0xf]
  %v272 = vld [vmem:[%s1 + $0x3a0] sm:$0xf]
  %v273 = vld [vmem:[%s1 + $0x3a4] sm:$0xf]
  %v274 = vld [vmem:[%s1 + $0x3a8] sm:$0xf]
  %v275 = vld [vmem:[%s1 + $0x3ac] sm:$0xf]
  %v276 = vld [vmem:[%s1 + $0x3b0] sm:$0xf]
  %v277 = vld [vmem:[%s1 + $0x3b4] sm:$0xf]
  %v278 = vld [vmem:[%s1 + $0x3b8] sm:$0xf]
  %v279 = vld [vmem:[%s1 + $0x3bc] sm:$0xf]
  %v280 = vld [vmem:[%s1 + $0x3c0] sm:$0xf]
  %v281 = vld [vmem:[%s1 + $0x3c4] sm:$0xf]
  %v282 = vld [vmem:[%s1 + $0x3c8] sm:$0xf]
  %v283 = vld [vmem:[%s1 + $0x3cc] sm:$0xf]
  %v284 = vld [vmem:[%s1 + $0x3d0] sm:$0xf]
  %v285 = vld [vmem:[%s1 + $0x3d4] sm:$0xf]
  %v286 = vld [vmem:[%s1 + $0x3d8] sm:$0xf]
  %v287 = vld [vmem:[%s1 + $0x3dc] sm:$0xf]
  %v288 = vld [vmem:[%s1 + $0x3e0] sm:$0xf]
  %v289 = vld [vmem:[%s1 + $0x3e4] sm:$0xf]
  %v290 = vld [vmem:[%s1 + $0x3e8] sm:$0xf]
  %v291 = vld [vmem:[%s1 + $0x3ec] sm:$0xf]
  %v292 = vld [vmem:[%s1 + $0x3f0] sm:$0xf]
  %v293 = vld [vmem:[%s1 + $0x3f4] sm:$0xf]
  %v294 = vld [vmem:[%s1 + $0x3f8] sm:$0xf]
  %v295 = vld [vmem:[%s1 + $0x3fc] sm:$0xf]
  %v296 = vld [vmem:[%s1 + $0x400] sm:$0xf]
  %v297 = vld [vmem:[%s1 + $0x404] sm:$0xf]
  %v298 = vld [vmem:[%s1 + $0x408] sm:$0xf]
  %v299 = vld [vmem:[%s1 + $0x40c] sm:$0xf]
  %v300 = vld [vmem:[%s1 + $0x410] sm:$0xf]
  %v301 = vld [vmem:[%s1 + $0x414] sm:$0xf]
  %v302 = vld [vmem:[%s1 + $0x418] sm:$0xf]
  %v303 = vld [vmem:[%s1 + $0x41c] sm:$0xf]
  %v304 = vld [vmem:[%s1 + $0x420] sm:$0xf]
  %v305 = vld [vmem:[%s1 + $0x424] sm:$0xf]
  %v306 = vld [vmem:[%s1 + $0x428] sm:$0xf]
  %v307 = vld [vmem:[%s1 + $0x42c] sm:$0xf]
  %v308 = vld [vmem:[%s1 + $0x430] sm:$0xf]
  %v309 = vld [vmem:[%s1 + $0x434] sm:$0xf]
  %v310 = vld [vmem:[%s1 + $0x438] sm:$0xf]
  %v311 = vld [vmem:[%s1 + $0x43c] sm:$0xf]
  %v312 = vld [vmem:[%s1 + $0x440] sm:$0xf]
  %v313 = vld [vmem:[%s1 + $0x444] sm:$0xf]
  %v314 = vld [vmem:[%s1 + $0x448] sm:$0xf]
  %v315 = vld [vmem:[%s1 + $0x44c] sm:$0xf]
  %v316 = vld [vmem:[%s1 + $0x450] sm:$0xf]
  %v317 = vld [vmem:[%s1 + $0x454] sm:$0xf]
  %v318 = vld [vmem:[%s1 + $0x458] sm:$0xf]
  %v319 = vld [vmem:[%s1 + $0x45c] sm:$0xf]
  %v320 = vld [vmem:[%s1 + $0x460] sm:$0xf]
  %v321 = vld [vmem:[%s1 + $0x464] sm:$0xf]
  %v322 = vld [vmem:[%s1 + $0x468] sm:$0xf]
  %v323 = vld [vmem:[%s1 + $0x46c] sm:$0xf]
  %v324 = vld [vmem:[%s1 + $0x470] sm:$0xf]
  %v325 = vld [vmem:[%s1 + $0x474] sm:$0xf]
  %v326 = vld [vmem:[%s1 + $0x478] sm:$0xf]
  %v327 = vld [vmem:[%s1 + $0x47c] sm:$0xf]
  %v328 = vld [vmem:[%s1 + $0x480] sm:$0xf]
  %v329 = vld [vmem:[%s1 + $0x484] sm:$0xf]
  %v330 = vld [vmem:[%s1 + $0x488] sm:$0xf]
  %v331 = vld [vmem:[%s1 + $0x48c] sm:$0xf]
  %v332 = vld [vmem:[%s1 + $0x490] sm:$0xf]
  %v333 = vld [vmem:[%s1 + $0x494] sm:$0xf]
  %v334 = vld [vmem:[%s1 + $0x498] sm:$0xf]
  %v335 = vld [vmem:[%s1 + $0x49c] sm:$0xf]
  %v336 = vld [vmem:[%s1 + $0x4a0] sm:$0xf]
  %v337 = vld [vmem:[%s1 + $0x4a4] sm:$0xf]
  %v338 = vld [vmem:[%s1 + $0x4a8] sm:$0xf]
  %v339 = vld [vmem:[%s1 + $0x4ac] sm:$0xf]
  %v340 = vld [vmem:[%s1 + $0x4b0] sm:$0xf]
  %v341 = vld [vmem:[%s1 + $0x4b4] sm:$0xf]
  %v342 = vld [vmem:[%s1 + $0x4b8] sm:$0xf]
  %v343 = vld [vmem:[%s1 + $0x4bc] sm:$0xf]
  %v344 = vld [vmem:[%s1 + $0x4c0] sm:$0xf]
  %v345 = vld [vmem:[%s1 + $0x4c4] sm:$0xf]
  %v346 = vld [vmem:[%s1 + $0x4c8] sm:$0xf]
  %v347 = vld [vmem:[%s1 + $0x4cc] sm:$0xf]
  %v348 = vld [vmem:[%s1 + $0x4d0] sm:$0xf]
  %v349 = vld [vmem:[%s1 + $0x4d4] sm:$0xf]
  %v350 = vld [vmem:[%s1 + $0x4d8] sm:$0xf]
  %v351 = vld [vmem:[%s1 + $0x4dc] sm:$0xf]
  %v352 = vld [vmem:[%s1 + $0x4e0] sm:$0xf]
  %v353 = vld [vmem:[%s1 + $0x4e4] sm:$0xf]
  %v354 = vld [vmem:[%s1 + $0x4e8] sm:$0xf]
  %v355 = vld [vmem:[%s1 + $0x4ec] sm:$0xf]
  %v356 = vld [vmem:[%s1 + $0x4f0] sm:$0xf]
  %v357 = vld [vmem:[%s1 + $0x4f4] sm:$0xf]
  %v358 = vld [vmem:[%s1 + $0x4f8] sm:$0xf]
  %v359 = vld [vmem:[%s1 + $0x4fc] sm:$0xf]
  %v360 = vld [vmem:[%s1 + $0x500] sm:$0xf]
  %v361 = vld [vmem:[%s1 + $0x504] sm:$0xf]
  %v362 = vld [vmem:[%s1 + $0x508] sm:$0xf]
  %v363 = vld [vmem:[%s1 + $0x50c] sm:$0xf]
  %v364 = vld [vmem:[%s1 + $0x510] sm:$0xf]
  %v365 = vld [vmem:[%s1 + $0x514] sm:$0xf]
  %v366 = vld [vmem:[%s1 + $0x518] sm:$0xf]
  %v367 = vld [vmem:[%s1 + $0x51c] sm:$0xf]
  %v368 = vld [vmem:[%s1 + $0x520] sm:$0xf]
  %v369 = vld [vmem:[%s1 + $0x524] sm:$0xf]
  %v370 = vld [vmem:[%s1 + $0x528] sm:$0xf]
  %v371 = vld [vmem:[%s1 + $0x52c] sm:$0xf]
  %v372 = vld [vmem:[%s1 + $0x530] sm:$0xf]
  %v373 = vld [vmem:[%s1 + $0x534] sm:$0xf]
  %v374 = vld [vmem:[%s1 + $0x538] sm:$0xf]
  %v375 = vld [vmem:[%s1 + $0x53c] sm:$0xf]
  %v376 = vld [vmem:[%s1 + $0x540] sm:$0xf]
  %v377 = vld [vmem:[%s1 + $0x544] sm:$0xf]
  %v378 = vld [vmem:[%s1 + $0x548] sm:$0xf]
  %v379 = vld [vmem:[%s1 + $0x54c] sm:$0xf]
  %v380 = vld [vmem:[%s1 + $0x550] sm:$0xf]
  %v381 = vld [vmem:[%s1 + $0x554] sm:$0xf]
  %v382 = vld [vmem:[%s1 + $0x558] sm:$0xf]
  %v383 = vld [vmem:[%s1 + $0x55c] sm:$0xf]
  %v384 = vld [vmem:[%s1 + $0x560] sm:$0xf]
  %v385 = vld [vmem:[%s1 + $0x564] sm:$0xf]
  %v386 = vld [vmem:[%s1 + $0x568] sm:$0xf]
  %v387 = vld [vmem:[%s1 + $0x56c] sm:$0xf]
  %v388 = vld [vmem:[%s1 + $0x570] sm:$0xf]
  %v389 = vld [vmem:[%s1 + $0x574] sm:$0xf]
  %v390 = vld [vmem:[%s1 + $0x578] sm:$0xf]
  %v391 = vld [vmem:[%s1 + $0x57c] sm:$0xf]
  %v392 = vld [vmem:[%s1 + $0x580] sm:$0xf]
  %v393 = vld [vmem:[%s1 + $0x584] sm:$0xf]
  %v394 = vld [vmem:[%s1 + $0x588] sm:$0xf]
  %v395 = vld [vmem:[%s1 + $0x58c] sm:$0xf]
  %v396 = vld [vmem:[%s1 + $0x590] sm:$0xf]
  %v397 = vld [vmem:[%s1 + $0x594] sm:$0xf]
  %v398 = vld [vmem:[%s1 + $0x598] sm:$0xf]
  %v399 = vld [vmem:[%s1 + $0x59c] sm:$0xf]
  %v400 = vld [vmem:[%s1 + $0x5a0] sm:$0xf]
  %v401 = vld [vmem:[%s1 + $0x5a4] sm:$0xf]
  %v402 = vld [vmem:[%s1 + $0x5a8] sm:$0xf]
  %v403 = vld [vmem:[%s1 + $0x5ac] sm:$0xf]
  %v404 = vld [vmem:[%s1 + $0x5b0] sm:$0xf]
  %v405 = vld [vmem:[%s1 + $0x5b4] sm:$0xf]
  %v406 = vld [vmem:[%s1 + $0x5b8] sm:$0xf]
  %v407 = vld [vmem:[%s1 + $0x5bc] sm:$0xf]
  %v408 = vld [vmem:[%s1 + $0x5c0] sm:$0xf]
  %v409 = vld [vmem:[%s1 + $0x5c4] sm:$0xf]
  %v410 = vld [vmem:[%s1 + $0x5c8] sm:$0xf]
  %v411 = vld [vmem:[%s1 + $0x5cc] sm:$0xf]
  %v412 = vld [vmem:[%s1 + $0x5d0] sm:$0xf]
  %v413 = vld [vmem:[%s1 + $0x5d4] sm:$0xf]
  %v414 = vld [vmem:[%s1 + $0x5d8] sm:$0xf]
  %v415 = vld [vmem:[%s1 + $0x5dc] sm:$0xf]
  %v416 = vld [vmem:[%s1 + $0x5e0] sm:$0xf]
  %v417 = vld [vmem:[%s1 + $0x5e4] sm:$0xf]
  %v418 = vld [vmem:[%s1 + $0x5e8] sm:$0xf]
  %v419 = vld [vmem:[%s1 + $0x5ec] sm:$0xf]
  %v420 = vld [vmem:[%s1 + $0x5f0] sm:$0xf]
  %v421 = vld [vmem:[%s1 + $0x5f4] sm:$0xf]
  %v422 = vld [vmem:[%s1 + $0x5f8] sm:$0xf]
  %v423 = vld [vmem:[%s1 + $0x5fc] sm:$0xf]
  %v424 = vld [vmem:[%s1 + $0x600] sm:$0xf]
  %v425 = vld [vmem:[%s1 + $0x604] sm:$0xf]
  %v426 = vld [vmem:[%s1 + $0x608] sm:$0xf]
  %v427 = vld [vmem:[%s1 + $0x60c] sm:$0xf]
  %v428 = vld [vmem:[%s1 + $0x610] sm:$0xf]
  %v429 = vld [vmem:[%s1 + $0x614] sm:$0xf]
  %v430 = vld [vmem:[%s1 + $0x618] sm:$0xf]
  %v431 = vld [vmem:[%s1 + $0x61c] sm:$0xf]
  %v432 = vld [vmem:[%s1 + $0x620] sm:$0xf]
  %v433 = vld [vmem:[%s1 + $0x624] sm:$0xf]
  %v434 = vld [vmem:[%s1 + $0x628] sm:$0xf]
  %v435 = vld [vmem:[%s1 + $0x62c] sm:$0xf]
  %v436 = vld [vmem:[%s1 + $0x630] sm:$0xf]
  %v437 = vld [vmem:[%s1 + $0x634] sm:$0xf]
  %v438 = vld [vmem:[%s1 + $0x638] sm:$0xf]
  %v439 = vld [vmem:[%s1 + $0x63c] sm:$0xf]
  %v440 = vld [vmem:[%s2] sm:$0x1]
  %v442 = vlaneseq
  %v443 = vshrl.u32 %v442, 7
  %v444 = vsub.s32 0, %v443
  %v445 = vrot.slane %v440, %v444
  %v460 = vunpack.c.l.b16 %v27
  %v461 = vunpack.c.h.b16 %v27
  %v462 = vunpack.c.l.b16 %v28
  %v463 = vunpack.c.h.b16 %v28
  %v464 = vunpack.c.l.b16 %v29
  %v465 = vunpack.c.h.b16 %v29
  %v466 = vunpack.c.l.b16 %v30
  %v467 = vunpack.c.h.b16 %v30
  %v468 = vunpack.c.l.b16 %v31
  %v469 = vunpack.c.h.b16 %v31
  %v470 = vunpack.c.l.b16 %v32
  %v471 = vunpack.c.h.b16 %v32
  %v472 = vunpack.c.l.b16 %v33
  %v473 = vunpack.c.h.b16 %v33
  %v474 = vunpack.c.l.b16 %v34
  %v475 = vunpack.c.h.b16 %v34
  %v476 = vunpack.c.l.b16 %v35
  %v477 = vunpack.c.h.b16 %v35
  %v478 = vunpack.c.l.b16 %v36
  %v479 = vunpack.c.h.b16 %v36
  %v480 = vunpack.c.l.b16 %v37
  %v481 = vunpack.c.h.b16 %v37
  %v482 = vunpack.c.l.b16 %v38
  %v483 = vunpack.c.h.b16 %v38
  %v484 = vunpack.c.l.b16 %v39
  %v485 = vpack.c.b16 %v460, %v460
  %v486 = vpack.c.b16 %v461, %v461
  %v487 = vpack.c.b16 %v462, %v462
  %v488 = vpack.c.b16 %v463, %v463
  %v489 = vpack.c.b16 %v464, %v464
  %v490 = vpack.c.b16 %v465, %v465
  %v491 = vpack.c.b16 %v466, %v466
  %v492 = vpack.c.b16 %v467, %v467
  %v493 = vpack.c.b16 %v468, %v468
  %v494 = vpack.c.b16 %v469, %v469
  %v495 = vpack.c.b16 %v470, %v470
  %v496 = vpack.c.b16 %v471, %v471
  %v497 = vpack.c.b16 %v472, %v472
  %v498 = vpack.c.b16 %v473, %v473
  %v499 = vpack.c.b16 %v474, %v474
  %v500 = vpack.c.b16 %v475, %v475
  %v501 = vpack.c.b16 %v476, %v476
  %v502 = vpack.c.b16 %v477, %v477
  %v503 = vpack.c.b16 %v478, %v478
  %v504 = vpack.c.b16 %v479, %v479
  %v505 = vpack.c.b16 %v480, %v480
  %v506 = vpack.c.b16 %v481, %v481
  %v507 = vpack.c.b16 %v482, %v482
  %v508 = vpack.c.b16 %v483, %v483
  %v509 = vpack.c.b16 %v484, %v484
  %v935 = vunpack.c.l.b16 %v40
  %v936 = vunpack.c.l.b16 %v41
  %v937 = vunpack.c.l.b16 %v42
  %v938 = vunpack.c.l.b16 %v43
  %v939 = vunpack.c.l.b16 %v44
  %v940 = vunpack.c.l.b16 %v45
  %v941 = vunpack.c.l.b16 %v46
  %v942 = vunpack.c.l.b16 %v47
  %v943 = vunpack.c.l.b16 %v48
  %v944 = vunpack.c.l.b16 %v49
  %v945 = vunpack.c.l.b16 %v50
  %v946 = vunpack.c.l.b16 %v51
  %v947 = vunpack.c.l.b16 %v52
  %v948 = vunpack.c.l.b16 %v53
  %v949 = vunpack.c.l.b16 %v54
  %v950 = vunpack.c.l.b16 %v55
  %v951 = vunpack.c.l.b16 %v56
  %v952 = vunpack.c.l.b16 %v57
  %v953 = vunpack.c.l.b16 %v58
  %v954 = vunpack.c.l.b16 %v59
  %v955 = vunpack.c.l.b16 %v60
  %v956 = vunpack.c.l.b16 %v61
  %v957 = vunpack.c.l.b16 %v62
  %v958 = vunpack.c.l.b16 %v63
  %v959 = vunpack.c.l.b16 %v64
  %v960 = vunpack.c.l.b16 %v65
  %v961 = vunpack.c.l.b16 %v66
  %v962 = vunpack.c.l.b16 %v67
  %v963 = vunpack.c.l.b16 %v68
  %v964 = vunpack.c.l.b16 %v69
  %v965 = vunpack.c.l.b16 %v70
  %v966 = vunpack.c.l.b16 %v71
  %v967 = vunpack.c.l.b16 %v72
  %v968 = vunpack.c.l.b16 %v73
  %v969 = vunpack.c.l.b16 %v74
  %v970 = vunpack.c.l.b16 %v75
  %v971 = vunpack.c.l.b16 %v76
  %v972 = vunpack.c.l.b16 %v77
  %v973 = vunpack.c.l.b16 %v78
  %v974 = vunpack.c.l.b16 %v79
  %v975 = vunpack.c.l.b16 %v80
  %v976 = vunpack.c.l.b16 %v81
  %v977 = vunpack.c.l.b16 %v82
  %v978 = vunpack.c.l.b16 %v83
  %v979 = vunpack.c.l.b16 %v84
  %v980 = vunpack.c.l.b16 %v85
  %v981 = vunpack.c.l.b16 %v86
  %v982 = vunpack.c.l.b16 %v87
  %v983 = vunpack.c.l.b16 %v88
  %v984 = vunpack.c.l.b16 %v89
  %v985 = vunpack.c.l.b16 %v90
  %v986 = vunpack.c.l.b16 %v91
  %v987 = vunpack.c.l.b16 %v92
  %v988 = vunpack.c.l.b16 %v93
  %v989 = vunpack.c.l.b16 %v94
  %v990 = vunpack.c.l.b16 %v95
  %v991 = vunpack.c.l.b16 %v96
  %v992 = vunpack.c.l.b16 %v97
  %v993 = vunpack.c.l.b16 %v98
  %v994 = vunpack.c.l.b16 %v99
  %v995 = vunpack.c.l.b16 %v100
  %v996 = vunpack.c.l.b16 %v101
  %v997 = vunpack.c.l.b16 %v102
  %v998 = vunpack.c.l.b16 %v103
  %v999 = vunpack.c.l.b16 %v104
  %v1000 = vunpack.c.l.b16 %v105
  %v1001 = vunpack.c.l.b16 %v106
  %v1002 = vunpack.c.l.b16 %v107
  %v1003 = vunpack.c.l.b16 %v108
  %v1004 = vunpack.c.l.b16 %v109
  %v1005 = vunpack.c.l.b16 %v110
  %v1006 = vunpack.c.l.b16 %v111
  %v1007 = vunpack.c.l.b16 %v112
  %v1008 = vunpack.c.l.b16 %v113
  %v1009 = vunpack.c.l.b16 %v114
  %v1010 = vunpack.c.l.b16 %v115
  %v1011 = vunpack.c.l.b16 %v116
  %v1012 = vunpack.c.l.b16 %v117
  %v1013 = vunpack.c.l.b16 %v118
  %v1014 = vunpack.c.l.b16 %v119
  %v1015 = vunpack.c.l.b16 %v120
  %v1016 = vunpack.c.l.b16 %v121
  %v1017 = vunpack.c.l.b16 %v122
  %v1018 = vunpack.c.l.b16 %v123
  %v1019 = vunpack.c.l.b16 %v124
  %v1020 = vunpack.c.l.b16 %v125
  %v1021 = vunpack.c.l.b16 %v126
  %v1022 = vunpack.c.l.b16 %v127
  %v1023 = vunpack.c.l.b16 %v128
  %v1024 = vunpack.c.l.b16 %v129
  %v1025 = vunpack.c.l.b16 %v130
  %v1026 = vunpack.c.l.b16 %v131
  %v1027 = vunpack.c.l.b16 %v132
  %v1028 = vunpack.c.l.b16 %v133
  %v1029 = vunpack.c.l.b16 %v134
  %v1030 = vunpack.c.l.b16 %v135
  %v1031 = vunpack.c.l.b16 %v136
  %v1032 = vunpack.c.l.b16 %v137
  %v1033 = vunpack.c.l.b16 %v138
  %v1034 = vunpack.c.l.b16 %v139
  %v1035 = vunpack.c.l.b16 %v140
  %v1036 = vunpack.c.l.b16 %v141
  %v1037 = vunpack.c.l.b16 %v142
  %v1038 = vunpack.c.l.b16 %v143
  %v1039 = vunpack.c.l.b16 %v144
  %v1040 = vunpack.c.l.b16 %v145
  %v1041 = vunpack.c.l.b16 %v146
  %v1042 = vunpack.c.l.b16 %v147
  %v1043 = vunpack.c.l.b16 %v148
  %v1044 = vunpack.c.l.b16 %v149
  %v1045 = vunpack.c.l.b16 %v150
  %v1046 = vunpack.c.l.b16 %v151
  %v1047 = vunpack.c.l.b16 %v152
  %v1048 = vunpack.c.l.b16 %v153
  %v1049 = vunpack.c.l.b16 %v154
  %v1050 = vunpack.c.l.b16 %v155
  %v1051 = vunpack.c.l.b16 %v156
  %v1052 = vunpack.c.l.b16 %v157
  %v1053 = vunpack.c.l.b16 %v158
  %v1054 = vunpack.c.l.b16 %v159
  %v1055 = vunpack.c.l.b16 %v160
  %v1056 = vunpack.c.l.b16 %v161
  %v1057 = vunpack.c.l.b16 %v162
  %v1058 = vunpack.c.l.b16 %v163
  %v1059 = vunpack.c.l.b16 %v164
  %v1060 = vunpack.c.l.b16 %v165
  %v1061 = vunpack.c.l.b16 %v166
  %v1062 = vunpack.c.l.b16 %v167
  %v1063 = vunpack.c.l.b16 %v168
  %v1064 = vunpack.c.l.b16 %v169
  %v1065 = vunpack.c.l.b16 %v170
  %v1066 = vunpack.c.l.b16 %v171
  %v1067 = vunpack.c.l.b16 %v172
  %v1068 = vunpack.c.l.b16 %v173
  %v1069 = vunpack.c.l.b16 %v174
  %v1070 = vunpack.c.l.b16 %v175
  %v1071 = vunpack.c.l.b16 %v176
  %v1072 = vunpack.c.l.b16 %v177
  %v1073 = vunpack.c.l.b16 %v178
  %v1074 = vunpack.c.l.b16 %v179
  %v1075 = vunpack.c.l.b16 %v180
  %v1076 = vunpack.c.l.b16 %v181
  %v1077 = vunpack.c.l.b16 %v182
  %v1078 = vunpack.c.l.b16 %v183
  %v1079 = vunpack.c.l.b16 %v184
  %v1080 = vunpack.c.l.b16 %v185
  %v1081 = vunpack.c.l.b16 %v186
  %v1082 = vunpack.c.l.b16 %v187
  %v1083 = vunpack.c.l.b16 %v188
  %v1084 = vunpack.c.l.b16 %v189
  %v1085 = vunpack.c.l.b16 %v190
  %v1086 = vunpack.c.l.b16 %v191
  %v1087 = vunpack.c.l.b16 %v192
  %v1088 = vunpack.c.l.b16 %v193
  %v1089 = vunpack.c.l.b16 %v194
  %v1090 = vunpack.c.l.b16 %v195
  %v1091 = vunpack.c.l.b16 %v196
  %v1092 = vunpack.c.l.b16 %v197
  %v1093 = vunpack.c.l.b16 %v198
  %v1094 = vunpack.c.l.b16 %v199
  %v1095 = vunpack.c.l.b16 %v200
  %v1096 = vunpack.c.l.b16 %v201
  %v1097 = vunpack.c.l.b16 %v202
  %v1098 = vunpack.c.l.b16 %v203
  %v1099 = vunpack.c.l.b16 %v204
  %v1100 = vunpack.c.l.b16 %v205
  %v1101 = vunpack.c.l.b16 %v206
  %v1102 = vunpack.c.l.b16 %v207
  %v1103 = vunpack.c.l.b16 %v208
  %v1104 = vunpack.c.l.b16 %v209
  %v1105 = vunpack.c.l.b16 %v210
  %v1106 = vunpack.c.l.b16 %v211
  %v1107 = vunpack.c.l.b16 %v212
  %v1108 = vunpack.c.l.b16 %v213
  %v1109 = vunpack.c.l.b16 %v214
  %v1110 = vunpack.c.l.b16 %v215
  %v1111 = vunpack.c.l.b16 %v216
  %v1112 = vunpack.c.l.b16 %v217
  %v1113 = vunpack.c.l.b16 %v218
  %v1114 = vunpack.c.l.b16 %v219
  %v1115 = vunpack.c.l.b16 %v220
  %v1116 = vunpack.c.l.b16 %v221
  %v1117 = vunpack.c.l.b16 %v222
  %v1118 = vunpack.c.l.b16 %v223
  %v1119 = vunpack.c.l.b16 %v224
  %v1120 = vunpack.c.l.b16 %v225
  %v1121 = vunpack.c.l.b16 %v226
  %v1122 = vunpack.c.l.b16 %v227
  %v1123 = vunpack.c.l.b16 %v228
  %v1124 = vunpack.c.l.b16 %v229
  %v1125 = vunpack.c.l.b16 %v230
  %v1126 = vunpack.c.l.b16 %v231
  %v1127 = vunpack.c.l.b16 %v232
  %v1128 = vunpack.c.l.b16 %v233
  %v1129 = vunpack.c.l.b16 %v234
  %v1130 = vunpack.c.l.b16 %v235
  %v1131 = vunpack.c.l.b16 %v236
  %v1132 = vunpack.c.l.b16 %v237
  %v1133 = vunpack.c.l.b16 %v238
  %v1134 = vunpack.c.l.b16 %v239
  %v1135 = vunpack.c.l.b16 %v240
  %v1136 = vunpack.c.l.b16 %v241
  %v1137 = vunpack.c.l.b16 %v242
  %v1138 = vunpack.c.l.b16 %v243
  %v1139 = vunpack.c.l.b16 %v244
  %v1140 = vunpack.c.l.b16 %v245
  %v1141 = vunpack.c.l.b16 %v246
  %v1142 = vunpack.c.l.b16 %v247
  %v1143 = vunpack.c.l.b16 %v248
  %v1144 = vunpack.c.l.b16 %v249
  %v1145 = vunpack.c.l.b16 %v250
  %v1146 = vunpack.c.l.b16 %v251
  %v1147 = vunpack.c.l.b16 %v252
  %v1148 = vunpack.c.l.b16 %v253
  %v1149 = vunpack.c.l.b16 %v254
  %v1150 = vunpack.c.l.b16 %v255
  %v1151 = vunpack.c.l.b16 %v256
  %v1152 = vunpack.c.l.b16 %v257
  %v1153 = vunpack.c.l.b16 %v258
  %v1154 = vunpack.c.l.b16 %v259
  %v1155 = vunpack.c.l.b16 %v260
  %v1156 = vunpack.c.l.b16 %v261
  %v1157 = vunpack.c.l.b16 %v262
  %v1158 = vunpack.c.l.b16 %v263
  %v1159 = vunpack.c.l.b16 %v264
  %v1160 = vunpack.c.l.b16 %v265
  %v1161 = vunpack.c.l.b16 %v266
  %v1162 = vunpack.c.l.b16 %v267
  %v1163 = vunpack.c.l.b16 %v268
  %v1164 = vunpack.c.l.b16 %v269
  %v1165 = vunpack.c.l.b16 %v270
  %v1166 = vunpack.c.l.b16 %v271
  %v1167 = vunpack.c.l.b16 %v272
  %v1168 = vunpack.c.l.b16 %v273
  %v1169 = vunpack.c.l.b16 %v274
  %v1170 = vunpack.c.l.b16 %v275
  %v1171 = vunpack.c.l.b16 %v276
  %v1172 = vunpack.c.l.b16 %v277
  %v1173 = vunpack.c.l.b16 %v278
  %v1174 = vunpack.c.l.b16 %v279
  %v1175 = vunpack.c.l.b16 %v280
  %v1176 = vunpack.c.l.b16 %v281
  %v1177 = vunpack.c.l.b16 %v282
  %v1178 = vunpack.c.l.b16 %v283
  %v1179 = vunpack.c.l.b16 %v284
  %v1180 = vunpack.c.l.b16 %v285
  %v1181 = vunpack.c.l.b16 %v286
  %v1182 = vunpack.c.l.b16 %v287
  %v1183 = vunpack.c.l.b16 %v288
  %v1184 = vunpack.c.l.b16 %v289
  %v1185 = vunpack.c.l.b16 %v290
  %v1186 = vunpack.c.l.b16 %v291
  %v1187 = vunpack.c.l.b16 %v292
  %v1188 = vunpack.c.l.b16 %v293
  %v1189 = vunpack.c.l.b16 %v294
  %v1190 = vunpack.c.l.b16 %v295
  %v1191 = vunpack.c.l.b16 %v296
  %v1192 = vunpack.c.l.b16 %v297
  %v1193 = vunpack.c.l.b16 %v298
  %v1194 = vunpack.c.l.b16 %v299
  %v1195 = vunpack.c.l.b16 %v300
  %v1196 = vunpack.c.l.b16 %v301
  %v1197 = vunpack.c.l.b16 %v302
  %v1198 = vunpack.c.l.b16 %v303
  %v1199 = vunpack.c.l.b16 %v304
  %v1200 = vunpack.c.l.b16 %v305
  %v1201 = vunpack.c.l.b16 %v306
  %v1202 = vunpack.c.l.b16 %v307
  %v1203 = vunpack.c.l.b16 %v308
  %v1204 = vunpack.c.l.b16 %v309
  %v1205 = vunpack.c.l.b16 %v310
  %v1206 = vunpack.c.l.b16 %v311
  %v1207 = vunpack.c.l.b16 %v312
  %v1208 = vunpack.c.l.b16 %v313
  %v1209 = vunpack.c.l.b16 %v314
  %v1210 = vunpack.c.l.b16 %v315
  %v1211 = vunpack.c.l.b16 %v316
  %v1212 = vunpack.c.l.b16 %v317
  %v1213 = vunpack.c.l.b16 %v318
  %v1214 = vunpack.c.l.b16 %v319
  %v1215 = vunpack.c.l.b16 %v320
  %v1216 = vunpack.c.l.b16 %v321
  %v1217 = vunpack.c.l.b16 %v322
  %v1218 = vunpack.c.l.b16 %v323
  %v1219 = vunpack.c.l.b16 %v324
  %v1220 = vunpack.c.l.b16 %v325
  %v1221 = vunpack.c.l.b16 %v326
  %v1222 = vunpack.c.l.b16 %v327
  %v1223 = vunpack.c.l.b16 %v328
  %v1224 = vunpack.c.l.b16 %v329
  %v1225 = vunpack.c.l.b16 %v330
  %v1226 = vunpack.c.l.b16 %v331
  %v1227 = vunpack.c.l.b16 %v332
  %v1228 = vunpack.c.l.b16 %v333
  %v1229 = vunpack.c.l.b16 %v334
  %v1230 = vunpack.c.l.b16 %v335
  %v1231 = vunpack.c.l.b16 %v336
  %v1232 = vunpack.c.l.b16 %v337
  %v1233 = vunpack.c.l.b16 %v338
  %v1234 = vunpack.c.l.b16 %v339
  %v1235 = vunpack.c.l.b16 %v340
  %v1236 = vunpack.c.l.b16 %v341
  %v1237 = vunpack.c.l.b16 %v342
  %v1238 = vunpack.c.l.b16 %v343
  %v1239 = vunpack.c.l.b16 %v344
  %v1240 = vunpack.c.l.b16 %v345
  %v1241 = vunpack.c.l.b16 %v346
  %v1242 = vunpack.c.l.b16 %v347
  %v1243 = vunpack.c.l.b16 %v348
  %v1244 = vunpack.c.l.b16 %v349
  %v1245 = vunpack.c.l.b16 %v350
  %v1246 = vunpack.c.l.b16 %v351
  %v1247 = vunpack.c.l.b16 %v352
  %v1248 = vunpack.c.l.b16 %v353
  %v1249 = vunpack.c.l.b16 %v354
  %v1250 = vunpack.c.l.b16 %v355
  %v1251 = vunpack.c.l.b16 %v356
  %v1252 = vunpack.c.l.b16 %v357
  %v1253 = vunpack.c.l.b16 %v358
  %v1254 = vunpack.c.l.b16 %v359
  %v1255 = vunpack.c.l.b16 %v360
  %v1256 = vunpack.c.l.b16 %v361
  %v1257 = vunpack.c.l.b16 %v362
  %v1258 = vunpack.c.l.b16 %v363
  %v1259 = vunpack.c.l.b16 %v364
  %v1260 = vunpack.c.l.b16 %v365
  %v1261 = vunpack.c.l.b16 %v366
  %v1262 = vunpack.c.l.b16 %v367
  %v1263 = vunpack.c.l.b16 %v368
  %v1264 = vunpack.c.l.b16 %v369
  %v1265 = vunpack.c.l.b16 %v370
  %v1266 = vunpack.c.l.b16 %v371
  %v1267 = vunpack.c.l.b16 %v372
  %v1268 = vunpack.c.l.b16 %v373
  %v1269 = vunpack.c.l.b16 %v374
  %v1270 = vunpack.c.l.b16 %v375
  %v1271 = vunpack.c.l.b16 %v376
  %v1272 = vunpack.c.l.b16 %v377
  %v1273 = vunpack.c.l.b16 %v378
  %v1274 = vunpack.c.l.b16 %v379
  %v1275 = vunpack.c.l.b16 %v380
  %v1276 = vunpack.c.l.b16 %v381
  %v1277 = vunpack.c.l.b16 %v382
  %v1278 = vunpack.c.l.b16 %v383
  %v1279 = vunpack.c.l.b16 %v384
  %v1280 = vunpack.c.l.b16 %v385
  %v1281 = vunpack.c.l.b16 %v386
  %v1282 = vunpack.c.l.b16 %v387
  %v1283 = vunpack.c.l.b16 %v388
  %v1284 = vunpack.c.l.b16 %v389
  %v1285 = vunpack.c.l.b16 %v390
  %v1286 = vunpack.c.l.b16 %v391
  %v1287 = vunpack.c.l.b16 %v392
  %v1288 = vunpack.c.l.b16 %v393
  %v1289 = vunpack.c.l.b16 %v394
  %v1290 = vunpack.c.l.b16 %v395
  %v1291 = vunpack.c.l.b16 %v396
  %v1292 = vunpack.c.l.b16 %v397
  %v1293 = vunpack.c.l.b16 %v398
  %v1294 = vunpack.c.l.b16 %v399
  %v1295 = vunpack.c.l.b16 %v400
  %v1296 = vunpack.c.l.b16 %v401
  %v1297 = vunpack.c.l.b16 %v402
  %v1298 = vunpack.c.l.b16 %v403
  %v1299 = vunpack.c.l.b16 %v404
  %v1300 = vunpack.c.l.b16 %v405
  %v1301 = vunpack.c.l.b16 %v406
  %v1302 = vunpack.c.l.b16 %v407
  %v1303 = vunpack.c.l.b16 %v408
  %v1304 = vunpack.c.l.b16 %v409
  %v1305 = vunpack.c.l.b16 %v410
  %v1306 = vunpack.c.l.b16 %v411
  %v1307 = vunpack.c.l.b16 %v412
  %v1308 = vunpack.c.l.b16 %v413
  %v1309 = vunpack.c.l.b16 %v414
  %v1310 = vunpack.c.l.b16 %v415
  %v1311 = vunpack.c.l.b16 %v416
  %v1312 = vunpack.c.l.b16 %v417
  %v1313 = vunpack.c.l.b16 %v418
  %v1314 = vunpack.c.l.b16 %v419
  %v1315 = vunpack.c.l.b16 %v420
  %v1316 = vunpack.c.l.b16 %v421
  %v1317 = vunpack.c.l.b16 %v422
  %v1318 = vunpack.c.l.b16 %v423
  %v1319 = vunpack.c.l.b16 %v424
  %v1320 = vunpack.c.l.b16 %v425
  %v1321 = vunpack.c.l.b16 %v426
  %v1322 = vunpack.c.l.b16 %v427
  %v1323 = vunpack.c.l.b16 %v428
  %v1324 = vunpack.c.l.b16 %v429
  %v1325 = vunpack.c.l.b16 %v430
  %v1326 = vunpack.c.l.b16 %v431
  %v1327 = vunpack.c.l.b16 %v432
  %v1328 = vunpack.c.l.b16 %v433
  %v1329 = vunpack.c.l.b16 %v434
  %v1330 = vunpack.c.l.b16 %v435
  %v1331 = vunpack.c.l.b16 %v436
  %v1332 = vunpack.c.l.b16 %v437
  %v1333 = vunpack.c.l.b16 %v438
  %v1334 = vunpack.c.l.b16 %v439
  %v1335 = vpack.c.b16 %v936, %v935
  %v1336 = vpack.c.b16 %v938, %v937
  %v1337 = vpack.c.b16 %v940, %v939
  %v1338 = vpack.c.b16 %v942, %v941
  %v1339 = vpack.c.b16 %v944, %v943
  %v1340 = vpack.c.b16 %v946, %v945
  %v1341 = vpack.c.b16 %v948, %v947
  %v1342 = vpack.c.b16 %v950, %v949
  %v1343 = vpack.c.b16 %v952, %v951
  %v1344 = vpack.c.b16 %v954, %v953
  %v1345 = vpack.c.b16 %v956, %v955
  %v1346 = vpack.c.b16 %v958, %v957
  %v1347 = vpack.c.b16 %v960, %v959
  %v1348 = vpack.c.b16 %v962, %v961
  %v1349 = vpack.c.b16 %v964, %v963
  %v1350 = vpack.c.b16 %v966, %v965
  %v1351 = vpack.c.b16 %v968, %v967
  %v1352 = vpack.c.b16 %v970, %v969
  %v1353 = vpack.c.b16 %v972, %v971
  %v1354 = vpack.c.b16 %v974, %v973
  %v1355 = vpack.c.b16 %v976, %v975
  %v1356 = vpack.c.b16 %v978, %v977
  %v1357 = vpack.c.b16 %v980, %v979
  %v1358 = vpack.c.b16 %v982, %v981
  %v1359 = vpack.c.b16 %v984, %v983
  %v1360 = vpack.c.b16 %v986, %v985
  %v1361 = vpack.c.b16 %v988, %v987
  %v1362 = vpack.c.b16 %v990, %v989
  %v1363 = vpack.c.b16 %v992, %v991
  %v1364 = vpack.c.b16 %v994, %v993
  %v1365 = vpack.c.b16 %v996, %v995
  %v1366 = vpack.c.b16 %v998, %v997
  %v1367 = vpack.c.b16 %v1000, %v999
  %v1368 = vpack.c.b16 %v1002, %v1001
  %v1369 = vpack.c.b16 %v1004, %v1003
  %v1370 = vpack.c.b16 %v1006, %v1005
  %v1371 = vpack.c.b16 %v1008, %v1007
  %v1372 = vpack.c.b16 %v1010, %v1009
  %v1373 = vpack.c.b16 %v1012, %v1011
  %v1374 = vpack.c.b16 %v1014, %v1013
  %v1375 = vpack.c.b16 %v1016, %v1015
  %v1376 = vpack.c.b16 %v1018, %v1017
  %v1377 = vpack.c.b16 %v1020, %v1019
  %v1378 = vpack.c.b16 %v1022, %v1021
  %v1379 = vpack.c.b16 %v1024, %v1023
  %v1380 = vpack.c.b16 %v1026, %v1025
  %v1381 = vpack.c.b16 %v1028, %v1027
  %v1382 = vpack.c.b16 %v1030, %v1029
  %v1383 = vpack.c.b16 %v1032, %v1031
  %v1384 = vpack.c.b16 %v1034, %v1033
  %v1385 = vpack.c.b16 %v1036, %v1035
  %v1386 = vpack.c.b16 %v1038, %v1037
  %v1387 = vpack.c.b16 %v1040, %v1039
  %v1388 = vpack.c.b16 %v1042, %v1041
  %v1389 = vpack.c.b16 %v1044, %v1043
  %v1390 = vpack.c.b16 %v1046, %v1045
  %v1391 = vpack.c.b16 %v1048, %v1047
  %v1392 = vpack.c.b16 %v1050, %v1049
  %v1393 = vpack.c.b16 %v1052, %v1051
  %v1394 = vpack.c.b16 %v1054, %v1053
  %v1395 = vpack.c.b16 %v1056, %v1055
  %v1396 = vpack.c.b16 %v1058, %v1057
  %v1397 = vpack.c.b16 %v1060, %v1059
  %v1398 = vpack.c.b16 %v1062, %v1061
  %v1399 = vpack.c.b16 %v1064, %v1063
  %v1400 = vpack.c.b16 %v1066, %v1065
  %v1401 = vpack.c.b16 %v1068, %v1067
  %v1402 = vpack.c.b16 %v1070, %v1069
  %v1403 = vpack.c.b16 %v1072, %v1071
  %v1404 = vpack.c.b16 %v1074, %v1073
  %v1405 = vpack.c.b16 %v1076, %v1075
  %v1406 = vpack.c.b16 %v1078, %v1077
  %v1407 = vpack.c.b16 %v1080, %v1079
  %v1408 = vpack.c.b16 %v1082, %v1081
  %v1409 = vpack.c.b16 %v1084, %v1083
  %v1410 = vpack.c.b16 %v1086, %v1085
  %v1411 = vpack.c.b16 %v1088, %v1087
  %v1412 = vpack.c.b16 %v1090, %v1089
  %v1413 = vpack.c.b16 %v1092, %v1091
  %v1414 = vpack.c.b16 %v1094, %v1093
  %v1415 = vpack.c.b16 %v1096, %v1095
  %v1416 = vpack.c.b16 %v1098, %v1097
  %v1417 = vpack.c.b16 %v1100, %v1099
  %v1418 = vpack.c.b16 %v1102, %v1101
  %v1419 = vpack.c.b16 %v1104, %v1103
  %v1420 = vpack.c.b16 %v1106, %v1105
  %v1421 = vpack.c.b16 %v1108, %v1107
  %v1422 = vpack.c.b16 %v1110, %v1109
  %v1423 = vpack.c.b16 %v1112, %v1111
  %v1424 = vpack.c.b16 %v1114, %v1113
  %v1425 = vpack.c.b16 %v1116, %v1115
  %v1426 = vpack.c.b16 %v1118, %v1117
  %v1427 = vpack.c.b16 %v1120, %v1119
  %v1428 = vpack.c.b16 %v1122, %v1121
  %v1429 = vpack.c.b16 %v1124, %v1123
  %v1430 = vpack.c.b16 %v1126, %v1125
  %v1431 = vpack.c.b16 %v1128, %v1127
  %v1432 = vpack.c.b16 %v1130, %v1129
  %v1433 = vpack.c.b16 %v1132, %v1131
  %v1434 = vpack.c.b16 %v1134, %v1133
  %v1435 = vpack.c.b16 %v1136, %v1135
  %v1436 = vpack.c.b16 %v1138, %v1137
  %v1437 = vpack.c.b16 %v1140, %v1139
  %v1438 = vpack.c.b16 %v1142, %v1141
  %v1439 = vpack.c.b16 %v1144, %v1143
  %v1440 = vpack.c.b16 %v1146, %v1145
  %v1441 = vpack.c.b16 %v1148, %v1147
  %v1442 = vpack.c.b16 %v1150, %v1149
  %v1443 = vpack.c.b16 %v1152, %v1151
  %v1444 = vpack.c.b16 %v1154, %v1153
  %v1445 = vpack.c.b16 %v1156, %v1155
  %v1446 = vpack.c.b16 %v1158, %v1157
  %v1447 = vpack.c.b16 %v1160, %v1159
  %v1448 = vpack.c.b16 %v1162, %v1161
  %v1449 = vpack.c.b16 %v1164, %v1163
  %v1450 = vpack.c.b16 %v1166, %v1165
  %v1451 = vpack.c.b16 %v1168, %v1167
  %v1452 = vpack.c.b16 %v1170, %v1169
  %v1453 = vpack.c.b16 %v1172, %v1171
  %v1454 = vpack.c.b16 %v1174, %v1173
  %v1455 = vpack.c.b16 %v1176, %v1175
  %v1456 = vpack.c.b16 %v1178, %v1177
  %v1457 = vpack.c.b16 %v1180, %v1179
  %v1458 = vpack.c.b16 %v1182, %v1181
  %v1459 = vpack.c.b16 %v1184, %v1183
  %v1460 = vpack.c.b16 %v1186, %v1185
  %v1461 = vpack.c.b16 %v1188, %v1187
  %v1462 = vpack.c.b16 %v1190, %v1189
  %v1463 = vpack.c.b16 %v1192, %v1191
  %v1464 = vpack.c.b16 %v1194, %v1193
  %v1465 = vpack.c.b16 %v1196, %v1195
  %v1466 = vpack.c.b16 %v1198, %v1197
  %v1467 = vpack.c.b16 %v1200, %v1199
  %v1468 = vpack.c.b16 %v1202, %v1201
  %v1469 = vpack.c.b16 %v1204, %v1203
  %v1470 = vpack.c.b16 %v1206, %v1205
  %v1471 = vpack.c.b16 %v1208, %v1207
  %v1472 = vpack.c.b16 %v1210, %v1209
  %v1473 = vpack.c.b16 %v1212, %v1211
  %v1474 = vpack.c.b16 %v1214, %v1213
  %v1475 = vpack.c.b16 %v1216, %v1215
  %v1476 = vpack.c.b16 %v1218, %v1217
  %v1477 = vpack.c.b16 %v1220, %v1219
  %v1478 = vpack.c.b16 %v1222, %v1221
  %v1479 = vpack.c.b16 %v1224, %v1223
  %v1480 = vpack.c.b16 %v1226, %v1225
  %v1481 = vpack.c.b16 %v1228, %v1227
  %v1482 = vpack.c.b16 %v1230, %v1229
  %v1483 = vpack.c.b16 %v1232, %v1231
  %v1484 = vpack.c.b16 %v1234, %v1233
  %v1485 = vpack.c.b16 %v1236, %v1235
  %v1486 = vpack.c.b16 %v1238, %v1237
  %v1487 = vpack.c.b16 %v1240, %v1239
  %v1488 = vpack.c.b16 %v1242, %v1241
  %v1489 = vpack.c.b16 %v1244, %v1243
  %v1490 = vpack.c.b16 %v1246, %v1245
  %v1491 = vpack.c.b16 %v1248, %v1247
  %v1492 = vpack.c.b16 %v1250, %v1249
  %v1493 = vpack.c.b16 %v1252, %v1251
  %v1494 = vpack.c.b16 %v1254, %v1253
  %v1495 = vpack.c.b16 %v1256, %v1255
  %v1496 = vpack.c.b16 %v1258, %v1257
  %v1497 = vpack.c.b16 %v1260, %v1259
  %v1498 = vpack.c.b16 %v1262, %v1261
  %v1499 = vpack.c.b16 %v1264, %v1263
  %v1500 = vpack.c.b16 %v1266, %v1265
  %v1501 = vpack.c.b16 %v1268, %v1267
  %v1502 = vpack.c.b16 %v1270, %v1269
  %v1503 = vpack.c.b16 %v1272, %v1271
  %v1504 = vpack.c.b16 %v1274, %v1273
  %v1505 = vpack.c.b16 %v1276, %v1275
  %v1506 = vpack.c.b16 %v1278, %v1277
  %v1507 = vpack.c.b16 %v1280, %v1279
  %v1508 = vpack.c.b16 %v1282, %v1281
  %v1509 = vpack.c.b16 %v1284, %v1283
  %v1510 = vpack.c.b16 %v1286, %v1285
  %v1511 = vpack.c.b16 %v1288, %v1287
  %v1512 = vpack.c.b16 %v1290, %v1289
  %v1513 = vpack.c.b16 %v1292, %v1291
  %v1514 = vpack.c.b16 %v1294, %v1293
  %v1515 = vpack.c.b16 %v1296, %v1295
  %v1516 = vpack.c.b16 %v1298, %v1297
  %v1517 = vpack.c.b16 %v1300, %v1299
  %v1518 = vpack.c.b16 %v1302, %v1301
  %v1519 = vpack.c.b16 %v1304, %v1303
  %v1520 = vpack.c.b16 %v1306, %v1305
  %v1521 = vpack.c.b16 %v1308, %v1307
  %v1522 = vpack.c.b16 %v1310, %v1309
  %v1523 = vpack.c.b16 %v1312, %v1311
  %v1524 = vpack.c.b16 %v1314, %v1313
  %v1525 = vpack.c.b16 %v1316, %v1315
  %v1526 = vpack.c.b16 %v1318, %v1317
  %v1527 = vpack.c.b16 %v1320, %v1319
  %v1528 = vpack.c.b16 %v1322, %v1321
  %v1529 = vpack.c.b16 %v1324, %v1323
  %v1530 = vpack.c.b16 %v1326, %v1325
  %v1531 = vpack.c.b16 %v1328, %v1327
  %v1532 = vpack.c.b16 %v1330, %v1329
  %v1533 = vpack.c.b16 %v1332, %v1331
  %v1534 = vpack.c.b16 %v1334, %v1333
  %1735 = vmatprep.subr.bf16.mxu0 0
  %1736 = vmatpush1.bf16.msra.mxu0 %v1335
  %1737 = vmatprep.subr.bf16.mxu0 0
  %1738 = vmatpush1.bf16.msra.mxu0 %v1336
  %1739 = vmatprep.subr.bf16.mxu0 0
  %1740 = vmatpush1.bf16.msra.mxu0 %v1337
  %1741 = vmatprep.subr.bf16.mxu0 0
  %1742 = vmatpush1.bf16.msra.mxu0 %v1338
  %1743 = vmatprep.subr.bf16.mxu0 0
  %1744 = vmatpush1.bf16.msra.mxu0 %v1339
  %1745 = vmatprep.subr.bf16.mxu0 0
  %1746 = vmatpush1.bf16.msra.mxu0 %v1340
  %1747 = vmatprep.subr.bf16.mxu0 0
  %1748 = vmatpush1.bf16.msra.mxu0 %v1341
  %1749 = vmatprep.subr.bf16.mxu0 0
  %1750 = vmatpush1.bf16.msra.mxu0 %v1342
  %1751 = vmatprep.subr.bf16.mxu0 0
  %1752 = vmatpush1.bf16.msra.mxu0 %v1343
  %1753 = vmatprep.subr.bf16.mxu0 0
  %1754 = vmatpush1.bf16.msra.mxu0 %v1344
  %1755 = vmatprep.subr.bf16.mxu0 0
  %1756 = vmatpush1.bf16.msra.mxu0 %v1345
  %1757 = vmatprep.subr.bf16.mxu0 0
  %1758 = vmatpush1.bf16.msra.mxu0 %v1346
  %1759 = vmatprep.subr.bf16.mxu0 0
  %1760 = vmatpush1.bf16.msra.mxu0 %v1347
  %1761 = vmatprep.subr.bf16.mxu0 0
  %1762 = vmatpush1.bf16.msra.mxu0 %v1348
  %1763 = vmatprep.subr.bf16.mxu0 0
  %1764 = vmatpush1.bf16.msra.mxu0 %v1349
  %1765 = vmatprep.subr.bf16.mxu0 0
  %1766 = vmatpush1.bf16.msra.mxu0 %v1350
  %1767 = vmatprep.mubr.bf16.mxu0 %v486
  %1768 = vmatmul.mubr.bf16.gmra.mrb[0].mxu0 %v485
  %v1769 = vpop.f32.mrb[0].mxu0
  %v1770 = vadd.f32 %v445, %v1769
  %v1771 = vpop.f32.mrb[0].mxu0
  %v1772 = vpop.f32.mrb[0].mxu0
  %v1773 = vpop.f32.mrb[0].mxu0
  %1774 = vdwg.mxu0
  %1775 = vmatprep.subr.bf16.mxu0 0
  %1776 = vmatpush1.bf16.msra.mxu0 %v1351
  %1777 = vmatprep.subr.bf16.mxu0 0
  %1778 = vmatpush1.bf16.msra.mxu0 %v1352
  %1779 = vmatprep.subr.bf16.mxu0 0
  %1780 = vmatpush1.bf16.msra.mxu0 %v1353
  %1781 = vmatprep.subr.bf16.mxu0 0
  %1782 = vmatpush1.bf16.msra.mxu0 %v1354
  %1783 = vmatprep.subr.bf16.mxu0 0
  %1784 = vmatpush1.bf16.msra.mxu0 %v1355
  %1785 = vmatprep.subr.bf16.mxu0 0
  %1786 = vmatpush1.bf16.msra.mxu0 %v1356
  %1787 = vmatprep.subr.bf16.mxu0 0
  %1788 = vmatpush1.bf16.msra.mxu0 %v1357
  %1789 = vmatprep.subr.bf16.mxu0 0
  %1790 = vmatpush1.bf16.msra.mxu0 %v1358
  %1791 = vmatprep.subr.bf16.mxu0 0
  %1792 = vmatpush1.bf16.msra.mxu0 %v1359
  %1793 = vmatprep.subr.bf16.mxu0 0
  %1794 = vmatpush1.bf16.msra.mxu0 %v1360
  %1795 = vmatprep.subr.bf16.mxu0 0
  %1796 = vmatpush1.bf16.msra.mxu0 %v1361
  %1797 = vmatprep.subr.bf16.mxu0 0
  %1798 = vmatpush1.bf16.msra.mxu0 %v1362
  %1799 = vmatprep.subr.bf16.mxu0 0
  %1800 = vmatpush1.bf16.msra.mxu0 %v1363
  %1801 = vmatprep.subr.bf16.mxu0 0
  %1802 = vmatpush1.bf16.msra.mxu0 %v1364
  %1803 = vmatprep.subr.bf16.mxu0 0
  %1804 = vmatpush1.bf16.msra.mxu0 %v1365
  %1805 = vmatprep.subr.bf16.mxu0 0
  %1806 = vmatpush1.bf16.msra.mxu0 %v1366
  %1807 = vmatprep.mubr.bf16.mxu0 %v488
  %1808 = vmatmul.mubr.bf16.gmra.mrb[0].mxu0 %v487
  %v1809 = vpop.f32.mrb[0].mxu0
  %v1810 = vadd.f32 %v1770, %v1809
  %v1811 = vpop.f32.mrb[0].mxu0
  %v1812 = vpop.f32.mrb[0].mxu0
  %v1813 = vpop.f32.mrb[0].mxu0
  %1814 = vdwg.mxu0
  %1815 = vmatprep.subr.bf16.mxu0 0
  %1816 = vmatpush1.bf16.msra.mxu0 %v1367
  %1817 = vmatprep.subr.bf16.mxu0 0
  %1818 = vmatpush1.bf16.msra.mxu0 %v1368
  %1819 = vmatprep.subr.bf16.mxu0 0
  %1820 = vmatpush1.bf16.msra.mxu0 %v1369
  %1821 = vmatprep.subr.bf16.mxu0 0
  %1822 = vmatpush1.bf16.msra.mxu0 %v1370
  %1823 = vmatprep.subr.bf16.mxu0 0
  %1824 = vmatpush1.bf16.msra.mxu0 %v1371
  %1825 = vmatprep.subr.bf16.mxu0 0
  %1826 = vmatpush1.bf16.msra.mxu0 %v1372
  %1827 = vmatprep.subr.bf16.mxu0 0
  %1828 = vmatpush1.bf16.msra.mxu0 %v1373
  %1829 = vmatprep.subr.bf16.mxu0 0
  %1830 = vmatpush1.bf16.msra.mxu0 %v1374
  %1831 = vmatprep.subr.bf16.mxu0 0
  %1832 = vmatpush1.bf16.msra.mxu0 %v1375
  %1833 = vmatprep.subr.bf16.mxu0 0
  %1834 = vmatpush1.bf16.msra.mxu0 %v1376
  %1835 = vmatprep.subr.bf16.mxu0 0
  %1836 = vmatpush1.bf16.msra.mxu0 %v1377
  %1837 = vmatprep.subr.bf16.mxu0 0
  %1838 = vmatpush1.bf16.msra.mxu0 %v1378
  %1839 = vmatprep.subr.bf16.mxu0 0
  %1840 = vmatpush1.bf16.msra.mxu0 %v1379
  %1841 = vmatprep.subr.bf16.mxu0 0
  %1842 = vmatpush1.bf16.msra.mxu0 %v1380
  %1843 = vmatprep.subr.bf16.mxu0 0
  %1844 = vmatpush1.bf16.msra.mxu0 %v1381
  %1845 = vmatprep.subr.bf16.mxu0 0
  %1846 = vmatpush1.bf16.msra.mxu0 %v1382
  %1847 = vmatprep.mubr.bf16.mxu0 %v490
  %1848 = vmatmul.mubr.bf16.gmra.mrb[0].mxu0 %v489
  %v1849 = vpop.f32.mrb[0].mxu0
  %v1850 = vadd.f32 %v1810, %v1849
  %v1851 = vpop.f32.mrb[0].mxu0
  %v1852 = vpop.f32.mrb[0].mxu0
  %v1853 = vpop.f32.mrb[0].mxu0
  %1854 = vdwg.mxu0
  %1855 = vmatprep.subr.bf16.mxu0 0
  %1856 = vmatpush1.bf16.msra.mxu0 %v1383
  %1857 = vmatprep.subr.bf16.mxu0 0
  %1858 = vmatpush1.bf16.msra.mxu0 %v1384
  %1859 = vmatprep.subr.bf16.mxu0 0
  %1860 = vmatpush1.bf16.msra.mxu0 %v1385
  %1861 = vmatprep.subr.bf16.mxu0 0
  %1862 = vmatpush1.bf16.msra.mxu0 %v1386
  %1863 = vmatprep.subr.bf16.mxu0 0
  %1864 = vmatpush1.bf16.msra.mxu0 %v1387
  %1865 = vmatprep.subr.bf16.mxu0 0
  %1866 = vmatpush1.bf16.msra.mxu0 %v1388
  %1867 = vmatprep.subr.bf16.mxu0 0
  %1868 = vmatpush1.bf16.msra.mxu0 %v1389
  %1869 = vmatprep.subr.bf16.mxu0 0
  %1870 = vmatpush1.bf16.msra.mxu0 %v1390
  %1871 = vmatprep.subr.bf16.mxu0 0
  %1872 = vmatpush1.bf16.msra.mxu0 %v1391
  %1873 = vmatprep.subr.bf16.mxu0 0
  %1874 = vmatpush1.bf16.msra.mxu0 %v1392
  %1875 = vmatprep.subr.bf16.mxu0 0
  %1876 = vmatpush1.bf16.msra.mxu0 %v1393
  %1877 = vmatprep.subr.bf16.mxu0 0
  %1878 = vmatpush1.bf16.msra.mxu0 %v1394
  %1879 = vmatprep.subr.bf16.mxu0 0
  %1880 = vmatpush1.bf16.msra.mxu0 %v1395
  %1881 = vmatprep.subr.bf16.mxu0 0
  %1882 = vmatpush1.bf16.msra.mxu0 %v1396
  %1883 = vmatprep.subr.bf16.mxu0 0
  %1884 = vmatpush1.bf16.msra.mxu0 %v1397
  %1885 = vmatprep.subr.bf16.mxu0 0
  %1886 = vmatpush1.bf16.msra.mxu0 %v1398
  %1887 = vmatprep.mubr.bf16.mxu0 %v492
  %1888 = vmatmul.mubr.bf16.gmra.mrb[0].mxu0 %v491
  %v1889 = vpop.f32.mrb[0].mxu0
  %v1890 = vadd.f32 %v1850, %v1889
  %v1891 = vpop.f32.mrb[0].mxu0
  %v1892 = vpop.f32.mrb[0].mxu0
  %v1893 = vpop.f32.mrb[0].mxu0
  %1894 = vdwg.mxu0
  %1895 = vmatprep.subr.bf16.mxu0 0
  %1896 = vmatpush1.bf16.msra.mxu0 %v1399
  %1897 = vmatprep.subr.bf16.mxu0 0
  %1898 = vmatpush1.bf16.msra.mxu0 %v1400
  %1899 = vmatprep.subr.bf16.mxu0 0
  %1900 = vmatpush1.bf16.msra.mxu0 %v1401
  %1901 = vmatprep.subr.bf16.mxu0 0
  %1902 = vmatpush1.bf16.msra.mxu0 %v1402
  %1903 = vmatprep.subr.bf16.mxu0 0
  %1904 = vmatpush1.bf16.msra.mxu0 %v1403
  %1905 = vmatprep.subr.bf16.mxu0 0
  %1906 = vmatpush1.bf16.msra.mxu0 %v1404
  %1907 = vmatprep.subr.bf16.mxu0 0
  %1908 = vmatpush1.bf16.msra.mxu0 %v1405
  %1909 = vmatprep.subr.bf16.mxu0 0
  %1910 = vmatpush1.bf16.msra.mxu0 %v1406
  %1911 = vmatprep.subr.bf16.mxu0 0
  %1912 = vmatpush1.bf16.msra.mxu0 %v1407
  %1913 = vmatprep.subr.bf16.mxu0 0
  %1914 = vmatpush1.bf16.msra.mxu0 %v1408
  %1915 = vmatprep.subr.bf16.mxu0 0
  %1916 = vmatpush1.bf16.msra.mxu0 %v1409
  %1917 = vmatprep.subr.bf16.mxu0 0
  %1918 = vmatpush1.bf16.msra.mxu0 %v1410
  %1919 = vmatprep.subr.bf16.mxu0 0
  %1920 = vmatpush1.bf16.msra.mxu0 %v1411
  %1921 = vmatprep.subr.bf16.mxu0 0
  %1922 = vmatpush1.bf16.msra.mxu0 %v1412
  %1923 = vmatprep.subr.bf16.mxu0 0
  %1924 = vmatpush1.bf16.msra.mxu0 %v1413
  %1925 = vmatprep.subr.bf16.mxu0 0
  %1926 = vmatpush1.bf16.msra.mxu0 %v1414
  %1927 = vmatprep.mubr.bf16.mxu0 %v494
  %1928 = vmatmul.mubr.bf16.gmra.mrb[0].mxu0 %v493
  %v1929 = vpop.f32.mrb[0].mxu0
  %v1930 = vadd.f32 %v1890, %v1929
  %v1931 = vpop.f32.mrb[0].mxu0
  %v1932 = vpop.f32.mrb[0].mxu0
  %v1933 = vpop.f32.mrb[0].mxu0
  %1934 = vdwg.mxu0
  %1935 = vmatprep.subr.bf16.mxu0 0
  %1936 = vmatpush1.bf16.msra.mxu0 %v1415
  %1937 = vmatprep.subr.bf16.mxu0 0
  %1938 = vmatpush1.bf16.msra.mxu0 %v1416
  %1939 = vmatprep.subr.bf16.mxu0 0
  %1940 = vmatpush1.bf16.msra.mxu0 %v1417
  %1941 = vmatprep.subr.bf16.mxu0 0
  %1942 = vmatpush1.bf16.msra.mxu0 %v1418
  %1943 = vmatprep.subr.bf16.mxu0 0
  %1944 = vmatpush1.bf16.msra.mxu0 %v1419
  %1945 = vmatprep.subr.bf16.mxu0 0
  %1946 = vmatpush1.bf16.msra.mxu0 %v1420
  %1947 = vmatprep.subr.bf16.mxu0 0
  %1948 = vmatpush1.bf16.msra.mxu0 %v1421
  %1949 = vmatprep.subr.bf16.mxu0 0
  %1950 = vmatpush1.bf16.msra.mxu0 %v1422
  %1951 = vmatprep.subr.bf16.mxu0 0
  %1952 = vmatpush1.bf16.msra.mxu0 %v1423
  %1953 = vmatprep.subr.bf16.mxu0 0
  %1954 = vmatpush1.bf16.msra.mxu0 %v1424
  %1955 = vmatprep.subr.bf16.mxu0 0
  %1956 = vmatpush1.bf16.msra.mxu0 %v1425
  %1957 = vmatprep.subr.bf16.mxu0 0
  %1958 = vmatpush1.bf16.msra.mxu0 %v1426
  %1959 = vmatprep.subr.bf16.mxu0 0
  %1960 = vmatpush1.bf16.msra.mxu0 %v1427
  %1961 = vmatprep.subr.bf16.mxu0 0
  %1962 = vmatpush1.bf16.msra.mxu0 %v1428
  %1963 = vmatprep.subr.bf16.mxu0 0
  %1964 = vmatpush1.bf16.msra.mxu0 %v1429
  %1965 = vmatprep.subr.bf16.mxu0 0
  %1966 = vmatpush1.bf16.msra.mxu0 %v1430
  %1967 = vmatprep.mubr.bf16.mxu0 %v496
  %1968 = vmatmul.mubr.bf16.gmra.mrb[0].mxu0 %v495
  %v1969 = vpop.f32.mrb[0].mxu0
  %v1970 = vadd.f32 %v1930, %v1969
  %v1971 = vpop.f32.mrb[0].mxu0
  %v1972 = vpop.f32.mrb[0].mxu0
  %v1973 = vpop.f32.mrb[0].mxu0
  %1974 = vdwg.mxu0
  %1975 = vmatprep.subr.bf16.mxu0 0
  %1976 = vmatpush1.bf16.msra.mxu0 %v1431
  %1977 = vmatprep.subr.bf16.mxu0 0
  %1978 = vmatpush1.bf16.msra.mxu0 %v1432
  %1979 = vmatprep.subr.bf16.mxu0 0
  %1980 = vmatpush1.bf16.msra.mxu0 %v1433
  %1981 = vmatprep.subr.bf16.mxu0 0
  %1982 = vmatpush1.bf16.msra.mxu0 %v1434
  %1983 = vmatprep.subr.bf16.mxu0 0
  %1984 = vmatpush1.bf16.msra.mxu0 %v1435
  %1985 = vmatprep.subr.bf16.mxu0 0
  %1986 = vmatpush1.bf16.msra.mxu0 %v1436
  %1987 = vmatprep.subr.bf16.mxu0 0
  %1988 = vmatpush1.bf16.msra.mxu0 %v1437
  %1989 = vmatprep.subr.bf16.mxu0 0
  %1990 = vmatpush1.bf16.msra.mxu0 %v1438
  %1991 = vmatprep.subr.bf16.mxu0 0
  %1992 = vmatpush1.bf16.msra.mxu0 %v1439
  %1993 = vmatprep.subr.bf16.mxu0 0
  %1994 = vmatpush1.bf16.msra.mxu0 %v1440
  %1995 = vmatprep.subr.bf16.mxu0 0
  %1996 = vmatpush1.bf16.msra.mxu0 %v1441
  %1997 = vmatprep.subr.bf16.mxu0 0
  %1998 = vmatpush1.bf16.msra.mxu0 %v1442
  %1999 = vmatprep.subr.bf16.mxu0 0
  %2000 = vmatpush1.bf16.msra.mxu0 %v1443
  %2001 = vmatprep.subr.bf16.mxu0 0
  %2002 = vmatpush1.bf16.msra.mxu0 %v1444
  %2003 = vmatprep.subr.bf16.mxu0 0
  %2004 = vmatpush1.bf16.msra.mxu0 %v1445
  %2005 = vmatprep.subr.bf16.mxu0 0
  %2006 = vmatpush1.bf16.msra.mxu0 %v1446
  %2007 = vmatprep.mubr.bf16.mxu0 %v498
  %2008 = vmatmul.mubr.bf16.gmra.mrb[0].mxu0 %v497
  %v2009 = vpop.f32.mrb[0].mxu0
  %v2010 = vadd.f32 %v1970, %v2009
  %v2011 = vpop.f32.mrb[0].mxu0
  %v2012 = vpop.f32.mrb[0].mxu0
  %v2013 = vpop.f32.mrb[0].mxu0
  %2014 = vdwg.mxu0
  %2015 = vmatprep.subr.bf16.mxu0 0
  %2016 = vmatpush1.bf16.msra.mxu0 %v1447
  %2017 = vmatprep.subr.bf16.mxu0 0
  %2018 = vmatpush1.bf16.msra.mxu0 %v1448
  %2019 = vmatprep.subr.bf16.mxu0 0
  %2020 = vmatpush1.bf16.msra.mxu0 %v1449
  %2021 = vmatprep.subr.bf16.mxu0 0
  %2022 = vmatpush1.bf16.msra.mxu0 %v1450
  %2023 = vmatprep.subr.bf16.mxu0 0
  %2024 = vmatpush1.bf16.msra.mxu0 %v1451
  %2025 = vmatprep.subr.bf16.mxu0 0
  %2026 = vmatpush1.bf16.msra.mxu0 %v1452
  %2027 = vmatprep.subr.bf16.mxu0 0
  %2028 = vmatpush1.bf16.msra.mxu0 %v1453
  %2029 = vmatprep.subr.bf16.mxu0 0
  %2030 = vmatpush1.bf16.msra.mxu0 %v1454
  %2031 = vmatprep.subr.bf16.mxu0 0
  %2032 = vmatpush1.bf16.msra.mxu0 %v1455
  %2033 = vmatprep.subr.bf16.mxu0 0
  %2034 = vmatpush1.bf16.msra.mxu0 %v1456
  %2035 = vmatprep.subr.bf16.mxu0 0
  %2036 = vmatpush1.bf16.msra.mxu0 %v1457
  %2037 = vmatprep.subr.bf16.mxu0 0
  %2038 = vmatpush1.bf16.msra.mxu0 %v1458
  %2039 = vmatprep.subr.bf16.mxu0 0
  %2040 = vmatpush1.bf16.msra.mxu0 %v1459
  %2041 = vmatprep.subr.bf16.mxu0 0
  %2042 = vmatpush1.bf16.msra.mxu0 %v1460
  %2043 = vmatprep.subr.bf16.mxu0 0
  %2044 = vmatpush1.bf16.msra.mxu0 %v1461
  %2045 = vmatprep.subr.bf16.mxu0 0
  %2046 = vmatpush1.bf16.msra.mxu0 %v1462
  %2047 = vmatprep.mubr.bf16.mxu0 %v500
  %2048 = vmatmul.mubr.bf16.gmra.mrb[0].mxu0 %v499
  %v2049 = vpop.f32.mrb[0].mxu0
  %v2050 = vadd.f32 %v2010, %v2049
  %v2051 = vpop.f32.mrb[0].mxu0
  %v2052 = vpop.f32.mrb[0].mxu0
  %v2053 = vpop.f32.mrb[0].mxu0
  %2054 = vdwg.mxu0
  %2055 = vmatprep.subr.bf16.mxu0 0
  %2056 = vmatpush1.bf16.msra.mxu0 %v1463
  %2057 = vmatprep.subr.bf16.mxu0 0
  %2058 = vmatpush1.bf16.msra.mxu0 %v1464
  %2059 = vmatprep.subr.bf16.mxu0 0
  %2060 = vmatpush1.bf16.msra.mxu0 %v1465
  %2061 = vmatprep.subr.bf16.mxu0 0
  %2062 = vmatpush1.bf16.msra.mxu0 %v1466
  %2063 = vmatprep.subr.bf16.mxu0 0
  %2064 = vmatpush1.bf16.msra.mxu0 %v1467
  %2065 = vmatprep.subr.bf16.mxu0 0
  %2066 = vmatpush1.bf16.msra.mxu0 %v1468
  %2067 = vmatprep.subr.bf16.mxu0 0
  %2068 = vmatpush1.bf16.msra.mxu0 %v1469
  %2069 = vmatprep.subr.bf16.mxu0 0
  %2070 = vmatpush1.bf16.msra.mxu0 %v1470
  %2071 = vmatprep.subr.bf16.mxu0 0
  %2072 = vmatpush1.bf16.msra.mxu0 %v1471
  %2073 = vmatprep.subr.bf16.mxu0 0
  %2074 = vmatpush1.bf16.msra.mxu0 %v1472
  %2075 = vmatprep.subr.bf16.mxu0 0
  %2076 = vmatpush1.bf16.msra.mxu0 %v1473
  %2077 = vmatprep.subr.bf16.mxu0 0
  %2078 = vmatpush1.bf16.msra.mxu0 %v1474
  %2079 = vmatprep.subr.bf16.mxu0 0
  %2080 = vmatpush1.bf16.msra.mxu0 %v1475
  %2081 = vmatprep.subr.bf16.mxu0 0
  %2082 = vmatpush1.bf16.msra.mxu0 %v1476
  %2083 = vmatprep.subr.bf16.mxu0 0
  %2084 = vmatpush1.bf16.msra.mxu0 %v1477
  %2085 = vmatprep.subr.bf16.mxu0 0
  %2086 = vmatpush1.bf16.msra.mxu0 %v1478
  %2087 = vmatprep.mubr.bf16.mxu0 %v502
  %2088 = vmatmul.mubr.bf16.gmra.mrb[0].mxu0 %v501
  %v2089 = vpop.f32.mrb[0].mxu0
  %v2090 = vadd.f32 %v2050, %v2089
  %v2091 = vpop.f32.mrb[0].mxu0
  %v2092 = vpop.f32.mrb[0].mxu0
  %v2093 = vpop.f32.mrb[0].mxu0
  %2094 = vdwg.mxu0
  %2095 = vmatprep.subr.bf16.mxu0 0
  %2096 = vmatpush1.bf16.msra.mxu0 %v1479
  %2097 = vmatprep.subr.bf16.mxu0 0
  %2098 = vmatpush1.bf16.msra.mxu0 %v1480
  %2099 = vmatprep.subr.bf16.mxu0 0
  %2100 = vmatpush1.bf16.msra.mxu0 %v1481
  %2101 = vmatprep.subr.bf16.mxu0 0
  %2102 = vmatpush1.bf16.msra.mxu0 %v1482
  %2103 = vmatprep.subr.bf16.mxu0 0
  %2104 = vmatpush1.bf16.msra.mxu0 %v1483
  %2105 = vmatprep.subr.bf16.mxu0 0
  %2106 = vmatpush1.bf16.msra.mxu0 %v1484
  %2107 = vmatprep.subr.bf16.mxu0 0
  %2108 = vmatpush1.bf16.msra.mxu0 %v1485
  %2109 = vmatprep.subr.bf16.mxu0 0
  %2110 = vmatpush1.bf16.msra.mxu0 %v1486
  %2111 = vmatprep.subr.bf16.mxu0 0
  %2112 = vmatpush1.bf16.msra.mxu0 %v1487
  %2113 = vmatprep.subr.bf16.mxu0 0
  %2114 = vmatpush1.bf16.msra.mxu0 %v1488
  %2115 = vmatprep.subr.bf16.mxu0 0
  %2116 = vmatpush1.bf16.msra.mxu0 %v1489
  %2117 = vmatprep.subr.bf16.mxu0 0
  %2118 = vmatpush1.bf16.msra.mxu0 %v1490
  %2119 = vmatprep.subr.bf16.mxu0 0
  %2120 = vmatpush1.bf16.msra.mxu0 %v1491
  %2121 = vmatprep.subr.bf16.mxu0 0
  %2122 = vmatpush1.bf16.msra.mxu0 %v1492
  %2123 = vmatprep.subr.bf16.mxu0 0
  %2124 = vmatpush1.bf16.msra.mxu0 %v1493
  %2125 = vmatprep.subr.bf16.mxu0 0
  %2126 = vmatpush1.bf16.msra.mxu0 %v1494
  %2127 = vmatprep.mubr.bf16.mxu0 %v504
  %2128 = vmatmul.mubr.bf16.gmra.mrb[0].mxu0 %v503
  %v2129 = vpop.f32.mrb[0].mxu0
  %v2130 = vadd.f32 %v2090, %v2129
  %v2131 = vpop.f32.mrb[0].mxu0
  %v2132 = vpop.f32.mrb[0].mxu0
  %v2133 = vpop.f32.mrb[0].mxu0
  %2134 = vdwg.mxu0
  %2135 = vmatprep.subr.bf16.mxu0 0
  %2136 = vmatpush1.bf16.msra.mxu0 %v1495
  %2137 = vmatprep.subr.bf16.mxu0 0
  %2138 = vmatpush1.bf16.msra.mxu0 %v1496
  %2139 = vmatprep.subr.bf16.mxu0 0
  %2140 = vmatpush1.bf16.msra.mxu0 %v1497
  %2141 = vmatprep.subr.bf16.mxu0 0
  %2142 = vmatpush1.bf16.msra.mxu0 %v1498
  %2143 = vmatprep.subr.bf16.mxu0 0
  %2144 = vmatpush1.bf16.msra.mxu0 %v1499
  %2145 = vmatprep.subr.bf16.mxu0 0
  %2146 = vmatpush1.bf16.msra.mxu0 %v1500
  %2147 = vmatprep.subr.bf16.mxu0 0
  %2148 = vmatpush1.bf16.msra.mxu0 %v1501
  %2149 = vmatprep.subr.bf16.mxu0 0
  %2150 = vmatpush1.bf16.msra.mxu0 %v1502
  %2151 = vmatprep.subr.bf16.mxu0 0
  %2152 = vmatpush1.bf16.msra.mxu0 %v1503
  %2153 = vmatprep.subr.bf16.mxu0 0
  %2154 = vmatpush1.bf16.msra.mxu0 %v1504
  %2155 = vmatprep.subr.bf16.mxu0 0
  %2156 = vmatpush1.bf16.msra.mxu0 %v1505
  %2157 = vmatprep.subr.bf16.mxu0 0
  %2158 = vmatpush1.bf16.msra.mxu0 %v1506
  %2159 = vmatprep.subr.bf16.mxu0 0
  %2160 = vmatpush1.bf16.msra.mxu0 %v1507
  %2161 = vmatprep.subr.bf16.mxu0 0
  %2162 = vmatpush1.bf16.msra.mxu0 %v1508
  %2163 = vmatprep.subr.bf16.mxu0 0
  %2164 = vmatpush1.bf16.msra.mxu0 %v1509
  %2165 = vmatprep.subr.bf16.mxu0 0
  %2166 = vmatpush1.bf16.msra.mxu0 %v1510
  %2167 = vmatprep.mubr.bf16.mxu0 %v506
  %2168 = vmatmul.mubr.bf16.gmra.mrb[0].mxu0 %v505
  %v2169 = vpop.f32.mrb[0].mxu0
  %v2170 = vadd.f32 %v2130, %v2169
  %v2171 = vpop.f32.mrb[0].mxu0
  %v2172 = vpop.f32.mrb[0].mxu0
  %v2173 = vpop.f32.mrb[0].mxu0
  %2174 = vdwg.mxu0
  %2175 = vmatprep.subr.bf16.mxu0 0
  %2176 = vmatpush1.bf16.msra.mxu0 %v1511
  %2177 = vmatprep.subr.bf16.mxu0 0
  %2178 = vmatpush1.bf16.msra.mxu0 %v1512
  %2179 = vmatprep.subr.bf16.mxu0 0
  %2180 = vmatpush1.bf16.msra.mxu0 %v1513
  %2181 = vmatprep.subr.bf16.mxu0 0
  %2182 = vmatpush1.bf16.msra.mxu0 %v1514
  %2183 = vmatprep.subr.bf16.mxu0 0
  %2184 = vmatpush1.bf16.msra.mxu0 %v1515
  %2185 = vmatprep.subr.bf16.mxu0 0
  %2186 = vmatpush1.bf16.msra.mxu0 %v1516
  %2187 = vmatprep.subr.bf16.mxu0 0
  %2188 = vmatpush1.bf16.msra.mxu0 %v1517
  %2189 = vmatprep.subr.bf16.mxu0 0
  %2190 = vmatpush1.bf16.msra.mxu0 %v1518
  %2191 = vmatprep.subr.bf16.mxu0 0
  %2192 = vmatpush1.bf16.msra.mxu0 %v1519
  %2193 = vmatprep.subr.bf16.mxu0 0
  %2194 = vmatpush1.bf16.msra.mxu0 %v1520
  %2195 = vmatprep.subr.bf16.mxu0 0
  %2196 = vmatpush1.bf16.msra.mxu0 %v1521
  %2197 = vmatprep.subr.bf16.mxu0 0
  %2198 = vmatpush1.bf16.msra.mxu0 %v1522
  %2199 = vmatprep.subr.bf16.mxu0 0
  %2200 = vmatpush1.bf16.msra.mxu0 %v1523
  %2201 = vmatprep.subr.bf16.mxu0 0
  %2202 = vmatpush1.bf16.msra.mxu0 %v1524
  %2203 = vmatprep.subr.bf16.mxu0 0
  %2204 = vmatpush1.bf16.msra.mxu0 %v1525
  %2205 = vmatprep.subr.bf16.mxu0 0
  %2206 = vmatpush1.bf16.msra.mxu0 %v1526
  %2207 = vmatprep.mubr.bf16.mxu0 %v508
  %2208 = vmatmul.mubr.bf16.gmra.mrb[0].mxu0 %v507
  %v2209 = vpop.f32.mrb[0].mxu0
  %v2210 = vadd.f32 %v2170, %v2209
  %v2211 = vpop.f32.mrb[0].mxu0
  %v2212 = vpop.f32.mrb[0].mxu0
  %v2213 = vpop.f32.mrb[0].mxu0
  %2214 = vdwg.mxu0
  %2215 = vmatprep.subr.bf16.mxu0 0
  %2216 = vmatpush1.bf16.msra.mxu0 %v1527
  %2217 = vmatprep.subr.bf16.mxu0 0
  %2218 = vmatpush1.bf16.msra.mxu0 %v1528
  %2219 = vmatprep.subr.bf16.mxu0 0
  %2220 = vmatpush1.bf16.msra.mxu0 %v1529
  %2221 = vmatprep.subr.bf16.mxu0 0
  %2222 = vmatpush1.bf16.msra.mxu0 %v1530
  %2223 = vmatprep.subr.bf16.mxu0 0
  %2224 = vmatpush1.bf16.msra.mxu0 %v1531
  %2225 = vmatprep.subr.bf16.mxu0 0
  %2226 = vmatpush1.bf16.msra.mxu0 %v1532
  %2227 = vmatprep.subr.bf16.mxu0 0
  %2228 = vmatpush1.bf16.msra.mxu0 %v1533
  %2229 = vmatprep.subr.bf16.mxu0 0
  %2230 = vmatpush1.bf16.msra.mxu0 %v1534
  %2231 = vmatprep.subr.bf16.mxu0 0
  %2232 = vmatpush1.bf16.msra.mxu0 0
  %2233 = vmatprep.subr.bf16.mxu0 0
  %2234 = vmatpush1.bf16.msra.mxu0 0
  %2235 = vmatprep.subr.bf16.mxu0 0
  %2236 = vmatpush1.bf16.msra.mxu0 0
  %2237 = vmatprep.subr.bf16.mxu0 0
  %2238 = vmatpush1.bf16.msra.mxu0 0
  %2239 = vmatprep.subr.bf16.mxu0 0
  %2240 = vmatpush1.bf16.msra.mxu0 0
  %2241 = vmatprep.subr.bf16.mxu0 0
  %2242 = vmatpush1.bf16.msra.mxu0 0
  %2243 = vmatprep.subr.bf16.mxu0 0
  %2244 = vmatpush1.bf16.msra.mxu0 0
  %2245 = vmatprep.subr.bf16.mxu0 0
  %2246 = vmatpush1.bf16.msra.mxu0 0
  %2247 = vmatprep.mubr.bf16.mxu0 0
  %2248 = vmatmul.mubr.bf16.gmra.mrb[0].mxu0 %v509
  %v2249 = vpop.f32.mrb[0].mxu0
  %v2250 = vadd.f32 %v2210, %v2249
  %v2251 = vpop.f32.mrb[0].mxu0
  %v2252 = vpop.f32.mrb[0].mxu0
  %v2253 = vpop.f32.mrb[0].mxu0
  %2254 = vdwg.mxu0
  %v2255 = vmax.f32 %v2250, 0.0
  %v2256 = vpack.c.bf16 %v2255, %v2255
  %v2257 = vld [vmem:[%s3] sm:$0xf]
  %v2258 = vld [vmem:[%s3 + $0x4] sm:$0xf]
  %v2259 = vld [vmem:[%s3 + $0x8] sm:$0xf]
  %v2260 = vld [vmem:[%s3 + $0xc] sm:$0xf]
  %v2261 = vld [vmem:[%s3 + $0x10] sm:$0xf]
  %v2262 = vld [vmem:[%s3 + $0x14] sm:$0xf]
  %v2263 = vld [vmem:[%s3 + $0x18] sm:$0xf]
  %v2264 = vld [vmem:[%s3 + $0x1c] sm:$0xf]
  %v2265 = vld [vmem:[%s3 + $0x20] sm:$0xf]
  %v2266 = vld [vmem:[%s3 + $0x24] sm:$0xf]
  %v2267 = vld [vmem:[%s3 + $0x28] sm:$0xf]
  %v2268 = vld [vmem:[%s3 + $0x2c] sm:$0xf]
  %v2269 = vld [vmem:[%s3 + $0x30] sm:$0xf]
  %v2270 = vld [vmem:[%s3 + $0x34] sm:$0xf]
  %v2271 = vld [vmem:[%s3 + $0x38] sm:$0xf]
  %v2272 = vld [vmem:[%s3 + $0x3c] sm:$0xf]
  %v2273 = vld [vmem:[%s4] sm:$0x1]
  %v2275 = vlaneseq
  %v2276 = vshrl.u32 %v2275, 7
  %v2277 = vsub.s32 0, %v2276
  %v2278 = vrot.slane %v2273, %v2277
  %v2296 = vunpack.c.l.b16 %v2257
  %v2297 = vunpack.c.l.b16 %v2258
  %v2298 = vunpack.c.l.b16 %v2259
  %v2299 = vunpack.c.l.b16 %v2260
  %v2300 = vunpack.c.l.b16 %v2261
  %v2301 = vunpack.c.l.b16 %v2262
  %v2302 = vunpack.c.l.b16 %v2263
  %v2303 = vunpack.c.l.b16 %v2264
  %v2304 = vunpack.c.l.b16 %v2265
  %v2305 = vunpack.c.l.b16 %v2266
  %v2306 = vunpack.c.l.b16 %v2267
  %v2307 = vunpack.c.l.b16 %v2268
  %v2308 = vunpack.c.l.b16 %v2269
  %v2309 = vunpack.c.l.b16 %v2270
  %v2310 = vunpack.c.l.b16 %v2271
  %v2311 = vunpack.c.l.b16 %v2272
  %v2312 = vpack.c.b16 %v2297, %v2296
  %v2313 = vpack.c.b16 %v2299, %v2298
  %v2314 = vpack.c.b16 %v2301, %v2300
  %v2315 = vpack.c.b16 %v2303, %v2302
  %v2316 = vpack.c.b16 %v2305, %v2304
  %v2317 = vpack.c.b16 %v2307, %v2306
  %v2318 = vpack.c.b16 %v2309, %v2308
  %v2319 = vpack.c.b16 %v2311, %v2310
  %2328 = vmatprep.subr.bf16.mxu0 0
  %2329 = vmatpush1.bf16.msra.mxu0 %v2312
  %2330 = vmatprep.subr.bf16.mxu0 0
  %2331 = vmatpush1.bf16.msra.mxu0 %v2313
  %2332 = vmatprep.subr.bf16.mxu0 0
  %2333 = vmatpush1.bf16.msra.mxu0 %v2314
  %2334 = vmatprep.subr.bf16.mxu0 0
  %2335 = vmatpush1.bf16.msra.mxu0 %v2315
  %2336 = vmatprep.subr.bf16.mxu0 0
  %2337 = vmatpush1.bf16.msra.mxu0 %v2316
  %2338 = vmatprep.subr.bf16.mxu0 0
  %2339 = vmatpush1.bf16.msra.mxu0 %v2317
  %2340 = vmatprep.subr.bf16.mxu0 0
  %2341 = vmatpush1.bf16.msra.mxu0 %v2318
  %2342 = vmatprep.subr.bf16.mxu0 0
  %2343 = vmatpush1.bf16.msra.mxu0 %v2319
  %2344 = vmatprep.subr.bf16.mxu0 0
  %2345 = vmatpush1.bf16.msra.mxu0 0
  %2346 = vmatprep.subr.bf16.mxu0 0
  %2347 = vmatpush1.bf16.msra.mxu0 0
  %2348 = vmatprep.subr.bf16.mxu0 0
  %2349 = vmatpush1.bf16.msra.mxu0 0
  %2350 = vmatprep.subr.bf16.mxu0 0
  %2351 = vmatpush1.bf16.msra.mxu0 0
  %2352 = vmatprep.subr.bf16.mxu0 0
  %2353 = vmatpush1.bf16.msra.mxu0 0
  %2354 = vmatprep.subr.bf16.mxu0 0
  %2355 = vmatpush1.bf16.msra.mxu0 0
  %2356 = vmatprep.subr.bf16.mxu0 0
  %2357 = vmatpush1.bf16.msra.mxu0 0
  %2358 = vmatprep.subr.bf16.mxu0 0
  %2359 = vmatpush1.bf16.msra.mxu0 0
  %2360 = vmatprep.mubr.bf16.mxu0 0
  %2361 = vmatmul.mubr.bf16.gmra.mrb[0].mxu0 %v2256
  %v2362 = vpop.f32.mrb[0].mxu0
  %v2363 = vadd.f32 %v2278, %v2362
  %v2364 = vpop.f32.mrb[0].mxu0
  %v2365 = vpop.f32.mrb[0].mxu0
  %v2366 = vpop.f32.mrb[0].mxu0
  %2367 = vdwg.mxu0
  %v2368 = vmax.f32 %v2363, 0.0
  %v2369 = vpack.c.bf16 %v2368, %v2368
  %v2370 = vld [vmem:[%s5] sm:$0xf]
  %v2371 = vld [vmem:[%s5 + $0x4] sm:$0xf]
  %v2372 = vld [vmem:[%s5 + $0x8] sm:$0xf]
  %v2373 = vld [vmem:[%s5 + $0xc] sm:$0xf]
  %v2374 = vld [vmem:[%s5 + $0x10] sm:$0xf]
  %v2375 = vld [vmem:[%s5 + $0x14] sm:$0xf]
  %v2376 = vld [vmem:[%s5 + $0x18] sm:$0xf]
  %v2377 = vld [vmem:[%s5 + $0x1c] sm:$0xf]
  %v2378 = vld [vmem:[%s5 + $0x20] sm:$0xf]
  %v2379 = vld [vmem:[%s5 + $0x24] sm:$0xf]
  %v2380 = vld [vmem:[%s5 + $0x28] sm:$0xf]
  %v2381 = vld [vmem:[%s5 + $0x2c] sm:$0xf]
  %v2382 = vld [vmem:[%s5 + $0x30] sm:$0xf]
  %v2383 = vld [vmem:[%s5 + $0x34] sm:$0xf]
  %v2384 = vld [vmem:[%s5 + $0x38] sm:$0xf]
  %v2385 = vld [vmem:[%s5 + $0x3c] sm:$0xf]
  %v2386 = vld [vmem:[%s6] sm:$0x1]
  %v2388 = vlaneseq
  %v2389 = vshrl.u32 %v2388, 7
  %v2390 = vsub.s32 0, %v2389
  %v2391 = vrot.slane %v2386, %v2390
  %v2409 = vunpack.c.l.b16 %v2370
  %v2410 = vunpack.c.l.b16 %v2371
  %v2411 = vunpack.c.l.b16 %v2372
  %v2412 = vunpack.c.l.b16 %v2373
  %v2413 = vunpack.c.l.b16 %v2374
  %v2414 = vunpack.c.l.b16 %v2375
  %v2415 = vunpack.c.l.b16 %v2376
  %v2416 = vunpack.c.l.b16 %v2377
  %v2417 = vunpack.c.l.b16 %v2378
  %v2418 = vunpack.c.l.b16 %v2379
  %v2419 = vunpack.c.l.b16 %v2380
  %v2420 = vunpack.c.l.b16 %v2381
  %v2421 = vunpack.c.l.b16 %v2382
  %v2422 = vunpack.c.l.b16 %v2383
  %v2423 = vunpack.c.l.b16 %v2384
  %v2424 = vunpack.c.l.b16 %v2385
  %v2425 = vpack.c.b16 %v2410, %v2409
  %v2426 = vpack.c.b16 %v2412, %v2411
  %v2427 = vpack.c.b16 %v2414, %v2413
  %v2428 = vpack.c.b16 %v2416, %v2415
  %v2429 = vpack.c.b16 %v2418, %v2417
  %v2430 = vpack.c.b16 %v2420, %v2419
  %v2431 = vpack.c.b16 %v2422, %v2421
  %v2432 = vpack.c.b16 %v2424, %v2423
  %2441 = vmatprep.subr.bf16.mxu0 0
  %2442 = vmatpush1.bf16.msra.mxu0 %v2425
  %2443 = vmatprep.subr.bf16.mxu0 0
  %2444 = vmatpush1.bf16.msra.mxu0 %v2426
  %2445 = vmatprep.subr.bf16.mxu0 0
  %2446 = vmatpush1.bf16.msra.mxu0 %v2427
  %2447 = vmatprep.subr.bf16.mxu0 0
  %2448 = vmatpush1.bf16.msra.mxu0 %v2428
  %2449 = vmatprep.subr.bf16.mxu0 0
  %2450 = vmatpush1.bf16.msra.mxu0 %v2429
  %2451 = vmatprep.subr.bf16.mxu0 0
  %2452 = vmatpush1.bf16.msra.mxu0 %v2430
  %2453 = vmatprep.subr.bf16.mxu0 0
  %2454 = vmatpush1.bf16.msra.mxu0 %v2431
  %2455 = vmatprep.subr.bf16.mxu0 0
  %2456 = vmatpush1.bf16.msra.mxu0 %v2432
  %2457 = vmatprep.subr.bf16.mxu0 0
  %2458 = vmatpush1.bf16.msra.mxu0 0
  %2459 = vmatprep.subr.bf16.mxu0 0
  %2460 = vmatpush1.bf16.msra.mxu0 0
  %2461 = vmatprep.subr.bf16.mxu0 0
  %2462 = vmatpush1.bf16.msra.mxu0 0
  %2463 = vmatprep.subr.bf16.mxu0 0
  %2464 = vmatpush1.bf16.msra.mxu0 0
  %2465 = vmatprep.subr.bf16.mxu0 0
  %2466 = vmatpush1.bf16.msra.mxu0 0
  %2467 = vmatprep.subr.bf16.mxu0 0
  %2468 = vmatpush1.bf16.msra.mxu0 0
  %2469 = vmatprep.subr.bf16.mxu0 0
  %2470 = vmatpush1.bf16.msra.mxu0 0
  %2471 = vmatprep.subr.bf16.mxu0 0
  %2472 = vmatpush1.bf16.msra.mxu0 0
  %2473 = vmatprep.mubr.bf16.mxu0 0
  %2474 = vmatmul.mubr.bf16.gmra.mrb[0].mxu0 %v2369
  %v2475 = vpop.f32.mrb[0].mxu0
  %v2476 = vadd.f32 %v2391, %v2475
  %v2477 = vpop.f32.mrb[0].mxu0
  %v2478 = vpop.f32.mrb[0].mxu0
  %v2479 = vpop.f32.mrb[0].mxu0
  %2480 = vdwg.mxu0
  %2481 = vst [vmem:[%s7] sm:$0xff] %v2476
  // Predicated region
  $region30: #{basic_conv_net.5} parent=0 // pred_check
    _
  $region31: #{basic_conv_net.5} parent=0 // pred_check_branch
    %2483 = sbr.rel (0) target = $region33
  $region32: #{basic_conv_net.5} parent=0 // pred_region
    _
  $region33: #{basic_conv_net.5} parent=0 // pred_fallthru
    _
  // Predicated region
  $region34: #{basic_conv_net.5} parent=0 // pred_check
    _
  $region35: #{basic_conv_net.5} parent=0 // pred_check_branch
    %2485 = sbr.rel (0) target = $region37
  $region36: #{basic_conv_net.5} parent=0 // pred_region
    _
  $region37: #{basic_conv_net.5} parent=0 // pred_fallthru
    _

</llo_original>
